<compile_context>
chip_gen: v6e
topology: v6e:2x2x1
jax: 0.10.0
libtpu: 0.0.40
codegen_flags: <defaults>
</compile_context>

<pallas_src>
import jax
import jax.numpy as jnp
from jax.experimental import pallas as pl
from jax.experimental.pallas import tpu as pltpu

# ------------------------- tiny-BERT configuration -------------------------
VOCAB = 100      # vocab size
MAX_POS = 16     # max position embeddings
B = 2            # batch
S = 8            # sequence length
T = B * S        # flattened tokens
H = 32           # hidden size
NH = 4           # attention heads
HD = H // NH     # head dim
FF = 64          # intermediate (FFN) size
NLAYERS = 2      # encoder layers
EPS = 1e-12      # BERT LayerNorm eps


def _layernorm(x, gamma, beta):
    mu = jnp.mean(x, axis=-1, keepdims=True)
    var = jnp.mean((x - mu) ** 2, axis=-1, keepdims=True)
    return (x - mu) * jax.lax.rsqrt(var + EPS) * gamma + beta


# ------------------------------ fused kernel --------------------------------
def bert_encoder_kernel(emb_ref, mask_ref, eg_ref, eb_ref,
                        wq_ref, bq_ref, wk_ref, bk_ref, wv_ref, bv_ref,
                        wo_ref, bo_ref, ln1g_ref, ln1b_ref,
                        wi_ref, bi_ref, wo2_ref, bo2_ref, ln2g_ref, ln2b_ref,
                        out_ref):
    """Whole BERT encoder: embed-LN + NLAYERS transformer layers, VMEM-resident.

    emb_ref  : (T, H)  summed word+pos+type embeddings (T = B*S)
    mask_ref : (T, T)  additive attention mask (0 attend / -1e9 masked),
                       block-diagonal over batch + key padding
    weights  : stacked per layer, leading dim NLAYERS
    out_ref  : (T, H)  last_hidden_state, flattened over (B, S)
    """
    x = _layernorm(emb_ref[...], eg_ref[...], eb_ref[...])   # (T, H)
    mask = mask_ref[...]                                     # (T, T)
    scale = 1.0 / (HD ** 0.5)

    for l in range(NLAYERS):                                 # static unroll
        # ---- self-attention: whole-batch projections ----
        q = jnp.dot(x, wq_ref[l], preferred_element_type=jnp.float32) + bq_ref[l]
        k = jnp.dot(x, wk_ref[l], preferred_element_type=jnp.float32) + bk_ref[l]
        v = jnp.dot(x, wv_ref[l], preferred_element_type=jnp.float32) + bv_ref[l]
        wo_l = wo_ref[l]                                     # (H, H)

        attn_out = jnp.zeros((T, H), jnp.float32)
        for h in range(NH):                                  # static unroll
            sl = slice(h * HD, (h + 1) * HD)
            qh, kh, vh = q[:, sl], k[:, sl], v[:, sl]        # (T, HD)
            s = jnp.dot(qh, kh.T, preferred_element_type=jnp.float32)
            s = s * scale + mask                             # (T, T)
            s = s - jnp.max(s, axis=-1, keepdims=True)
            p = jnp.exp(s)
            p = p * pl.reciprocal(jnp.sum(p, axis=-1, keepdims=True), approx=True)
            ctx = jnp.dot(p, vh, preferred_element_type=jnp.float32)     # (T, HD)
            # accumulate per-head output projection (avoids concatenate)
            attn_out = attn_out + jnp.dot(ctx, wo_l[sl, :],
                                          preferred_element_type=jnp.float32)
        attn_out = attn_out + bo_ref[l]

        x = _layernorm(x + attn_out, ln1g_ref[l], ln1b_ref[l])

        # ---- feed-forward ----
        hmid = jnp.dot(x, wi_ref[l], preferred_element_type=jnp.float32) + bi_ref[l]
        # TODO(synk): HF BERT default is exact (erf) GELU; tanh approx kept
        # here for robust Mosaic lowering (~1e-3 relative difference).
        hmid = jax.nn.gelu(hmid, approximate=True)
        ffn = jnp.dot(hmid, wo2_ref[l], preferred_element_type=jnp.float32) + bo2_ref[l]

        x = _layernorm(x + ffn, ln2g_ref[l], ln2b_ref[l])

    out_ref[...] = x


# ------------------------------ parameter init ------------------------------
def init_bert_params(key):
    """Deterministic synthetic BERT parameters, per-layer weights stacked."""
    keys = jax.random.split(key, 3 + NLAYERS * 6)
    std = 0.02

    def nrm(k, shape):
        return (std * jax.random.normal(k, shape)).astype(jnp.float32)

    params = {
        "word": nrm(keys[0], (VOCAB, H)),
        "pos": nrm(keys[1], (MAX_POS, H)),
        "type": nrm(keys[2], (2, H)),
        "emb_gamma": jnp.ones((1, H), jnp.float32),
        "emb_beta": jnp.zeros((1, H), jnp.float32),
    }

    wq, wk, wv, wo, wi, wo2 = [], [], [], [], [], []
    ki = 3
    for _ in range(NLAYERS):
        lk = keys[ki:ki + 6]
        ki += 6
        wq.append(nrm(lk[0], (H, H)))
        wk.append(nrm(lk[1], (H, H)))
        wv.append(nrm(lk[2], (H, H)))
        wo.append(nrm(lk[3], (H, H)))
        wi.append(nrm(lk[4], (H, FF)))
        wo2.append(nrm(lk[5], (FF, H)))

    params.update({
        "wq": jnp.stack(wq), "wk": jnp.stack(wk), "wv": jnp.stack(wv),
        "wo": jnp.stack(wo), "wi": jnp.stack(wi), "wo2": jnp.stack(wo2),
        "bq": jnp.zeros((NLAYERS, 1, H), jnp.float32),
        "bk": jnp.zeros((NLAYERS, 1, H), jnp.float32),
        "bv": jnp.zeros((NLAYERS, 1, H), jnp.float32),
        "bo": jnp.zeros((NLAYERS, 1, H), jnp.float32),
        "bi": jnp.zeros((NLAYERS, 1, FF), jnp.float32),
        "bo2": jnp.zeros((NLAYERS, 1, H), jnp.float32),
        "ln1g": jnp.ones((NLAYERS, 1, H), jnp.float32),
        "ln1b": jnp.zeros((NLAYERS, 1, H), jnp.float32),
        "ln2g": jnp.ones((NLAYERS, 1, H), jnp.float32),
        "ln2b": jnp.zeros((NLAYERS, 1, H), jnp.float32),
    })
    return params


# ------------------------------- BERT forward --------------------------------
def bert_encoder(params, input_ids, attention_mask):
    # Embedding lookups (gathers) -- plain-JAX glue.
    word_emb = params["word"][input_ids]                      # (B, S, H)
    pos_emb = params["pos"][jnp.arange(S)][None, :, :]        # (1, S, H)
    # TODO(synk): token_type_ids fixed to 0 (synthetic setup).
    type_emb = params["type"][0][None, None, :]               # (1, 1, H)
    emb2d = (word_emb + pos_emb + type_emb).reshape(T, H).astype(jnp.float32)

    # Additive attention mask over flattened tokens, (T, T):
    # 0 where query may attend (same sequence AND key not padded), -1e9 else.
    batch_ids = jnp.repeat(jnp.arange(B), S)                  # (T,)
    same_batch = batch_ids[:, None] == batch_ids[None, :]     # (T, T)
    key_valid = attention_mask.reshape(T).astype(bool)[None, :]
    addmask = jnp.where(same_batch & key_valid, 0.0, -1e9).astype(jnp.float32)

    last_hidden_2d = pl.pallas_call(
        bert_encoder_kernel,
        out_shape=jax.ShapeDtypeStruct((T, H), jnp.float32),
    )(emb2d, addmask, params["emb_gamma"], params["emb_beta"],
      params["wq"], params["bq"], params["wk"], params["bk"],
      params["wv"], params["bv"], params["wo"], params["bo"],
      params["ln1g"], params["ln1b"], params["wi"], params["bi"],
      params["wo2"], params["bo2"], params["ln2g"], params["ln2b"])

    return last_hidden_2d.reshape(B, S, H)                    # last_hidden_state


def bert_biencoder_forward(mention_params, candidate_params,
                           input_ids, attention_mask, is_mention=True):
    # TODO(synk): shard_bsz micro-batching path of the original module is a
    # host-side loop and is not implemented (shard_bsz=None path only).
    params = mention_params if is_mention else candidate_params
    last_hidden = bert_encoder(params, input_ids, attention_mask)
    return last_hidden[:, 0, :]  # [CLS] representation, (B, H)


# ----------------------------------- main ------------------------------------
if __name__ == "__main__":
    key = jax.random.PRNGKey(0)
    k_mention, k_candidate, k_ids = jax.random.split(key, 3)

    mention_params = init_bert_params(k_mention)
    candidate_params = init_bert_params(k_candidate)

    input_ids = jax.random.randint(k_ids, (B, S), 0, VOCAB, dtype=jnp.int32)
    attention_mask = jnp.ones((B, S), jnp.int32).at[1, 6:].set(0)  # pad tail of 2nd seq

    cls_rep = bert_biencoder_forward(mention_params, candidate_params,
                                     input_ids, attention_mask, is_mention=True)
    cls_rep = jax.block_until_ready(cls_rep)
    assert cls_rep.shape == (B, H) and cls_rep.dtype == jnp.float32
    assert bool(jnp.all(jnp.isfinite(cls_rep)))
    print("KERNEL_OK")
</pallas_src>

<mosaic_0001>
module attributes {stable_mosaic.version = 11 : i64} {
  func.func @bert_encoder_kernel(%arg0: memref<16x32xf32, #tpu.memory_space<vmem>>, %arg1: memref<16x16xf32, #tpu.memory_space<vmem>>, %arg2: memref<1x32xf32, #tpu.memory_space<vmem>>, %arg3: memref<1x32xf32, #tpu.memory_space<vmem>>, %arg4: memref<2x32x32xf32, #tpu.memory_space<vmem>>, %arg5: memref<2x1x32xf32, #tpu.memory_space<vmem>>, %arg6: memref<2x32x32xf32, #tpu.memory_space<vmem>>, %arg7: memref<2x1x32xf32, #tpu.memory_space<vmem>>, %arg8: memref<2x32x32xf32, #tpu.memory_space<vmem>>, %arg9: memref<2x1x32xf32, #tpu.memory_space<vmem>>, %arg10: memref<2x32x32xf32, #tpu.memory_space<vmem>>, %arg11: memref<2x1x32xf32, #tpu.memory_space<vmem>>, %arg12: memref<2x1x32xf32, #tpu.memory_space<vmem>>, %arg13: memref<2x1x32xf32, #tpu.memory_space<vmem>>, %arg14: memref<2x32x64xf32, #tpu.memory_space<vmem>>, %arg15: memref<2x1x64xf32, #tpu.memory_space<vmem>>, %arg16: memref<2x64x32xf32, #tpu.memory_space<vmem>>, %arg17: memref<2x1x32xf32, #tpu.memory_space<vmem>>, %arg18: memref<2x1x32xf32, #tpu.memory_space<vmem>>, %arg19: memref<2x1x32xf32, #tpu.memory_space<vmem>>, %arg20: memref<16x32xf32, #tpu.memory_space<vmem>>) attributes {dimension_semantics = [], scalar_prefetch = 0 : i64, scratch_operands = 0 : i64, tpu.core_type = #tpu.core_type<tc>} {
    %c0 = arith.constant 0 : index
    %c0_0 = arith.constant 0 : index
    %0 = vector.load %arg0[%c0, %c0_0] : memref<16x32xf32, #tpu.memory_space<vmem>>, vector<16x32xf32>
    %c0_1 = arith.constant 0 : index
    %c0_2 = arith.constant 0 : index
    %1 = vector.load %arg2[%c0_1, %c0_2] : memref<1x32xf32, #tpu.memory_space<vmem>>, vector<1x32xf32>
    %c0_3 = arith.constant 0 : index
    %c0_4 = arith.constant 0 : index
    %2 = vector.load %arg3[%c0_3, %c0_4] : memref<1x32xf32, #tpu.memory_space<vmem>>, vector<1x32xf32>
    %cst = arith.constant dense<0.000000e+00> : vector<16xf32>
    %3 = vector.multi_reduction <add>, %0, %cst [1] : vector<16x32xf32> to vector<16xf32>
    %4 = vector.shape_cast %3 : vector<16xf32> to vector<16x1xf32>
    %cst_5 = arith.constant 3.200000e+01 : f32
    %5 = vector.broadcast %cst_5 : f32 to vector<16x1xf32>
    %6 = arith.divf %4, %5 : vector<16x1xf32>
    %7 = vector.broadcast %6 : vector<16x1xf32> to vector<16x32xf32>
    %8 = arith.subf %0, %7 : vector<16x32xf32>
    %9 = arith.mulf %8, %8 : vector<16x32xf32>
    %cst_6 = arith.constant dense<0.000000e+00> : vector<16xf32>
    %10 = vector.multi_reduction <add>, %9, %cst_6 [1] : vector<16x32xf32> to vector<16xf32>
    %11 = vector.shape_cast %10 : vector<16xf32> to vector<16x1xf32>
    %cst_7 = arith.constant 3.200000e+01 : f32
    %12 = vector.broadcast %cst_7 : f32 to vector<16x1xf32>
    %13 = arith.divf %11, %12 : vector<16x1xf32>
    %14 = vector.broadcast %6 : vector<16x1xf32> to vector<16x32xf32>
    %15 = arith.subf %0, %14 : vector<16x32xf32>
    %cst_8 = arith.constant 9.99999996E-13 : f32
    %16 = vector.broadcast %cst_8 : f32 to vector<16x1xf32>
    %17 = arith.addf %13, %16 : vector<16x1xf32>
    %18 = math.rsqrt %17 : vector<16x1xf32>
    %19 = vector.broadcast %18 : vector<16x1xf32> to vector<16x32xf32>
    %20 = arith.mulf %15, %19 : vector<16x32xf32>
    %21 = vector.broadcast %1 : vector<1x32xf32> to vector<16x32xf32>
    %22 = arith.mulf %20, %21 : vector<16x32xf32>
    %23 = vector.broadcast %2 : vector<1x32xf32> to vector<16x32xf32>
    %24 = arith.addf %22, %23 : vector<16x32xf32>
    %c0_9 = arith.constant 0 : index
    %c0_10 = arith.constant 0 : index
    %25 = vector.load %arg1[%c0_9, %c0_10] : memref<16x16xf32, #tpu.memory_space<vmem>>, vector<16x16xf32>
    %c0_11 = arith.constant 0 : index
    %c0_12 = arith.constant 0 : index
    %c0_13 = arith.constant 0 : index
    %26 = vector.load %arg4[%c0_11, %c0_12, %c0_13] : memref<2x32x32xf32, #tpu.memory_space<vmem>>, vector<1x32x32xf32>
    %27 = vector.shape_cast %26 : vector<1x32x32xf32> to vector<32x32xf32>
    %cst_14 = arith.constant dense<0.000000e+00> : vector<16x32xf32>
    %28 = tpu.matmul %24, %27, %cst_14 {dimension_numbers = #tpu.dot_dimension_numbers<[1], [0], [0], [1], [0, 0, 1, 1], [], []>} : vector<16x32xf32>, vector<32x32xf32>, vector<16x32xf32> -> vector<16x32xf32>
    %c0_15 = arith.constant 0 : index
    %c0_16 = arith.constant 0 : index
    %c0_17 = arith.constant 0 : index
    %29 = vector.load %arg5[%c0_15, %c0_16, %c0_17] : memref<2x1x32xf32, #tpu.memory_space<vmem>>, vector<1x1x32xf32>
    %30 = vector.shape_cast %29 : vector<1x1x32xf32> to vector<1x32xf32>
    %31 = vector.broadcast %30 : vector<1x32xf32> to vector<16x32xf32>
    %32 = arith.addf %28, %31 : vector<16x32xf32>
    %c0_18 = arith.constant 0 : index
    %c0_19 = arith.constant 0 : index
    %c0_20 = arith.constant 0 : index
    %33 = vector.load %arg6[%c0_18, %c0_19, %c0_20] : memref<2x32x32xf32, #tpu.memory_space<vmem>>, vector<1x32x32xf32>
    %34 = vector.shape_cast %33 : vector<1x32x32xf32> to vector<32x32xf32>
    %cst_21 = arith.constant dense<0.000000e+00> : vector<16x32xf32>
    %35 = tpu.matmul %24, %34, %cst_21 {dimension_numbers = #tpu.dot_dimension_numbers<[1], [0], [0], [1], [0, 0, 1, 1], [], []>} : vector<16x32xf32>, vector<32x32xf32>, vector<16x32xf32> -> vector<16x32xf32>
    %c0_22 = arith.constant 0 : index
    %c0_23 = arith.constant 0 : index
    %c0_24 = arith.constant 0 : index
    %36 = vector.load %arg7[%c0_22, %c0_23, %c0_24] : memref<2x1x32xf32, #tpu.memory_space<vmem>>, vector<1x1x32xf32>
    %37 = vector.shape_cast %36 : vector<1x1x32xf32> to vector<1x32xf32>
    %38 = vector.broadcast %37 : vector<1x32xf32> to vector<16x32xf32>
    %39 = arith.addf %35, %38 : vector<16x32xf32>
    %c0_25 = arith.constant 0 : index
    %c0_26 = arith.constant 0 : index
    %c0_27 = arith.constant 0 : index
    %40 = vector.load %arg8[%c0_25, %c0_26, %c0_27] : memref<2x32x32xf32, #tpu.memory_space<vmem>>, vector<1x32x32xf32>
    %41 = vector.shape_cast %40 : vector<1x32x32xf32> to vector<32x32xf32>
    %cst_28 = arith.constant dense<0.000000e+00> : vector<16x32xf32>
    %42 = tpu.matmul %24, %41, %cst_28 {dimension_numbers = #tpu.dot_dimension_numbers<[1], [0], [0], [1], [0, 0, 1, 1], [], []>} : vector<16x32xf32>, vector<32x32xf32>, vector<16x32xf32> -> vector<16x32xf32>
    %c0_29 = arith.constant 0 : index
    %c0_30 = arith.constant 0 : index
    %c0_31 = arith.constant 0 : index
    %43 = vector.load %arg9[%c0_29, %c0_30, %c0_31] : memref<2x1x32xf32, #tpu.memory_space<vmem>>, vector<1x1x32xf32>
    %44 = vector.shape_cast %43 : vector<1x1x32xf32> to vector<1x32xf32>
    %45 = vector.broadcast %44 : vector<1x32xf32> to vector<16x32xf32>
    %46 = arith.addf %42, %45 : vector<16x32xf32>
    %c0_32 = arith.constant 0 : index
    %c0_33 = arith.constant 0 : index
    %c0_34 = arith.constant 0 : index
    %47 = vector.load %arg10[%c0_32, %c0_33, %c0_34] : memref<2x32x32xf32, #tpu.memory_space<vmem>>, vector<1x32x32xf32>
    %48 = vector.shape_cast %47 : vector<1x32x32xf32> to vector<32x32xf32>
    %cst_35 = arith.constant 0.000000e+00 : f32
    %49 = vector.broadcast %cst_35 : f32 to vector<16x32xf32>
    %50 = vector.extract_strided_slice %32 {offsets = [0, 0], sizes = [16, 8], strides = [1, 1]} : vector<16x32xf32> to vector<16x8xf32>
    %51 = vector.extract_strided_slice %39 {offsets = [0, 0], sizes = [16, 8], strides = [1, 1]} : vector<16x32xf32> to vector<16x8xf32>
    %52 = vector.extract_strided_slice %46 {offsets = [0, 0], sizes = [16, 8], strides = [1, 1]} : vector<16x32xf32> to vector<16x8xf32>
    %53 = tpu.transpose %51, [1, 0] : vector<16x8xf32> -> vector<8x16xf32>
    %cst_36 = arith.constant dense<0.000000e+00> : vector<16x16xf32>
    %54 = tpu.matmul %50, %53, %cst_36 {dimension_numbers = #tpu.dot_dimension_numbers<[1], [0], [0], [1], [0, 0, 1, 1], [], []>} : vector<16x8xf32>, vector<8x16xf32>, vector<16x16xf32> -> vector<16x16xf32>
    %cst_37 = arith.constant 0.353553385 : f32
    %55 = vector.broadcast %cst_37 : f32 to vector<16x16xf32>
    %56 = arith.mulf %54, %55 : vector<16x16xf32>
    %57 = arith.addf %56, %25 : vector<16x16xf32>
    %cst_38 = arith.constant dense<0xFF800000> : vector<16xf32>
    %58 = vector.multi_reduction <maximumf>, %57, %cst_38 [1] : vector<16x16xf32> to vector<16xf32>
    %59 = vector.shape_cast %58 : vector<16xf32> to vector<16x1xf32>
    %60 = vector.broadcast %59 : vector<16x1xf32> to vector<16x16xf32>
    %61 = arith.subf %57, %60 : vector<16x16xf32>
    %62 = math.exp %61 : vector<16x16xf32>
    %cst_39 = arith.constant dense<0.000000e+00> : vector<16xf32>
    %63 = vector.multi_reduction <add>, %62, %cst_39 [1] : vector<16x16xf32> to vector<16xf32>
    %64 = vector.shape_cast %63 : vector<16xf32> to vector<16x1xf32>
    %65 = tpu.reciprocal %64 {approx = true} : vector<16x1xf32> -> vector<16x1xf32>
    %66 = vector.broadcast %65 : vector<16x1xf32> to vector<16x16xf32>
    %67 = arith.mulf %62, %66 : vector<16x16xf32>
    %cst_40 = arith.constant dense<0.000000e+00> : vector<16x8xf32>
    %68 = tpu.matmul %67, %52, %cst_40 {dimension_numbers = #tpu.dot_dimension_numbers<[1], [0], [0], [1], [0, 0, 1, 1], [], []>} : vector<16x16xf32>, vector<16x8xf32>, vector<16x8xf32> -> vector<16x8xf32>
    %69 = vector.extract_strided_slice %48 {offsets = [0, 0], sizes = [8, 32], strides = [1, 1]} : vector<32x32xf32> to vector<8x32xf32>
    %cst_41 = arith.constant dense<0.000000e+00> : vector<16x32xf32>
    %70 = tpu.matmul %68, %69, %cst_41 {dimension_numbers = #tpu.dot_dimension_numbers<[1], [0], [0], [1], [0, 0, 1, 1], [], []>} : vector<16x8xf32>, vector<8x32xf32>, vector<16x32xf32> -> vector<16x32xf32>
    %71 = arith.addf %49, %70 : vector<16x32xf32>
    %72 = vector.extract_strided_slice %32 {offsets = [0, 8], sizes = [16, 8], strides = [1, 1]} : vector<16x32xf32> to vector<16x8xf32>
    %73 = vector.extract_strided_slice %39 {offsets = [0, 8], sizes = [16, 8], strides = [1, 1]} : vector<16x32xf32> to vector<16x8xf32>
    %74 = vector.extract_strided_slice %46 {offsets = [0, 8], sizes = [16, 8], strides = [1, 1]} : vector<16x32xf32> to vector<16x8xf32>
    %75 = tpu.transpose %73, [1, 0] : vector<16x8xf32> -> vector<8x16xf32>
    %cst_42 = arith.constant dense<0.000000e+00> : vector<16x16xf32>
    %76 = tpu.matmul %72, %75, %cst_42 {dimension_numbers = #tpu.dot_dimension_numbers<[1], [0], [0], [1], [0, 0, 1, 1], [], []>} : vector<16x8xf32>, vector<8x16xf32>, vector<16x16xf32> -> vector<16x16xf32>
    %cst_43 = arith.constant 0.353553385 : f32
    %77 = vector.broadcast %cst_43 : f32 to vector<16x16xf32>
    %78 = arith.mulf %76, %77 : vector<16x16xf32>
    %79 = arith.addf %78, %25 : vector<16x16xf32>
    %cst_44 = arith.constant dense<0xFF800000> : vector<16xf32>
    %80 = vector.multi_reduction <maximumf>, %79, %cst_44 [1] : vector<16x16xf32> to vector<16xf32>
    %81 = vector.shape_cast %80 : vector<16xf32> to vector<16x1xf32>
    %82 = vector.broadcast %81 : vector<16x1xf32> to vector<16x16xf32>
    %83 = arith.subf %79, %82 : vector<16x16xf32>
    %84 = math.exp %83 : vector<16x16xf32>
    %cst_45 = arith.constant dense<0.000000e+00> : vector<16xf32>
    %85 = vector.multi_reduction <add>, %84, %cst_45 [1] : vector<16x16xf32> to vector<16xf32>
    %86 = vector.shape_cast %85 : vector<16xf32> to vector<16x1xf32>
    %87 = tpu.reciprocal %86 {approx = true} : vector<16x1xf32> -> vector<16x1xf32>
    %88 = vector.broadcast %87 : vector<16x1xf32> to vector<16x16xf32>
    %89 = arith.mulf %84, %88 : vector<16x16xf32>
    %cst_46 = arith.constant dense<0.000000e+00> : vector<16x8xf32>
    %90 = tpu.matmul %89, %74, %cst_46 {dimension_numbers = #tpu.dot_dimension_numbers<[1], [0], [0], [1], [0, 0, 1, 1], [], []>} : vector<16x16xf32>, vector<16x8xf32>, vector<16x8xf32> -> vector<16x8xf32>
    %91 = vector.extract_strided_slice %48 {offsets = [8, 0], sizes = [8, 32], strides = [1, 1]} : vector<32x32xf32> to vector<8x32xf32>
    %cst_47 = arith.constant dense<0.000000e+00> : vector<16x32xf32>
    %92 = tpu.matmul %90, %91, %cst_47 {dimension_numbers = #tpu.dot_dimension_numbers<[1], [0], [0], [1], [0, 0, 1, 1], [], []>} : vector<16x8xf32>, vector<8x32xf32>, vector<16x32xf32> -> vector<16x32xf32>
    %93 = arith.addf %71, %92 : vector<16x32xf32>
    %94 = vector.extract_strided_slice %32 {offsets = [0, 16], sizes = [16, 8], strides = [1, 1]} : vector<16x32xf32> to vector<16x8xf32>
    %95 = vector.extract_strided_slice %39 {offsets = [0, 16], sizes = [16, 8], strides = [1, 1]} : vector<16x32xf32> to vector<16x8xf32>
    %96 = vector.extract_strided_slice %46 {offsets = [0, 16], sizes = [16, 8], strides = [1, 1]} : vector<16x32xf32> to vector<16x8xf32>
    %97 = tpu.transpose %95, [1, 0] : vector<16x8xf32> -> vector<8x16xf32>
    %cst_48 = arith.constant dense<0.000000e+00> : vector<16x16xf32>
    %98 = tpu.matmul %94, %97, %cst_48 {dimension_numbers = #tpu.dot_dimension_numbers<[1], [0], [0], [1], [0, 0, 1, 1], [], []>} : vector<16x8xf32>, vector<8x16xf32>, vector<16x16xf32> -> vector<16x16xf32>
    %cst_49 = arith.constant 0.353553385 : f32
    %99 = vector.broadcast %cst_49 : f32 to vector<16x16xf32>
    %100 = arith.mulf %98, %99 : vector<16x16xf32>
    %101 = arith.addf %100, %25 : vector<16x16xf32>
    %cst_50 = arith.constant dense<0xFF800000> : vector<16xf32>
    %102 = vector.multi_reduction <maximumf>, %101, %cst_50 [1] : vector<16x16xf32> to vector<16xf32>
    %103 = vector.shape_cast %102 : vector<16xf32> to vector<16x1xf32>
    %104 = vector.broadcast %103 : vector<16x1xf32> to vector<16x16xf32>
    %105 = arith.subf %101, %104 : vector<16x16xf32>
    %106 = math.exp %105 : vector<16x16xf32>
    %cst_51 = arith.constant dense<0.000000e+00> : vector<16xf32>
    %107 = vector.multi_reduction <add>, %106, %cst_51 [1] : vector<16x16xf32> to vector<16xf32>
    %108 = vector.shape_cast %107 : vector<16xf32> to vector<16x1xf32>
    %109 = tpu.reciprocal %108 {approx = true} : vector<16x1xf32> -> vector<16x1xf32>
    %110 = vector.broadcast %109 : vector<16x1xf32> to vector<16x16xf32>
    %111 = arith.mulf %106, %110 : vector<16x16xf32>
    %cst_52 = arith.constant dense<0.000000e+00> : vector<16x8xf32>
    %112 = tpu.matmul %111, %96, %cst_52 {dimension_numbers = #tpu.dot_dimension_numbers<[1], [0], [0], [1], [0, 0, 1, 1], [], []>} : vector<16x16xf32>, vector<16x8xf32>, vector<16x8xf32> -> vector<16x8xf32>
    %113 = vector.extract_strided_slice %48 {offsets = [16, 0], sizes = [8, 32], strides = [1, 1]} : vector<32x32xf32> to vector<8x32xf32>
    %cst_53 = arith.constant dense<0.000000e+00> : vector<16x32xf32>
    %114 = tpu.matmul %112, %113, %cst_53 {dimension_numbers = #tpu.dot_dimension_numbers<[1], [0], [0], [1], [0, 0, 1, 1], [], []>} : vector<16x8xf32>, vector<8x32xf32>, vector<16x32xf32> -> vector<16x32xf32>
    %115 = arith.addf %93, %114 : vector<16x32xf32>
    %116 = vector.extract_strided_slice %32 {offsets = [0, 24], sizes = [16, 8], strides = [1, 1]} : vector<16x32xf32> to vector<16x8xf32>
    %117 = vector.extract_strided_slice %39 {offsets = [0, 24], sizes = [16, 8], strides = [1, 1]} : vector<16x32xf32> to vector<16x8xf32>
    %118 = vector.extract_strided_slice %46 {offsets = [0, 24], sizes = [16, 8], strides = [1, 1]} : vector<16x32xf32> to vector<16x8xf32>
    %119 = tpu.transpose %117, [1, 0] : vector<16x8xf32> -> vector<8x16xf32>
    %cst_54 = arith.constant dense<0.000000e+00> : vector<16x16xf32>
    %120 = tpu.matmul %116, %119, %cst_54 {dimension_numbers = #tpu.dot_dimension_numbers<[1], [0], [0], [1], [0, 0, 1, 1], [], []>} : vector<16x8xf32>, vector<8x16xf32>, vector<16x16xf32> -> vector<16x16xf32>
    %cst_55 = arith.constant 0.353553385 : f32
    %121 = vector.broadcast %cst_55 : f32 to vector<16x16xf32>
    %122 = arith.mulf %120, %121 : vector<16x16xf32>
    %123 = arith.addf %122, %25 : vector<16x16xf32>
    %cst_56 = arith.constant dense<0xFF800000> : vector<16xf32>
    %124 = vector.multi_reduction <maximumf>, %123, %cst_56 [1] : vector<16x16xf32> to vector<16xf32>
    %125 = vector.shape_cast %124 : vector<16xf32> to vector<16x1xf32>
    %126 = vector.broadcast %125 : vector<16x1xf32> to vector<16x16xf32>
    %127 = arith.subf %123, %126 : vector<16x16xf32>
    %128 = math.exp %127 : vector<16x16xf32>
    %cst_57 = arith.constant dense<0.000000e+00> : vector<16xf32>
    %129 = vector.multi_reduction <add>, %128, %cst_57 [1] : vector<16x16xf32> to vector<16xf32>
    %130 = vector.shape_cast %129 : vector<16xf32> to vector<16x1xf32>
    %131 = tpu.reciprocal %130 {approx = true} : vector<16x1xf32> -> vector<16x1xf32>
    %132 = vector.broadcast %131 : vector<16x1xf32> to vector<16x16xf32>
    %133 = arith.mulf %128, %132 : vector<16x16xf32>
    %cst_58 = arith.constant dense<0.000000e+00> : vector<16x8xf32>
    %134 = tpu.matmul %133, %118, %cst_58 {dimension_numbers = #tpu.dot_dimension_numbers<[1], [0], [0], [1], [0, 0, 1, 1], [], []>} : vector<16x16xf32>, vector<16x8xf32>, vector<16x8xf32> -> vector<16x8xf32>
    %135 = vector.extract_strided_slice %48 {offsets = [24, 0], sizes = [8, 32], strides = [1, 1]} : vector<32x32xf32> to vector<8x32xf32>
    %cst_59 = arith.constant dense<0.000000e+00> : vector<16x32xf32>
    %136 = tpu.matmul %134, %135, %cst_59 {dimension_numbers = #tpu.dot_dimension_numbers<[1], [0], [0], [1], [0, 0, 1, 1], [], []>} : vector<16x8xf32>, vector<8x32xf32>, vector<16x32xf32> -> vector<16x32xf32>
    %137 = arith.addf %115, %136 : vector<16x32xf32>
    %c0_60 = arith.constant 0 : index
    %c0_61 = arith.constant 0 : index
    %c0_62 = arith.constant 0 : index
    %138 = vector.load %arg11[%c0_60, %c0_61, %c0_62] : memref<2x1x32xf32, #tpu.memory_space<vmem>>, vector<1x1x32xf32>
    %139 = vector.shape_cast %138 : vector<1x1x32xf32> to vector<1x32xf32>
    %140 = vector.broadcast %139 : vector<1x32xf32> to vector<16x32xf32>
    %141 = arith.addf %137, %140 : vector<16x32xf32>
    %142 = arith.addf %24, %141 : vector<16x32xf32>
    %c0_63 = arith.constant 0 : index
    %c0_64 = arith.constant 0 : index
    %c0_65 = arith.constant 0 : index
    %143 = vector.load %arg12[%c0_63, %c0_64, %c0_65] : memref<2x1x32xf32, #tpu.memory_space<vmem>>, vector<1x1x32xf32>
    %144 = vector.shape_cast %143 : vector<1x1x32xf32> to vector<1x32xf32>
    %c0_66 = arith.constant 0 : index
    %c0_67 = arith.constant 0 : index
    %c0_68 = arith.constant 0 : index
    %145 = vector.load %arg13[%c0_66, %c0_67, %c0_68] : memref<2x1x32xf32, #tpu.memory_space<vmem>>, vector<1x1x32xf32>
    %146 = vector.shape_cast %145 : vector<1x1x32xf32> to vector<1x32xf32>
    %cst_69 = arith.constant dense<0.000000e+00> : vector<16xf32>
    %147 = vector.multi_reduction <add>, %142, %cst_69 [1] : vector<16x32xf32> to vector<16xf32>
    %148 = vector.shape_cast %147 : vector<16xf32> to vector<16x1xf32>
    %cst_70 = arith.constant 3.200000e+01 : f32
    %149 = vector.broadcast %cst_70 : f32 to vector<16x1xf32>
    %150 = arith.divf %148, %149 : vector<16x1xf32>
    %151 = vector.broadcast %150 : vector<16x1xf32> to vector<16x32xf32>
    %152 = arith.subf %142, %151 : vector<16x32xf32>
    %153 = arith.mulf %152, %152 : vector<16x32xf32>
    %cst_71 = arith.constant dense<0.000000e+00> : vector<16xf32>
    %154 = vector.multi_reduction <add>, %153, %cst_71 [1] : vector<16x32xf32> to vector<16xf32>
    %155 = vector.shape_cast %154 : vector<16xf32> to vector<16x1xf32>
    %cst_72 = arith.constant 3.200000e+01 : f32
    %156 = vector.broadcast %cst_72 : f32 to vector<16x1xf32>
    %157 = arith.divf %155, %156 : vector<16x1xf32>
    %158 = vector.broadcast %150 : vector<16x1xf32> to vector<16x32xf32>
    %159 = arith.subf %142, %158 : vector<16x32xf32>
    %cst_73 = arith.constant 9.99999996E-13 : f32
    %160 = vector.broadcast %cst_73 : f32 to vector<16x1xf32>
    %161 = arith.addf %157, %160 : vector<16x1xf32>
    %162 = math.rsqrt %161 : vector<16x1xf32>
    %163 = vector.broadcast %162 : vector<16x1xf32> to vector<16x32xf32>
    %164 = arith.mulf %159, %163 : vector<16x32xf32>
    %165 = vector.broadcast %144 : vector<1x32xf32> to vector<16x32xf32>
    %166 = arith.mulf %164, %165 : vector<16x32xf32>
    %167 = vector.broadcast %146 : vector<1x32xf32> to vector<16x32xf32>
    %168 = arith.addf %166, %167 : vector<16x32xf32>
    %c0_74 = arith.constant 0 : index
    %c0_75 = arith.constant 0 : index
    %c0_76 = arith.constant 0 : index
    %169 = vector.load %arg14[%c0_74, %c0_75, %c0_76] : memref<2x32x64xf32, #tpu.memory_space<vmem>>, vector<1x32x64xf32>
    %170 = vector.shape_cast %169 : vector<1x32x64xf32> to vector<32x64xf32>
    %cst_77 = arith.constant dense<0.000000e+00> : vector<16x64xf32>
    %171 = tpu.matmul %168, %170, %cst_77 {dimension_numbers = #tpu.dot_dimension_numbers<[1], [0], [0], [1], [0, 0, 1, 1], [], []>} : vector<16x32xf32>, vector<32x64xf32>, vector<16x64xf32> -> vector<16x64xf32>
    %c0_78 = arith.constant 0 : index
    %c0_79 = arith.constant 0 : index
    %c0_80 = arith.constant 0 : index
    %172 = vector.load %arg15[%c0_78, %c0_79, %c0_80] : memref<2x1x64xf32, #tpu.memory_space<vmem>>, vector<1x1x64xf32>
    %173 = vector.shape_cast %172 : vector<1x1x64xf32> to vector<1x64xf32>
    %174 = vector.broadcast %173 : vector<1x64xf32> to vector<16x64xf32>
    %175 = arith.addf %171, %174 : vector<16x64xf32>
    %176 = arith.mulf %175, %175 : vector<16x64xf32>
    %177 = arith.mulf %175, %176 : vector<16x64xf32>
    %cst_81 = arith.constant 4.471500e-02 : f32
    %178 = vector.broadcast %cst_81 : f32 to vector<16x64xf32>
    %179 = arith.mulf %178, %177 : vector<16x64xf32>
    %180 = arith.addf %175, %179 : vector<16x64xf32>
    %cst_82 = arith.constant 0.797884583 : f32
    %181 = vector.broadcast %cst_82 : f32 to vector<16x64xf32>
    %182 = arith.mulf %181, %180 : vector<16x64xf32>
    %183 = math.tanh %182 : vector<16x64xf32>
    %cst_83 = arith.constant 1.000000e+00 : f32
    %184 = vector.broadcast %cst_83 : f32 to vector<16x64xf32>
    %185 = arith.addf %184, %183 : vector<16x64xf32>
    %cst_84 = arith.constant 5.000000e-01 : f32
    %186 = vector.broadcast %cst_84 : f32 to vector<16x64xf32>
    %187 = arith.mulf %186, %185 : vector<16x64xf32>
    %188 = arith.mulf %175, %187 : vector<16x64xf32>
    %c0_85 = arith.constant 0 : index
    %c0_86 = arith.constant 0 : index
    %c0_87 = arith.constant 0 : index
    %189 = vector.load %arg16[%c0_85, %c0_86, %c0_87] : memref<2x64x32xf32, #tpu.memory_space<vmem>>, vector<1x64x32xf32>
    %190 = vector.shape_cast %189 : vector<1x64x32xf32> to vector<64x32xf32>
    %cst_88 = arith.constant dense<0.000000e+00> : vector<16x32xf32>
    %191 = tpu.matmul %188, %190, %cst_88 {dimension_numbers = #tpu.dot_dimension_numbers<[1], [0], [0], [1], [0, 0, 1, 1], [], []>} : vector<16x64xf32>, vector<64x32xf32>, vector<16x32xf32> -> vector<16x32xf32>
    %c0_89 = arith.constant 0 : index
    %c0_90 = arith.constant 0 : index
    %c0_91 = arith.constant 0 : index
    %192 = vector.load %arg17[%c0_89, %c0_90, %c0_91] : memref<2x1x32xf32, #tpu.memory_space<vmem>>, vector<1x1x32xf32>
    %193 = vector.shape_cast %192 : vector<1x1x32xf32> to vector<1x32xf32>
    %194 = vector.broadcast %193 : vector<1x32xf32> to vector<16x32xf32>
    %195 = arith.addf %191, %194 : vector<16x32xf32>
    %196 = arith.addf %168, %195 : vector<16x32xf32>
    %c0_92 = arith.constant 0 : index
    %c0_93 = arith.constant 0 : index
    %c0_94 = arith.constant 0 : index
    %197 = vector.load %arg18[%c0_92, %c0_93, %c0_94] : memref<2x1x32xf32, #tpu.memory_space<vmem>>, vector<1x1x32xf32>
    %198 = vector.shape_cast %197 : vector<1x1x32xf32> to vector<1x32xf32>
    %c0_95 = arith.constant 0 : index
    %c0_96 = arith.constant 0 : index
    %c0_97 = arith.constant 0 : index
    %199 = vector.load %arg19[%c0_95, %c0_96, %c0_97] : memref<2x1x32xf32, #tpu.memory_space<vmem>>, vector<1x1x32xf32>
    %200 = vector.shape_cast %199 : vector<1x1x32xf32> to vector<1x32xf32>
    %cst_98 = arith.constant dense<0.000000e+00> : vector<16xf32>
    %201 = vector.multi_reduction <add>, %196, %cst_98 [1] : vector<16x32xf32> to vector<16xf32>
    %202 = vector.shape_cast %201 : vector<16xf32> to vector<16x1xf32>
    %cst_99 = arith.constant 3.200000e+01 : f32
    %203 = vector.broadcast %cst_99 : f32 to vector<16x1xf32>
    %204 = arith.divf %202, %203 : vector<16x1xf32>
    %205 = vector.broadcast %204 : vector<16x1xf32> to vector<16x32xf32>
    %206 = arith.subf %196, %205 : vector<16x32xf32>
    %207 = arith.mulf %206, %206 : vector<16x32xf32>
    %cst_100 = arith.constant dense<0.000000e+00> : vector<16xf32>
    %208 = vector.multi_reduction <add>, %207, %cst_100 [1] : vector<16x32xf32> to vector<16xf32>
    %209 = vector.shape_cast %208 : vector<16xf32> to vector<16x1xf32>
    %cst_101 = arith.constant 3.200000e+01 : f32
    %210 = vector.broadcast %cst_101 : f32 to vector<16x1xf32>
    %211 = arith.divf %209, %210 : vector<16x1xf32>
    %212 = vector.broadcast %204 : vector<16x1xf32> to vector<16x32xf32>
    %213 = arith.subf %196, %212 : vector<16x32xf32>
    %cst_102 = arith.constant 9.99999996E-13 : f32
    %214 = vector.broadcast %cst_102 : f32 to vector<16x1xf32>
    %215 = arith.addf %211, %214 : vector<16x1xf32>
    %216 = math.rsqrt %215 : vector<16x1xf32>
    %217 = vector.broadcast %216 : vector<16x1xf32> to vector<16x32xf32>
    %218 = arith.mulf %213, %217 : vector<16x32xf32>
    %219 = vector.broadcast %198 : vector<1x32xf32> to vector<16x32xf32>
    %220 = arith.mulf %218, %219 : vector<16x32xf32>
    %221 = vector.broadcast %200 : vector<1x32xf32> to vector<16x32xf32>
    %222 = arith.addf %220, %221 : vector<16x32xf32>
    %c1 = arith.constant 1 : index
    %c0_103 = arith.constant 0 : index
    %c0_104 = arith.constant 0 : index
    %223 = vector.load %arg4[%c1, %c0_103, %c0_104] : memref<2x32x32xf32, #tpu.memory_space<vmem>>, vector<1x32x32xf32>
    %224 = vector.shape_cast %223 : vector<1x32x32xf32> to vector<32x32xf32>
    %cst_105 = arith.constant dense<0.000000e+00> : vector<16x32xf32>
    %225 = tpu.matmul %222, %224, %cst_105 {dimension_numbers = #tpu.dot_dimension_numbers<[1], [0], [0], [1], [0, 0, 1, 1], [], []>} : vector<16x32xf32>, vector<32x32xf32>, vector<16x32xf32> -> vector<16x32xf32>
    %c1_106 = arith.constant 1 : index
    %c0_107 = arith.constant 0 : index
    %c0_108 = arith.constant 0 : index
    %226 = vector.load %arg5[%c1_106, %c0_107, %c0_108] : memref<2x1x32xf32, #tpu.memory_space<vmem>>, vector<1x1x32xf32>
    %227 = vector.shape_cast %226 : vector<1x1x32xf32> to vector<1x32xf32>
    %228 = vector.broadcast %227 : vector<1x32xf32> to vector<16x32xf32>
    %229 = arith.addf %225, %228 : vector<16x32xf32>
    %c1_109 = arith.constant 1 : index
    %c0_110 = arith.constant 0 : index
    %c0_111 = arith.constant 0 : index
    %230 = vector.load %arg6[%c1_109, %c0_110, %c0_111] : memref<2x32x32xf32, #tpu.memory_space<vmem>>, vector<1x32x32xf32>
    %231 = vector.shape_cast %230 : vector<1x32x32xf32> to vector<32x32xf32>
    %cst_112 = arith.constant dense<0.000000e+00> : vector<16x32xf32>
    %232 = tpu.matmul %222, %231, %cst_112 {dimension_numbers = #tpu.dot_dimension_numbers<[1], [0], [0], [1], [0, 0, 1, 1], [], []>} : vector<16x32xf32>, vector<32x32xf32>, vector<16x32xf32> -> vector<16x32xf32>
    %c1_113 = arith.constant 1 : index
    %c0_114 = arith.constant 0 : index
    %c0_115 = arith.constant 0 : index
    %233 = vector.load %arg7[%c1_113, %c0_114, %c0_115] : memref<2x1x32xf32, #tpu.memory_space<vmem>>, vector<1x1x32xf32>
    %234 = vector.shape_cast %233 : vector<1x1x32xf32> to vector<1x32xf32>
    %235 = vector.broadcast %234 : vector<1x32xf32> to vector<16x32xf32>
    %236 = arith.addf %232, %235 : vector<16x32xf32>
    %c1_116 = arith.constant 1 : index
    %c0_117 = arith.constant 0 : index
    %c0_118 = arith.constant 0 : index
    %237 = vector.load %arg8[%c1_116, %c0_117, %c0_118] : memref<2x32x32xf32, #tpu.memory_space<vmem>>, vector<1x32x32xf32>
    %238 = vector.shape_cast %237 : vector<1x32x32xf32> to vector<32x32xf32>
    %cst_119 = arith.constant dense<0.000000e+00> : vector<16x32xf32>
    %239 = tpu.matmul %222, %238, %cst_119 {dimension_numbers = #tpu.dot_dimension_numbers<[1], [0], [0], [1], [0, 0, 1, 1], [], []>} : vector<16x32xf32>, vector<32x32xf32>, vector<16x32xf32> -> vector<16x32xf32>
    %c1_120 = arith.constant 1 : index
    %c0_121 = arith.constant 0 : index
    %c0_122 = arith.constant 0 : index
    %240 = vector.load %arg9[%c1_120, %c0_121, %c0_122] : memref<2x1x32xf32, #tpu.memory_space<vmem>>, vector<1x1x32xf32>
    %241 = vector.shape_cast %240 : vector<1x1x32xf32> to vector<1x32xf32>
    %242 = vector.broadcast %241 : vector<1x32xf32> to vector<16x32xf32>
    %243 = arith.addf %239, %242 : vector<16x32xf32>
    %c1_123 = arith.constant 1 : index
    %c0_124 = arith.constant 0 : index
    %c0_125 = arith.constant 0 : index
    %244 = vector.load %arg10[%c1_123, %c0_124, %c0_125] : memref<2x32x32xf32, #tpu.memory_space<vmem>>, vector<1x32x32xf32>
    %245 = vector.shape_cast %244 : vector<1x32x32xf32> to vector<32x32xf32>
    %cst_126 = arith.constant 0.000000e+00 : f32
    %246 = vector.broadcast %cst_126 : f32 to vector<16x32xf32>
    %247 = vector.extract_strided_slice %229 {offsets = [0, 0], sizes = [16, 8], strides = [1, 1]} : vector<16x32xf32> to vector<16x8xf32>
    %248 = vector.extract_strided_slice %236 {offsets = [0, 0], sizes = [16, 8], strides = [1, 1]} : vector<16x32xf32> to vector<16x8xf32>
    %249 = vector.extract_strided_slice %243 {offsets = [0, 0], sizes = [16, 8], strides = [1, 1]} : vector<16x32xf32> to vector<16x8xf32>
    %250 = tpu.transpose %248, [1, 0] : vector<16x8xf32> -> vector<8x16xf32>
    %cst_127 = arith.constant dense<0.000000e+00> : vector<16x16xf32>
    %251 = tpu.matmul %247, %250, %cst_127 {dimension_numbers = #tpu.dot_dimension_numbers<[1], [0], [0], [1], [0, 0, 1, 1], [], []>} : vector<16x8xf32>, vector<8x16xf32>, vector<16x16xf32> -> vector<16x16xf32>
    %cst_128 = arith.constant 0.353553385 : f32
    %252 = vector.broadcast %cst_128 : f32 to vector<16x16xf32>
    %253 = arith.mulf %251, %252 : vector<16x16xf32>
    %254 = arith.addf %253, %25 : vector<16x16xf32>
    %cst_129 = arith.constant dense<0xFF800000> : vector<16xf32>
    %255 = vector.multi_reduction <maximumf>, %254, %cst_129 [1] : vector<16x16xf32> to vector<16xf32>
    %256 = vector.shape_cast %255 : vector<16xf32> to vector<16x1xf32>
    %257 = vector.broadcast %256 : vector<16x1xf32> to vector<16x16xf32>
    %258 = arith.subf %254, %257 : vector<16x16xf32>
    %259 = math.exp %258 : vector<16x16xf32>
    %cst_130 = arith.constant dense<0.000000e+00> : vector<16xf32>
    %260 = vector.multi_reduction <add>, %259, %cst_130 [1] : vector<16x16xf32> to vector<16xf32>
    %261 = vector.shape_cast %260 : vector<16xf32> to vector<16x1xf32>
    %262 = tpu.reciprocal %261 {approx = true} : vector<16x1xf32> -> vector<16x1xf32>
    %263 = vector.broadcast %262 : vector<16x1xf32> to vector<16x16xf32>
    %264 = arith.mulf %259, %263 : vector<16x16xf32>
    %cst_131 = arith.constant dense<0.000000e+00> : vector<16x8xf32>
    %265 = tpu.matmul %264, %249, %cst_131 {dimension_numbers = #tpu.dot_dimension_numbers<[1], [0], [0], [1], [0, 0, 1, 1], [], []>} : vector<16x16xf32>, vector<16x8xf32>, vector<16x8xf32> -> vector<16x8xf32>
    %266 = vector.extract_strided_slice %245 {offsets = [0, 0], sizes = [8, 32], strides = [1, 1]} : vector<32x32xf32> to vector<8x32xf32>
    %cst_132 = arith.constant dense<0.000000e+00> : vector<16x32xf32>
    %267 = tpu.matmul %265, %266, %cst_132 {dimension_numbers = #tpu.dot_dimension_numbers<[1], [0], [0], [1], [0, 0, 1, 1], [], []>} : vector<16x8xf32>, vector<8x32xf32>, vector<16x32xf32> -> vector<16x32xf32>
    %268 = arith.addf %246, %267 : vector<16x32xf32>
    %269 = vector.extract_strided_slice %229 {offsets = [0, 8], sizes = [16, 8], strides = [1, 1]} : vector<16x32xf32> to vector<16x8xf32>
    %270 = vector.extract_strided_slice %236 {offsets = [0, 8], sizes = [16, 8], strides = [1, 1]} : vector<16x32xf32> to vector<16x8xf32>
    %271 = vector.extract_strided_slice %243 {offsets = [0, 8], sizes = [16, 8], strides = [1, 1]} : vector<16x32xf32> to vector<16x8xf32>
    %272 = tpu.transpose %270, [1, 0] : vector<16x8xf32> -> vector<8x16xf32>
    %cst_133 = arith.constant dense<0.000000e+00> : vector<16x16xf32>
    %273 = tpu.matmul %269, %272, %cst_133 {dimension_numbers = #tpu.dot_dimension_numbers<[1], [0], [0], [1], [0, 0, 1, 1], [], []>} : vector<16x8xf32>, vector<8x16xf32>, vector<16x16xf32> -> vector<16x16xf32>
    %cst_134 = arith.constant 0.353553385 : f32
    %274 = vector.broadcast %cst_134 : f32 to vector<16x16xf32>
    %275 = arith.mulf %273, %274 : vector<16x16xf32>
    %276 = arith.addf %275, %25 : vector<16x16xf32>
    %cst_135 = arith.constant dense<0xFF800000> : vector<16xf32>
    %277 = vector.multi_reduction <maximumf>, %276, %cst_135 [1] : vector<16x16xf32> to vector<16xf32>
    %278 = vector.shape_cast %277 : vector<16xf32> to vector<16x1xf32>
    %279 = vector.broadcast %278 : vector<16x1xf32> to vector<16x16xf32>
    %280 = arith.subf %276, %279 : vector<16x16xf32>
    %281 = math.exp %280 : vector<16x16xf32>
    %cst_136 = arith.constant dense<0.000000e+00> : vector<16xf32>
    %282 = vector.multi_reduction <add>, %281, %cst_136 [1] : vector<16x16xf32> to vector<16xf32>
    %283 = vector.shape_cast %282 : vector<16xf32> to vector<16x1xf32>
    %284 = tpu.reciprocal %283 {approx = true} : vector<16x1xf32> -> vector<16x1xf32>
    %285 = vector.broadcast %284 : vector<16x1xf32> to vector<16x16xf32>
    %286 = arith.mulf %281, %285 : vector<16x16xf32>
    %cst_137 = arith.constant dense<0.000000e+00> : vector<16x8xf32>
    %287 = tpu.matmul %286, %271, %cst_137 {dimension_numbers = #tpu.dot_dimension_numbers<[1], [0], [0], [1], [0, 0, 1, 1], [], []>} : vector<16x16xf32>, vector<16x8xf32>, vector<16x8xf32> -> vector<16x8xf32>
    %288 = vector.extract_strided_slice %245 {offsets = [8, 0], sizes = [8, 32], strides = [1, 1]} : vector<32x32xf32> to vector<8x32xf32>
    %cst_138 = arith.constant dense<0.000000e+00> : vector<16x32xf32>
    %289 = tpu.matmul %287, %288, %cst_138 {dimension_numbers = #tpu.dot_dimension_numbers<[1], [0], [0], [1], [0, 0, 1, 1], [], []>} : vector<16x8xf32>, vector<8x32xf32>, vector<16x32xf32> -> vector<16x32xf32>
    %290 = arith.addf %268, %289 : vector<16x32xf32>
    %291 = vector.extract_strided_slice %229 {offsets = [0, 16], sizes = [16, 8], strides = [1, 1]} : vector<16x32xf32> to vector<16x8xf32>
    %292 = vector.extract_strided_slice %236 {offsets = [0, 16], sizes = [16, 8], strides = [1, 1]} : vector<16x32xf32> to vector<16x8xf32>
    %293 = vector.extract_strided_slice %243 {offsets = [0, 16], sizes = [16, 8], strides = [1, 1]} : vector<16x32xf32> to vector<16x8xf32>
    %294 = tpu.transpose %292, [1, 0] : vector<16x8xf32> -> vector<8x16xf32>
    %cst_139 = arith.constant dense<0.000000e+00> : vector<16x16xf32>
    %295 = tpu.matmul %291, %294, %cst_139 {dimension_numbers = #tpu.dot_dimension_numbers<[1], [0], [0], [1], [0, 0, 1, 1], [], []>} : vector<16x8xf32>, vector<8x16xf32>, vector<16x16xf32> -> vector<16x16xf32>
    %cst_140 = arith.constant 0.353553385 : f32
    %296 = vector.broadcast %cst_140 : f32 to vector<16x16xf32>
    %297 = arith.mulf %295, %296 : vector<16x16xf32>
    %298 = arith.addf %297, %25 : vector<16x16xf32>
    %cst_141 = arith.constant dense<0xFF800000> : vector<16xf32>
    %299 = vector.multi_reduction <maximumf>, %298, %cst_141 [1] : vector<16x16xf32> to vector<16xf32>
    %300 = vector.shape_cast %299 : vector<16xf32> to vector<16x1xf32>
    %301 = vector.broadcast %300 : vector<16x1xf32> to vector<16x16xf32>
    %302 = arith.subf %298, %301 : vector<16x16xf32>
    %303 = math.exp %302 : vector<16x16xf32>
    %cst_142 = arith.constant dense<0.000000e+00> : vector<16xf32>
    %304 = vector.multi_reduction <add>, %303, %cst_142 [1] : vector<16x16xf32> to vector<16xf32>
    %305 = vector.shape_cast %304 : vector<16xf32> to vector<16x1xf32>
    %306 = tpu.reciprocal %305 {approx = true} : vector<16x1xf32> -> vector<16x1xf32>
    %307 = vector.broadcast %306 : vector<16x1xf32> to vector<16x16xf32>
    %308 = arith.mulf %303, %307 : vector<16x16xf32>
    %cst_143 = arith.constant dense<0.000000e+00> : vector<16x8xf32>
    %309 = tpu.matmul %308, %293, %cst_143 {dimension_numbers = #tpu.dot_dimension_numbers<[1], [0], [0], [1], [0, 0, 1, 1], [], []>} : vector<16x16xf32>, vector<16x8xf32>, vector<16x8xf32> -> vector<16x8xf32>
    %310 = vector.extract_strided_slice %245 {offsets = [16, 0], sizes = [8, 32], strides = [1, 1]} : vector<32x32xf32> to vector<8x32xf32>
    %cst_144 = arith.constant dense<0.000000e+00> : vector<16x32xf32>
    %311 = tpu.matmul %309, %310, %cst_144 {dimension_numbers = #tpu.dot_dimension_numbers<[1], [0], [0], [1], [0, 0, 1, 1], [], []>} : vector<16x8xf32>, vector<8x32xf32>, vector<16x32xf32> -> vector<16x32xf32>
    %312 = arith.addf %290, %311 : vector<16x32xf32>
    %313 = vector.extract_strided_slice %229 {offsets = [0, 24], sizes = [16, 8], strides = [1, 1]} : vector<16x32xf32> to vector<16x8xf32>
    %314 = vector.extract_strided_slice %236 {offsets = [0, 24], sizes = [16, 8], strides = [1, 1]} : vector<16x32xf32> to vector<16x8xf32>
    %315 = vector.extract_strided_slice %243 {offsets = [0, 24], sizes = [16, 8], strides = [1, 1]} : vector<16x32xf32> to vector<16x8xf32>
    %316 = tpu.transpose %314, [1, 0] : vector<16x8xf32> -> vector<8x16xf32>
    %cst_145 = arith.constant dense<0.000000e+00> : vector<16x16xf32>
    %317 = tpu.matmul %313, %316, %cst_145 {dimension_numbers = #tpu.dot_dimension_numbers<[1], [0], [0], [1], [0, 0, 1, 1], [], []>} : vector<16x8xf32>, vector<8x16xf32>, vector<16x16xf32> -> vector<16x16xf32>
    %cst_146 = arith.constant 0.353553385 : f32
    %318 = vector.broadcast %cst_146 : f32 to vector<16x16xf32>
    %319 = arith.mulf %317, %318 : vector<16x16xf32>
    %320 = arith.addf %319, %25 : vector<16x16xf32>
    %cst_147 = arith.constant dense<0xFF800000> : vector<16xf32>
    %321 = vector.multi_reduction <maximumf>, %320, %cst_147 [1] : vector<16x16xf32> to vector<16xf32>
    %322 = vector.shape_cast %321 : vector<16xf32> to vector<16x1xf32>
    %323 = vector.broadcast %322 : vector<16x1xf32> to vector<16x16xf32>
    %324 = arith.subf %320, %323 : vector<16x16xf32>
    %325 = math.exp %324 : vector<16x16xf32>
    %cst_148 = arith.constant dense<0.000000e+00> : vector<16xf32>
    %326 = vector.multi_reduction <add>, %325, %cst_148 [1] : vector<16x16xf32> to vector<16xf32>
    %327 = vector.shape_cast %326 : vector<16xf32> to vector<16x1xf32>
    %328 = tpu.reciprocal %327 {approx = true} : vector<16x1xf32> -> vector<16x1xf32>
    %329 = vector.broadcast %328 : vector<16x1xf32> to vector<16x16xf32>
    %330 = arith.mulf %325, %329 : vector<16x16xf32>
    %cst_149 = arith.constant dense<0.000000e+00> : vector<16x8xf32>
    %331 = tpu.matmul %330, %315, %cst_149 {dimension_numbers = #tpu.dot_dimension_numbers<[1], [0], [0], [1], [0, 0, 1, 1], [], []>} : vector<16x16xf32>, vector<16x8xf32>, vector<16x8xf32> -> vector<16x8xf32>
    %332 = vector.extract_strided_slice %245 {offsets = [24, 0], sizes = [8, 32], strides = [1, 1]} : vector<32x32xf32> to vector<8x32xf32>
    %cst_150 = arith.constant dense<0.000000e+00> : vector<16x32xf32>
    %333 = tpu.matmul %331, %332, %cst_150 {dimension_numbers = #tpu.dot_dimension_numbers<[1], [0], [0], [1], [0, 0, 1, 1], [], []>} : vector<16x8xf32>, vector<8x32xf32>, vector<16x32xf32> -> vector<16x32xf32>
    %334 = arith.addf %312, %333 : vector<16x32xf32>
    %c1_151 = arith.constant 1 : index
    %c0_152 = arith.constant 0 : index
    %c0_153 = arith.constant 0 : index
    %335 = vector.load %arg11[%c1_151, %c0_152, %c0_153] : memref<2x1x32xf32, #tpu.memory_space<vmem>>, vector<1x1x32xf32>
    %336 = vector.shape_cast %335 : vector<1x1x32xf32> to vector<1x32xf32>
    %337 = vector.broadcast %336 : vector<1x32xf32> to vector<16x32xf32>
    %338 = arith.addf %334, %337 : vector<16x32xf32>
    %339 = arith.addf %222, %338 : vector<16x32xf32>
    %c1_154 = arith.constant 1 : index
    %c0_155 = arith.constant 0 : index
    %c0_156 = arith.constant 0 : index
    %340 = vector.load %arg12[%c1_154, %c0_155, %c0_156] : memref<2x1x32xf32, #tpu.memory_space<vmem>>, vector<1x1x32xf32>
    %341 = vector.shape_cast %340 : vector<1x1x32xf32> to vector<1x32xf32>
    %c1_157 = arith.constant 1 : index
    %c0_158 = arith.constant 0 : index
    %c0_159 = arith.constant 0 : index
    %342 = vector.load %arg13[%c1_157, %c0_158, %c0_159] : memref<2x1x32xf32, #tpu.memory_space<vmem>>, vector<1x1x32xf32>
    %343 = vector.shape_cast %342 : vector<1x1x32xf32> to vector<1x32xf32>
    %cst_160 = arith.constant dense<0.000000e+00> : vector<16xf32>
    %344 = vector.multi_reduction <add>, %339, %cst_160 [1] : vector<16x32xf32> to vector<16xf32>
    %345 = vector.shape_cast %344 : vector<16xf32> to vector<16x1xf32>
    %cst_161 = arith.constant 3.200000e+01 : f32
    %346 = vector.broadcast %cst_161 : f32 to vector<16x1xf32>
    %347 = arith.divf %345, %346 : vector<16x1xf32>
    %348 = vector.broadcast %347 : vector<16x1xf32> to vector<16x32xf32>
    %349 = arith.subf %339, %348 : vector<16x32xf32>
    %350 = arith.mulf %349, %349 : vector<16x32xf32>
    %cst_162 = arith.constant dense<0.000000e+00> : vector<16xf32>
    %351 = vector.multi_reduction <add>, %350, %cst_162 [1] : vector<16x32xf32> to vector<16xf32>
    %352 = vector.shape_cast %351 : vector<16xf32> to vector<16x1xf32>
    %cst_163 = arith.constant 3.200000e+01 : f32
    %353 = vector.broadcast %cst_163 : f32 to vector<16x1xf32>
    %354 = arith.divf %352, %353 : vector<16x1xf32>
    %355 = vector.broadcast %347 : vector<16x1xf32> to vector<16x32xf32>
    %356 = arith.subf %339, %355 : vector<16x32xf32>
    %cst_164 = arith.constant 9.99999996E-13 : f32
    %357 = vector.broadcast %cst_164 : f32 to vector<16x1xf32>
    %358 = arith.addf %354, %357 : vector<16x1xf32>
    %359 = math.rsqrt %358 : vector<16x1xf32>
    %360 = vector.broadcast %359 : vector<16x1xf32> to vector<16x32xf32>
    %361 = arith.mulf %356, %360 : vector<16x32xf32>
    %362 = vector.broadcast %341 : vector<1x32xf32> to vector<16x32xf32>
    %363 = arith.mulf %361, %362 : vector<16x32xf32>
    %364 = vector.broadcast %343 : vector<1x32xf32> to vector<16x32xf32>
    %365 = arith.addf %363, %364 : vector<16x32xf32>
    %c1_165 = arith.constant 1 : index
    %c0_166 = arith.constant 0 : index
    %c0_167 = arith.constant 0 : index
    %366 = vector.load %arg14[%c1_165, %c0_166, %c0_167] : memref<2x32x64xf32, #tpu.memory_space<vmem>>, vector<1x32x64xf32>
    %367 = vector.shape_cast %366 : vector<1x32x64xf32> to vector<32x64xf32>
    %cst_168 = arith.constant dense<0.000000e+00> : vector<16x64xf32>
    %368 = tpu.matmul %365, %367, %cst_168 {dimension_numbers = #tpu.dot_dimension_numbers<[1], [0], [0], [1], [0, 0, 1, 1], [], []>} : vector<16x32xf32>, vector<32x64xf32>, vector<16x64xf32> -> vector<16x64xf32>
    %c1_169 = arith.constant 1 : index
    %c0_170 = arith.constant 0 : index
    %c0_171 = arith.constant 0 : index
    %369 = vector.load %arg15[%c1_169, %c0_170, %c0_171] : memref<2x1x64xf32, #tpu.memory_space<vmem>>, vector<1x1x64xf32>
    %370 = vector.shape_cast %369 : vector<1x1x64xf32> to vector<1x64xf32>
    %371 = vector.broadcast %370 : vector<1x64xf32> to vector<16x64xf32>
    %372 = arith.addf %368, %371 : vector<16x64xf32>
    %373 = arith.mulf %372, %372 : vector<16x64xf32>
    %374 = arith.mulf %372, %373 : vector<16x64xf32>
    %cst_172 = arith.constant 4.471500e-02 : f32
    %375 = vector.broadcast %cst_172 : f32 to vector<16x64xf32>
    %376 = arith.mulf %375, %374 : vector<16x64xf32>
    %377 = arith.addf %372, %376 : vector<16x64xf32>
    %cst_173 = arith.constant 0.797884583 : f32
    %378 = vector.broadcast %cst_173 : f32 to vector<16x64xf32>
    %379 = arith.mulf %378, %377 : vector<16x64xf32>
    %380 = math.tanh %379 : vector<16x64xf32>
    %cst_174 = arith.constant 1.000000e+00 : f32
    %381 = vector.broadcast %cst_174 : f32 to vector<16x64xf32>
    %382 = arith.addf %381, %380 : vector<16x64xf32>
    %cst_175 = arith.constant 5.000000e-01 : f32
    %383 = vector.broadcast %cst_175 : f32 to vector<16x64xf32>
    %384 = arith.mulf %383, %382 : vector<16x64xf32>
    %385 = arith.mulf %372, %384 : vector<16x64xf32>
    %c1_176 = arith.constant 1 : index
    %c0_177 = arith.constant 0 : index
    %c0_178 = arith.constant 0 : index
    %386 = vector.load %arg16[%c1_176, %c0_177, %c0_178] : memref<2x64x32xf32, #tpu.memory_space<vmem>>, vector<1x64x32xf32>
    %387 = vector.shape_cast %386 : vector<1x64x32xf32> to vector<64x32xf32>
    %cst_179 = arith.constant dense<0.000000e+00> : vector<16x32xf32>
    %388 = tpu.matmul %385, %387, %cst_179 {dimension_numbers = #tpu.dot_dimension_numbers<[1], [0], [0], [1], [0, 0, 1, 1], [], []>} : vector<16x64xf32>, vector<64x32xf32>, vector<16x32xf32> -> vector<16x32xf32>
    %c1_180 = arith.constant 1 : index
    %c0_181 = arith.constant 0 : index
    %c0_182 = arith.constant 0 : index
    %389 = vector.load %arg17[%c1_180, %c0_181, %c0_182] : memref<2x1x32xf32, #tpu.memory_space<vmem>>, vector<1x1x32xf32>
    %390 = vector.shape_cast %389 : vector<1x1x32xf32> to vector<1x32xf32>
    %391 = vector.broadcast %390 : vector<1x32xf32> to vector<16x32xf32>
    %392 = arith.addf %388, %391 : vector<16x32xf32>
    %393 = arith.addf %365, %392 : vector<16x32xf32>
    %c1_183 = arith.constant 1 : index
    %c0_184 = arith.constant 0 : index
    %c0_185 = arith.constant 0 : index
    %394 = vector.load %arg18[%c1_183, %c0_184, %c0_185] : memref<2x1x32xf32, #tpu.memory_space<vmem>>, vector<1x1x32xf32>
    %395 = vector.shape_cast %394 : vector<1x1x32xf32> to vector<1x32xf32>
    %c1_186 = arith.constant 1 : index
    %c0_187 = arith.constant 0 : index
    %c0_188 = arith.constant 0 : index
    %396 = vector.load %arg19[%c1_186, %c0_187, %c0_188] : memref<2x1x32xf32, #tpu.memory_space<vmem>>, vector<1x1x32xf32>
    %397 = vector.shape_cast %396 : vector<1x1x32xf32> to vector<1x32xf32>
    %cst_189 = arith.constant dense<0.000000e+00> : vector<16xf32>
    %398 = vector.multi_reduction <add>, %393, %cst_189 [1] : vector<16x32xf32> to vector<16xf32>
    %399 = vector.shape_cast %398 : vector<16xf32> to vector<16x1xf32>
    %cst_190 = arith.constant 3.200000e+01 : f32
    %400 = vector.broadcast %cst_190 : f32 to vector<16x1xf32>
    %401 = arith.divf %399, %400 : vector<16x1xf32>
    %402 = vector.broadcast %401 : vector<16x1xf32> to vector<16x32xf32>
    %403 = arith.subf %393, %402 : vector<16x32xf32>
    %404 = arith.mulf %403, %403 : vector<16x32xf32>
    %cst_191 = arith.constant dense<0.000000e+00> : vector<16xf32>
    %405 = vector.multi_reduction <add>, %404, %cst_191 [1] : vector<16x32xf32> to vector<16xf32>
    %406 = vector.shape_cast %405 : vector<16xf32> to vector<16x1xf32>
    %cst_192 = arith.constant 3.200000e+01 : f32
    %407 = vector.broadcast %cst_192 : f32 to vector<16x1xf32>
    %408 = arith.divf %406, %407 : vector<16x1xf32>
    %409 = vector.broadcast %401 : vector<16x1xf32> to vector<16x32xf32>
    %410 = arith.subf %393, %409 : vector<16x32xf32>
    %cst_193 = arith.constant 9.99999996E-13 : f32
    %411 = vector.broadcast %cst_193 : f32 to vector<16x1xf32>
    %412 = arith.addf %408, %411 : vector<16x1xf32>
    %413 = math.rsqrt %412 : vector<16x1xf32>
    %414 = vector.broadcast %413 : vector<16x1xf32> to vector<16x32xf32>
    %415 = arith.mulf %410, %414 : vector<16x32xf32>
    %416 = vector.broadcast %395 : vector<1x32xf32> to vector<16x32xf32>
    %417 = arith.mulf %415, %416 : vector<16x32xf32>
    %418 = vector.broadcast %397 : vector<1x32xf32> to vector<16x32xf32>
    %419 = arith.addf %417, %418 : vector<16x32xf32>
    %c0_194 = arith.constant 0 : index
    %c0_195 = arith.constant 0 : index
    %420 = vector.load %arg20[%c0_194, %c0_195] : memref<16x32xf32, #tpu.memory_space<vmem>>, vector<16x32xf32>
    tpu.vector_store %arg20[%c0_194, %c0_195], %419 {strides = array<i32>} : memref<16x32xf32, #tpu.memory_space<vmem>>, vector<16x32xf32>,
    return
  }
}

</mosaic_0001>

<llo_original>
// kernel: tpu_custom_call.1
$region0: #{tpu_custom_call.1}
  #allocation0 [shape = 'u32[]', space=smem, size = 0x4, offset = 0x4, fixed_abs, tag = 'smem constant byte address 0x4 - core index']
  #allocation1 [shape = 'u32[144,128]{1,0:T(1,128)}', space=vmem, size = 0x12000, scoped, tag = 'internal scratch']
  %s0 = inlined_call_operand.hbm [shape: f32[16,32], index: 0, kind: input, shape index: {}]
  %s1 = inlined_call_operand.hbm [shape: f32[16,16], index: 1, kind: input, shape index: {}]
  %s2 = inlined_call_operand.hbm [shape: f32[1,32], index: 2, kind: input, shape index: {}]
  %s3 = inlined_call_operand.hbm [shape: f32[1,32], index: 3, kind: input, shape index: {}]
  %s4 = inlined_call_operand.vmem [shape: f32[2,32,32], index: 4, kind: input, shape index: {}]
  %s5 = inlined_call_operand.vmem [shape: f32[2,1,32], index: 5, kind: input, shape index: {}]
  %s6 = inlined_call_operand.vmem [shape: f32[2,32,32], index: 6, kind: input, shape index: {}]
  %s7 = inlined_call_operand.vmem [shape: f32[2,1,32], index: 7, kind: input, shape index: {}]
  %s8 = inlined_call_operand.vmem [shape: f32[2,32,32], index: 8, kind: input, shape index: {}]
  %s9 = inlined_call_operand.vmem [shape: f32[2,1,32], index: 9, kind: input, shape index: {}]
  %s10 = inlined_call_operand.hbm [shape: f32[2,32,32], index: 10, kind: input, shape index: {}]
  %s11 = inlined_call_operand.vmem [shape: f32[2,1,32], index: 11, kind: input, shape index: {}]
  %s12 = inlined_call_operand.vmem [shape: f32[2,1,32], index: 12, kind: input, shape index: {}]
  %s13 = inlined_call_operand.vmem [shape: f32[2,1,32], index: 13, kind: input, shape index: {}]
  %s14 = inlined_call_operand.hbm [shape: f32[2,32,64], index: 14, kind: input, shape index: {}]
  %s15 = inlined_call_operand.vmem [shape: f32[2,1,64], index: 15, kind: input, shape index: {}]
  %s16 = inlined_call_operand.vmem [shape: f32[2,64,32], index: 16, kind: input, shape index: {}]
  %s17 = inlined_call_operand.vmem [shape: f32[2,1,32], index: 17, kind: input, shape index: {}]
  %s18 = inlined_call_operand.vmem [shape: f32[2,1,32], index: 18, kind: input, shape index: {}]
  %s19 = inlined_call_operand.vmem [shape: f32[2,1,32], index: 19, kind: input, shape index: {}]
  %s20 = inlined_call_operand.hbm [shape: f32[16,32], index: 20, kind: output, shape index: {}]
  %s21 = sld [smem:[#allocation0]]
  $region114: #{tpu_custom_call.1} parent=0
    _
  %s23 = ssub.s32 1, %s21
  %s24 = scalar_select 0, %s23, %s21
  $region1: #{tpu_custom_call.1} parent=0
    #allocation2 [shape = 'u8[8192]{0}', space=vmem, size = 0x2000, scoped, tag = 'input window, operand 0, single buffered']
    #allocation3 [shape = 's32[1]{0}', space=sflag, size = 0x4, scoped, tag = 'scoped memory for tpu_custom_call.1']
    #allocation4 [shape = 's32[1]{0}', space=sflag, size = 0x4, scoped, tag = 'scoped memory for tpu_custom_call.1']
    #allocation5 [shape = 'u8[8192]{0}', space=vmem, size = 0x2000, scoped, tag = 'input window, operand 1, single buffered']
    #allocation6 [shape = 's32[1]{0}', space=sflag, size = 0x4, scoped, tag = 'scoped memory for tpu_custom_call.1']
    #allocation7 [shape = 'u8[512]{0}', space=vmem, size = 0x400, scoped, tag = 'input window, operand 2, single buffered']
    #allocation8 [shape = 'u8[512]{0}', space=vmem, size = 0x400, scoped, tag = 'input window, operand 3, single buffered']
    #allocation9 [shape = 's32[1]{0}', space=sflag, size = 0x4, scoped, tag = 'scoped memory for tpu_custom_call.1']
    #allocation10 [shape = 'u8[32768]{0}', space=vmem, size = 0x8000, scoped, tag = 'input window, operand 10, single buffered']
    #allocation11 [shape = 'u8[32768]{0}', space=vmem, size = 0x8000, scoped, tag = 'input window, operand 14, single buffered']
    #allocation12 [shape = 's32[1]{0}', space=sflag, size = 0x4, scoped, tag = 'scoped memory for tpu_custom_call.1']
    #allocation13 [shape = 'u8[8192]{0}', space=vmem, size = 0x2000, scoped, tag = 'output window, operand 0, single buffered']
    %25 = vsyncpa [#allocation3], 0
    %26 = vsyncpa [#allocation6], 0
    %27 = vsyncpa [#allocation9], 0
    %28 = vsyncpa [#allocation12], 0
    %29 = vsyncpa [#allocation4], 0
    // Predicated region
    $region2: #{tpu_custom_call.1} parent=1 // pred_check
      _
    $region3: #{tpu_custom_call.1} parent=1 // pred_check_branch
      %31 = sbr.rel (0) target = $region5
    $region4: #{tpu_custom_call.1} parent=1 // pred_region
      %s33 = ssub.s32 256, 256
      %34 = vsyncadd [#allocation3], %s33
      %s35 = sshll.u32 [#allocation2], 4
      %s36 = int_to_ptr.vmem [resolvable:$true] %s35
      %41 = dma.hbm_to_vmem [thread:$0]  %s0, 256, %s36, [#allocation3], 128, 128, 8
    $region5: #{tpu_custom_call.1} parent=1 // pred_fallthru
      _
    // Predicated region
    $region6: #{tpu_custom_call.1} parent=1 // pred_check
      _
    $region7: #{tpu_custom_call.1} parent=1 // pred_check_branch
      %43 = sbr.rel (0) target = $region9
    $region8: #{tpu_custom_call.1} parent=1 // pred_region
      %s45 = ssub.s32 256, 256
      %46 = vsyncadd [#allocation6], %s45
      %s47 = sshll.u32 [#allocation5], 4
      %s48 = int_to_ptr.vmem [resolvable:$true] %s47
      %53 = dma.hbm_to_vmem [thread:$0]  %s1, 256, %s48, [#allocation6], 128, 128, 8
    $region9: #{tpu_custom_call.1} parent=1 // pred_fallthru
      _
    // Predicated region
    $region10: #{tpu_custom_call.1} parent=1 // pred_check
      _
    $region11: #{tpu_custom_call.1} parent=1 // pred_check_branch
      %55 = sbr.rel (0) target = $region13
    $region12: #{tpu_custom_call.1} parent=1 // pred_region
      %s57 = ssub.s32 16, 16
      %58 = vsyncadd [#allocation6], %s57
      %s60 = sshll.u32 [#allocation7], 4
      %s61 = int_to_ptr.vmem [resolvable:$true] %s60
      %63 = dma.hbm_to_vmem [thread:$0]  %s2, 16, %s61, [#allocation6]
    $region13: #{tpu_custom_call.1} parent=1 // pred_fallthru
      _
    // Predicated region
    $region14: #{tpu_custom_call.1} parent=1 // pred_check
      _
    $region15: #{tpu_custom_call.1} parent=1 // pred_check_branch
      %65 = sbr.rel (0) target = $region17
    $region16: #{tpu_custom_call.1} parent=1 // pred_region
      %s67 = ssub.s32 16, 16
      %68 = vsyncadd [#allocation9], %s67
      %s70 = sshll.u32 [#allocation8], 4
      %s71 = int_to_ptr.vmem [resolvable:$true] %s70
      %73 = dma.hbm_to_vmem [thread:$0]  %s3, 16, %s71, [#allocation9]
    $region17: #{tpu_custom_call.1} parent=1 // pred_fallthru
      _
    // Predicated region
    $region18: #{tpu_custom_call.1} parent=1 // pred_check
      _
    $region19: #{tpu_custom_call.1} parent=1 // pred_check_branch
      %75 = sbr.rel (0) target = $region21
    $region20: #{tpu_custom_call.1} parent=1 // pred_region
      _
    $region21: #{tpu_custom_call.1} parent=1 // pred_fallthru
      _
    // Predicated region
    $region22: #{tpu_custom_call.1} parent=1 // pred_check
      _
    $region23: #{tpu_custom_call.1} parent=1 // pred_check_branch
      %77 = sbr.rel (0) target = $region25
    $region24: #{tpu_custom_call.1} parent=1 // pred_region
      _
    $region25: #{tpu_custom_call.1} parent=1 // pred_fallthru
      _
    // Predicated region
    $region26: #{tpu_custom_call.1} parent=1 // pred_check
      _
    $region27: #{tpu_custom_call.1} parent=1 // pred_check_branch
      %79 = sbr.rel (0) target = $region29
    $region28: #{tpu_custom_call.1} parent=1 // pred_region
      _
    $region29: #{tpu_custom_call.1} parent=1 // pred_fallthru
      _
    // Predicated region
    $region30: #{tpu_custom_call.1} parent=1 // pred_check
      _
    $region31: #{tpu_custom_call.1} parent=1 // pred_check_branch
      %81 = sbr.rel (0) target = $region33
    $region32: #{tpu_custom_call.1} parent=1 // pred_region
      _
    $region33: #{tpu_custom_call.1} parent=1 // pred_fallthru
      _
    // Predicated region
    $region34: #{tpu_custom_call.1} parent=1 // pred_check
      _
    $region35: #{tpu_custom_call.1} parent=1 // pred_check_branch
      %83 = sbr.rel (0) target = $region37
    $region36: #{tpu_custom_call.1} parent=1 // pred_region
      _
    $region37: #{tpu_custom_call.1} parent=1 // pred_fallthru
      _
    // Predicated region
    $region38: #{tpu_custom_call.1} parent=1 // pred_check
      _
    $region39: #{tpu_custom_call.1} parent=1 // pred_check_branch
      %85 = sbr.rel (0) target = $region41
    $region40: #{tpu_custom_call.1} parent=1 // pred_region
      _
    $region41: #{tpu_custom_call.1} parent=1 // pred_fallthru
      _
    // Predicated region
    $region42: #{tpu_custom_call.1} parent=1 // pred_check
      _
    $region43: #{tpu_custom_call.1} parent=1 // pred_check_branch
      %87 = sbr.rel (0) target = $region45
    $region44: #{tpu_custom_call.1} parent=1 // pred_region
      %s89 = ssub.s32 1024, 1024
      %90 = vsyncadd [#allocation9], %s89
      %s91 = sshll.u32 [#allocation10], 4
      %s92 = int_to_ptr.vmem [resolvable:$true] %s91
      %97 = dma.hbm_to_vmem [thread:$0]  %s10, 1024, %s92, [#allocation9], 128, 128, 8
    $region45: #{tpu_custom_call.1} parent=1 // pred_fallthru
      _
    // Predicated region
    $region46: #{tpu_custom_call.1} parent=1 // pred_check
      _
    $region47: #{tpu_custom_call.1} parent=1 // pred_check_branch
      %99 = sbr.rel (0) target = $region49
    $region48: #{tpu_custom_call.1} parent=1 // pred_region
      _
    $region49: #{tpu_custom_call.1} parent=1 // pred_fallthru
      _
    // Predicated region
    $region50: #{tpu_custom_call.1} parent=1 // pred_check
      _
    $region51: #{tpu_custom_call.1} parent=1 // pred_check_branch
      %101 = sbr.rel (0) target = $region53
    $region52: #{tpu_custom_call.1} parent=1 // pred_region
      _
    $region53: #{tpu_custom_call.1} parent=1 // pred_fallthru
      _
    // Predicated region
    $region54: #{tpu_custom_call.1} parent=1 // pred_check
      _
    $region55: #{tpu_custom_call.1} parent=1 // pred_check_branch
      %103 = sbr.rel (0) target = $region57
    $region56: #{tpu_custom_call.1} parent=1 // pred_region
      _
    $region57: #{tpu_custom_call.1} parent=1 // pred_fallthru
      _
    // Predicated region
    $region58: #{tpu_custom_call.1} parent=1 // pred_check
      _
    $region59: #{tpu_custom_call.1} parent=1 // pred_check_branch
      %105 = sbr.rel (0) target = $region61
    $region60: #{tpu_custom_call.1} parent=1 // pred_region
      %s107 = ssub.s32 1024, 1024
      %108 = vsyncadd [#allocation12], %s107
      %s109 = sshll.u32 [#allocation11], 4
      %s110 = int_to_ptr.vmem [resolvable:$true] %s109
      %115 = dma.hbm_to_vmem [thread:$0]  %s14, 1024, %s110, [#allocation12], 128, 128, 8
    $region61: #{tpu_custom_call.1} parent=1 // pred_fallthru
      _
    // Predicated region
    $region62: #{tpu_custom_call.1} parent=1 // pred_check
      _
    $region63: #{tpu_custom_call.1} parent=1 // pred_check_branch
      %117 = sbr.rel (0) target = $region65
    $region64: #{tpu_custom_call.1} parent=1 // pred_region
      _
    $region65: #{tpu_custom_call.1} parent=1 // pred_fallthru
      _
    // Predicated region
    $region66: #{tpu_custom_call.1} parent=1 // pred_check
      _
    $region67: #{tpu_custom_call.1} parent=1 // pred_check_branch
      %119 = sbr.rel (0) target = $region69
    $region68: #{tpu_custom_call.1} parent=1 // pred_region
      _
    $region69: #{tpu_custom_call.1} parent=1 // pred_fallthru
      _
    // Predicated region
    $region70: #{tpu_custom_call.1} parent=1 // pred_check
      _
    $region71: #{tpu_custom_call.1} parent=1 // pred_check_branch
      %121 = sbr.rel (0) target = $region73
    $region72: #{tpu_custom_call.1} parent=1 // pred_region
      _
    $region73: #{tpu_custom_call.1} parent=1 // pred_fallthru
      _
    // Predicated region
    $region74: #{tpu_custom_call.1} parent=1 // pred_check
      _
    $region75: #{tpu_custom_call.1} parent=1 // pred_check_branch
      %123 = sbr.rel (0) target = $region77
    $region76: #{tpu_custom_call.1} parent=1 // pred_region
      _
    $region77: #{tpu_custom_call.1} parent=1 // pred_fallthru
      _
    // Predicated region
    $region78: #{tpu_custom_call.1} parent=1 // pred_check
      _
    $region79: #{tpu_custom_call.1} parent=1 // pred_check_branch
      %125 = sbr.rel (0) target = $region81
    $region80: #{tpu_custom_call.1} parent=1 // pred_region
      _
    $region81: #{tpu_custom_call.1} parent=1 // pred_fallthru
      _
    // Predicated region
    $region82: #{tpu_custom_call.1} parent=1 // pred_check
      _
    $region83: #{tpu_custom_call.1} parent=1 // pred_check_branch
      %127 = sbr.rel (0) target = $region85
    $region84: #{tpu_custom_call.1} parent=1 // pred_region
      %128 = dma.done [#allocation3], 256
    $region85: #{tpu_custom_call.1} parent=1 // pred_fallthru
      _
    // Predicated region
    $region86: #{tpu_custom_call.1} parent=1 // pred_check
      _
    $region87: #{tpu_custom_call.1} parent=1 // pred_check_branch
      %130 = sbr.rel (0) target = $region89
    $region88: #{tpu_custom_call.1} parent=1 // pred_region
      %131 = dma.done [#allocation6], 256
    $region89: #{tpu_custom_call.1} parent=1 // pred_fallthru
      _
    // Predicated region
    $region90: #{tpu_custom_call.1} parent=1 // pred_check
      _
    $region91: #{tpu_custom_call.1} parent=1 // pred_check_branch
      %133 = sbr.rel (0) target = $region93
    $region92: #{tpu_custom_call.1} parent=1 // pred_region
      %134 = dma.done [#allocation6], 16
    $region93: #{tpu_custom_call.1} parent=1 // pred_fallthru
      _
    // Predicated region
    $region94: #{tpu_custom_call.1} parent=1 // pred_check
      _
    $region95: #{tpu_custom_call.1} parent=1 // pred_check_branch
      %136 = sbr.rel (0) target = $region97
    $region96: #{tpu_custom_call.1} parent=1 // pred_region
      %137 = dma.done [#allocation9], 16
    $region97: #{tpu_custom_call.1} parent=1 // pred_fallthru
      _
    // Predicated region
    $region98: #{tpu_custom_call.1} parent=1 // pred_check
      _
    $region99: #{tpu_custom_call.1} parent=1 // pred_check_branch
      %139 = sbr.rel (0) target = $region101
    $region100: #{tpu_custom_call.1} parent=1 // pred_region
      %140 = dma.done [#allocation9], 1024
    $region101: #{tpu_custom_call.1} parent=1 // pred_fallthru
      _
    // Predicated region
    $region102: #{tpu_custom_call.1} parent=1 // pred_check
      _
    $region103: #{tpu_custom_call.1} parent=1 // pred_check_branch
      %142 = sbr.rel (0) target = $region105
    $region104: #{tpu_custom_call.1} parent=1 // pred_region
      %143 = dma.done [#allocation12], 1024
    $region105: #{tpu_custom_call.1} parent=1 // pred_fallthru
      _
    %v144 = vld [vmem:[#allocation2] sm:$0xff]
    %v145 = vld [vmem:[#allocation2 + $0x8] sm:$0xff]
    %v146 = vld [vmem:[#allocation7] sm:$0x1]
    %v147 = vld [vmem:[#allocation8] sm:$0x1]
    %vm148 = vcmask 261120
    %v149 = vsel %vm148, %v144, 0.0
    %150 = vadd.xlane.f32.xlu0 %v149
    %v151 = vpop.xlane.xlu0 %150
    %v152 = vsel %vm148, %v145, 0.0
    %153 = vadd.xlane.f32.xlu0 %v152
    %v154 = vpop.xlane.xlu0 %153
    %v155 = vrcp.pop 32.0
    %v156 = vmul.f32 %v151, %v155
    %v157 = vmul.f32 %v154, %v155
    %v158 = vsub.f32 %v144, %v156
    %v159 = vsub.f32 %v145, %v157
    %v160 = vmul.f32 %v158, %v158
    %v161 = vmul.f32 %v159, %v159
    %v162 = vsel %vm148, %v160, 0.0
    %163 = vadd.xlane.f32.xlu0 %v162
    %v164 = vpop.xlane.xlu0 %163
    %v165 = vsel %vm148, %v161, 0.0
    %166 = vadd.xlane.f32.xlu0 %v165
    %v167 = vpop.xlane.xlu0 %166
    %v168 = vmul.f32 %v164, %v155
    %v169 = vmul.f32 %v167, %v155
    %v170 = vadd.f32 %v168, 1e-12
    %v171 = vadd.f32 %v169, 1e-12
    %v172 = vrsqrt.pop %v170
    %v173 = vrsqrt.pop %v171
    %v174 = vmul.f32 %v158, %v172
    %v175 = vmul.f32 %v159, %v173
    %v177 = vlaneseq
    %v178 = vshrl.u32 %v177, 7
    %v179 = vsub.s32 0, %v178
    %v180 = vrot.slane %v146, %v179
    %v182 = vmul.f32 %v174, %v180
    %v183 = vmul.f32 %v175, %v180
    %v185 = vlaneseq
    %v186 = vshrl.u32 %v185, 7
    %v187 = vsub.s32 0, %v186
    %v188 = vrot.slane %v147, %v187
    %v190 = vadd.f32 %v182, %v188
    %v191 = vadd.f32 %v183, %v188
    %v192 = vld [vmem:[#allocation5] sm:$0xff]
    %v193 = vld [vmem:[#allocation5 + $0x8] sm:$0xff]
    %v194 = vld [vmem:[%s4] sm:$0xff]
    %v195 = vld [vmem:[%s4 + $0x8] sm:$0xff]
    %v196 = vld [vmem:[%s4 + $0x10] sm:$0xff]
    %v197 = vld [vmem:[%s4 + $0x18] sm:$0xff]
    %v198 = vld [vmem:[%s5] sm:$0x1]
    %v200 = vlaneseq
    %v201 = vshrl.u32 %v200, 7
    %v202 = vsub.s32 0, %v201
    %v203 = vrot.slane %v198, %v202
    %v206 = vsel %vm148, %v190, 0
    %v209 = vsel %vm148, %v191, 0
    %211 = vmatprep.subr.mxu0 0.0
    %212 = vmatpush1.msra.mxu0 0.0
    %213 = vmatprep.subr.mxu0 0.0
    %214 = vmatpush1.msra.mxu0 0.0
    %215 = vmatprep.subr.mxu0 0.0
    %216 = vmatpush1.msra.mxu0 0.0
    %217 = vmatprep.subr.mxu0 0.0
    %218 = vmatpush1.msra.mxu0 0.0
    %219 = vmatprep.subr.mxu0 0.0
    %220 = vmatpush1.msra.mxu0 0.0
    %221 = vmatprep.subr.mxu0 0.0
    %222 = vmatpush1.msra.mxu0 0.0
    %223 = vmatprep.subr.mxu0 0.0
    %224 = vmatpush1.msra.mxu0 0.0
    %225 = vmatprep.subr.mxu0 0.0
    %226 = vmatpush1.msra.mxu0 0.0
    %227 = vmatprep.subr.mxu0 0.0
    %228 = vmatpush1.msra.mxu0 0.0
    %229 = vmatprep.subr.mxu0 0.0
    %230 = vmatpush1.msra.mxu0 0.0
    %231 = vmatprep.subr.mxu0 0.0
    %232 = vmatpush1.msra.mxu0 0.0
    %233 = vmatprep.subr.mxu0 0.0
    %234 = vmatpush1.msra.mxu0 0.0
    %235 = vmatprep.subr.mxu0 0.0
    %236 = vmatpush1.msra.mxu0 %v197
    %237 = vmatprep.subr.mxu0 0.0
    %238 = vmatpush1.msra.mxu0 %v196
    %239 = vmatprep.subr.mxu0 0.0
    %240 = vmatpush1.msra.mxu0 %v195
    %241 = vmatprep.subr.mxu0 0.0
    %242 = vmatpush1.msra.mxu0 %v194
    %243 = vmatprep.subr.mxu0 0.0
    %244 = vmatpush2.msra.mxu0 0.0
    %245 = vmatprep.subr.mxu0 0.0
    %246 = vmatpush2.msra.mxu0 0.0
    %247 = vmatprep.subr.mxu0 0.0
    %248 = vmatpush2.msra.mxu0 0.0
    %249 = vmatprep.subr.mxu0 0.0
    %250 = vmatpush2.msra.mxu0 0.0
    %251 = vmatprep.subr.mxu0 0.0
    %252 = vmatpush2.msra.mxu0 0.0
    %253 = vmatprep.subr.mxu0 0.0
    %254 = vmatpush2.msra.mxu0 0.0
    %255 = vmatprep.subr.mxu0 0.0
    %256 = vmatpush2.msra.mxu0 0.0
    %257 = vmatprep.subr.mxu0 0.0
    %258 = vmatpush2.msra.mxu0 0.0
    %259 = vmatprep.subr.mxu0 0.0
    %260 = vmatpush2.msra.mxu0 0.0
    %261 = vmatprep.subr.mxu0 0.0
    %262 = vmatpush2.msra.mxu0 0.0
    %263 = vmatprep.subr.mxu0 0.0
    %264 = vmatpush2.msra.mxu0 0.0
    %265 = vmatprep.subr.mxu0 0.0
    %266 = vmatpush2.msra.mxu0 0.0
    %267 = vmatprep.subr.mxu0 0.0
    %268 = vmatpush2.msra.mxu0 0.0
    %269 = vmatprep.subr.mxu0 0.0
    %270 = vmatpush2.msra.mxu0 0.0
    %271 = vmatprep.subr.mxu0 0.0
    %272 = vmatpush2.msra.mxu0 0.0
    %273 = vmatprep.subr.mxu0 0.0
    %274 = vmatpush2.msra.mxu0 0.0
    %275 = vmatprep.mubr.f32.mxu0 0.0
    %276 = vmatmul.mubr.f32.gmra.mxu0 %v206
    %v277 = vpop.f32.mrf.mxu0
    %v278 = vadd.f32 %v203, %v277
    %v279 = vpop.f32.mrf.mxu0
    %280 = vmatprep.mubr.f32.mxu0 0.0
    %281 = vmatmul.mubr.f32.gmra.mxu0 %v209
    %v282 = vpop.f32.mrf.mxu0
    %v283 = vadd.f32 %v203, %v282
    %v284 = vpop.f32.mrf.mxu0
    %285 = vdwg.mxu0
    %v286 = vld [vmem:[%s6] sm:$0xff]
    %v287 = vld [vmem:[%s6 + $0x8] sm:$0xff]
    %v288 = vld [vmem:[%s6 + $0x10] sm:$0xff]
    %v289 = vld [vmem:[%s6 + $0x18] sm:$0xff]
    %v290 = vld [vmem:[%s7] sm:$0x1]
    %v292 = vlaneseq
    %v293 = vshrl.u32 %v292, 7
    %v294 = vsub.s32 0, %v293
    %v295 = vrot.slane %v290, %v294
    %297 = vmatprep.subr.mxu0 0.0
    %298 = vmatpush1.msra.mxu0 0.0
    %299 = vmatprep.subr.mxu0 0.0
    %300 = vmatpush1.msra.mxu0 0.0
    %301 = vmatprep.subr.mxu0 0.0
    %302 = vmatpush1.msra.mxu0 0.0
    %303 = vmatprep.subr.mxu0 0.0
    %304 = vmatpush1.msra.mxu0 0.0
    %305 = vmatprep.subr.mxu0 0.0
    %306 = vmatpush1.msra.mxu0 0.0
    %307 = vmatprep.subr.mxu0 0.0
    %308 = vmatpush1.msra.mxu0 0.0
    %309 = vmatprep.subr.mxu0 0.0
    %310 = vmatpush1.msra.mxu0 0.0
    %311 = vmatprep.subr.mxu0 0.0
    %312 = vmatpush1.msra.mxu0 0.0
    %313 = vmatprep.subr.mxu0 0.0
    %314 = vmatpush1.msra.mxu0 0.0
    %315 = vmatprep.subr.mxu0 0.0
    %316 = vmatpush1.msra.mxu0 0.0
    %317 = vmatprep.subr.mxu0 0.0
    %318 = vmatpush1.msra.mxu0 0.0
    %319 = vmatprep.subr.mxu0 0.0
    %320 = vmatpush1.msra.mxu0 0.0
    %321 = vmatprep.subr.mxu0 0.0
    %322 = vmatpush1.msra.mxu0 %v289
    %323 = vmatprep.subr.mxu0 0.0
    %324 = vmatpush1.msra.mxu0 %v288
    %325 = vmatprep.subr.mxu0 0.0
    %326 = vmatpush1.msra.mxu0 %v287
    %327 = vmatprep.subr.mxu0 0.0
    %328 = vmatpush1.msra.mxu0 %v286
    %329 = vmatprep.subr.mxu0 0.0
    %330 = vmatpush2.msra.mxu0 0.0
    %331 = vmatprep.subr.mxu0 0.0
    %332 = vmatpush2.msra.mxu0 0.0
    %333 = vmatprep.subr.mxu0 0.0
    %334 = vmatpush2.msra.mxu0 0.0
    %335 = vmatprep.subr.mxu0 0.0
    %336 = vmatpush2.msra.mxu0 0.0
    %337 = vmatprep.subr.mxu0 0.0
    %338 = vmatpush2.msra.mxu0 0.0
    %339 = vmatprep.subr.mxu0 0.0
    %340 = vmatpush2.msra.mxu0 0.0
    %341 = vmatprep.subr.mxu0 0.0
    %342 = vmatpush2.msra.mxu0 0.0
    %343 = vmatprep.subr.mxu0 0.0
    %344 = vmatpush2.msra.mxu0 0.0
    %345 = vmatprep.subr.mxu0 0.0
    %346 = vmatpush2.msra.mxu0 0.0
    %347 = vmatprep.subr.mxu0 0.0
    %348 = vmatpush2.msra.mxu0 0.0
    %349 = vmatprep.subr.mxu0 0.0
    %350 = vmatpush2.msra.mxu0 0.0
    %351 = vmatprep.subr.mxu0 0.0
    %352 = vmatpush2.msra.mxu0 0.0
    %353 = vmatprep.subr.mxu0 0.0
    %354 = vmatpush2.msra.mxu0 0.0
    %355 = vmatprep.subr.mxu0 0.0
    %356 = vmatpush2.msra.mxu0 0.0
    %357 = vmatprep.subr.mxu0 0.0
    %358 = vmatpush2.msra.mxu0 0.0
    %359 = vmatprep.subr.mxu0 0.0
    %360 = vmatpush2.msra.mxu0 0.0
    %361 = vmatprep.mubr.f32.mxu0 0.0
    %362 = vmatmul.mubr.f32.gmra.mxu0 %v206
    %v363 = vpop.f32.mrf.mxu0
    %v364 = vadd.f32 %v295, %v363
    %v365 = vpop.f32.mrf.mxu0
    %366 = vmatprep.mubr.f32.mxu0 0.0
    %367 = vmatmul.mubr.f32.gmra.mxu0 %v209
    %v368 = vpop.f32.mrf.mxu0
    %v369 = vadd.f32 %v295, %v368
    %v370 = vpop.f32.mrf.mxu0
    %371 = vdwg.mxu0
    %v372 = vld [vmem:[%s8] sm:$0xff]
    %v373 = vld [vmem:[%s8 + $0x8] sm:$0xff]
    %v374 = vld [vmem:[%s8 + $0x10] sm:$0xff]
    %v375 = vld [vmem:[%s8 + $0x18] sm:$0xff]
    %v376 = vld [vmem:[%s9] sm:$0x1]
    %v378 = vlaneseq
    %v379 = vshrl.u32 %v378, 7
    %v380 = vsub.s32 0, %v379
    %v381 = vrot.slane %v376, %v380
    %383 = vmatprep.subr.mxu0 0.0
    %384 = vmatpush1.msra.mxu0 0.0
    %385 = vmatprep.subr.mxu0 0.0
    %386 = vmatpush1.msra.mxu0 0.0
    %387 = vmatprep.subr.mxu0 0.0
    %388 = vmatpush1.msra.mxu0 0.0
    %389 = vmatprep.subr.mxu0 0.0
    %390 = vmatpush1.msra.mxu0 0.0
    %391 = vmatprep.subr.mxu0 0.0
    %392 = vmatpush1.msra.mxu0 0.0
    %393 = vmatprep.subr.mxu0 0.0
    %394 = vmatpush1.msra.mxu0 0.0
    %395 = vmatprep.subr.mxu0 0.0
    %396 = vmatpush1.msra.mxu0 0.0
    %397 = vmatprep.subr.mxu0 0.0
    %398 = vmatpush1.msra.mxu0 0.0
    %399 = vmatprep.subr.mxu0 0.0
    %400 = vmatpush1.msra.mxu0 0.0
    %401 = vmatprep.subr.mxu0 0.0
    %402 = vmatpush1.msra.mxu0 0.0
    %403 = vmatprep.subr.mxu0 0.0
    %404 = vmatpush1.msra.mxu0 0.0
    %405 = vmatprep.subr.mxu0 0.0
    %406 = vmatpush1.msra.mxu0 0.0
    %407 = vmatprep.subr.mxu0 0.0
    %408 = vmatpush1.msra.mxu0 %v375
    %409 = vmatprep.subr.mxu0 0.0
    %410 = vmatpush1.msra.mxu0 %v374
    %411 = vmatprep.subr.mxu0 0.0
    %412 = vmatpush1.msra.mxu0 %v373
    %413 = vmatprep.subr.mxu0 0.0
    %414 = vmatpush1.msra.mxu0 %v372
    %415 = vmatprep.subr.mxu0 0.0
    %416 = vmatpush2.msra.mxu0 0.0
    %417 = vmatprep.subr.mxu0 0.0
    %418 = vmatpush2.msra.mxu0 0.0
    %419 = vmatprep.subr.mxu0 0.0
    %420 = vmatpush2.msra.mxu0 0.0
    %421 = vmatprep.subr.mxu0 0.0
    %422 = vmatpush2.msra.mxu0 0.0
    %423 = vmatprep.subr.mxu0 0.0
    %424 = vmatpush2.msra.mxu0 0.0
    %425 = vmatprep.subr.mxu0 0.0
    %426 = vmatpush2.msra.mxu0 0.0
    %427 = vmatprep.subr.mxu0 0.0
    %428 = vmatpush2.msra.mxu0 0.0
    %429 = vmatprep.subr.mxu0 0.0
    %430 = vmatpush2.msra.mxu0 0.0
    %431 = vmatprep.subr.mxu0 0.0
    %432 = vmatpush2.msra.mxu0 0.0
    %433 = vmatprep.subr.mxu0 0.0
    %434 = vmatpush2.msra.mxu0 0.0
    %435 = vmatprep.subr.mxu0 0.0
    %436 = vmatpush2.msra.mxu0 0.0
    %437 = vmatprep.subr.mxu0 0.0
    %438 = vmatpush2.msra.mxu0 0.0
    %439 = vmatprep.subr.mxu0 0.0
    %440 = vmatpush2.msra.mxu0 0.0
    %441 = vmatprep.subr.mxu0 0.0
    %442 = vmatpush2.msra.mxu0 0.0
    %443 = vmatprep.subr.mxu0 0.0
    %444 = vmatpush2.msra.mxu0 0.0
    %445 = vmatprep.subr.mxu0 0.0
    %446 = vmatpush2.msra.mxu0 0.0
    %447 = vmatprep.mubr.f32.mxu0 0.0
    %448 = vmatmul.mubr.f32.gmra.mxu0 %v206
    %v449 = vpop.f32.mrf.mxu0
    %v450 = vadd.f32 %v381, %v449
    %v451 = vpop.f32.mrf.mxu0
    %452 = vmatprep.mubr.f32.mxu0 0.0
    %453 = vmatmul.mubr.f32.gmra.mxu0 %v209
    %v454 = vpop.f32.mrf.mxu0
    %v455 = vadd.f32 %v381, %v454
    %v456 = vpop.f32.mrf.mxu0
    %457 = vdwg.mxu0
    %v458 = vld [vmem:[#allocation10] sm:$0xff]
    %v459 = vld [vmem:[#allocation10 + $0x8] sm:$0xff]
    %v460 = vld [vmem:[#allocation10 + $0x10] sm:$0xff]
    %v461 = vld [vmem:[#allocation10 + $0x18] sm:$0xff]
    %vm462 = vcmask 64512
    %v464 = vsel %vm462, %v278, 0
    %v467 = vsel %vm462, %v283, 0
    %v470 = vsel %vm462, %v364, 0
    %v473 = vsel %vm462, %v369, 0
    %475 = vmatprep.subr.mxu0 0.0
    %476 = vmatpush1.xpose.msra.mxu0 0.0
    %477 = vmatprep.subr.mxu0 0.0
    %478 = vmatpush1.xpose.msra.mxu0 0.0
    %479 = vmatprep.subr.mxu0 0.0
    %480 = vmatpush1.xpose.msra.mxu0 0.0
    %481 = vmatprep.subr.mxu0 0.0
    %482 = vmatpush1.xpose.msra.mxu0 0.0
    %483 = vmatprep.subr.mxu0 0.0
    %484 = vmatpush1.xpose.msra.mxu0 0.0
    %485 = vmatprep.subr.mxu0 0.0
    %486 = vmatpush1.xpose.msra.mxu0 0.0
    %487 = vmatprep.subr.mxu0 0.0
    %488 = vmatpush1.xpose.msra.mxu0 0.0
    %489 = vmatprep.subr.mxu0 0.0
    %490 = vmatpush1.xpose.msra.mxu0 0.0
    %491 = vmatprep.subr.mxu0 0.0
    %492 = vmatpush1.xpose.msra.mxu0 0.0
    %493 = vmatprep.subr.mxu0 0.0
    %494 = vmatpush1.xpose.msra.mxu0 0.0
    %495 = vmatprep.subr.mxu0 0.0
    %496 = vmatpush1.xpose.msra.mxu0 0.0
    %497 = vmatprep.subr.mxu0 0.0
    %498 = vmatpush1.xpose.msra.mxu0 0.0
    %499 = vmatprep.subr.mxu0 0.0
    %500 = vmatpush1.xpose.msra.mxu0 0.0
    %501 = vmatprep.subr.mxu0 0.0
    %502 = vmatpush1.xpose.msra.mxu0 0.0
    %503 = vmatprep.subr.mxu0 0.0
    %504 = vmatpush1.xpose.msra.mxu0 %v473
    %505 = vmatprep.subr.mxu0 0.0
    %506 = vmatpush1.xpose.msra.mxu0 %v470
    %507 = vmatprep.subr.mxu0 0.0
    %508 = vmatpush2.xpose.msra.mxu0 0.0
    %509 = vmatprep.subr.mxu0 0.0
    %510 = vmatpush2.xpose.msra.mxu0 0.0
    %511 = vmatprep.subr.mxu0 0.0
    %512 = vmatpush2.xpose.msra.mxu0 0.0
    %513 = vmatprep.subr.mxu0 0.0
    %514 = vmatpush2.xpose.msra.mxu0 0.0
    %515 = vmatprep.subr.mxu0 0.0
    %516 = vmatpush2.xpose.msra.mxu0 0.0
    %517 = vmatprep.subr.mxu0 0.0
    %518 = vmatpush2.xpose.msra.mxu0 0.0
    %519 = vmatprep.subr.mxu0 0.0
    %520 = vmatpush2.xpose.msra.mxu0 0.0
    %521 = vmatprep.subr.mxu0 0.0
    %522 = vmatpush2.xpose.msra.mxu0 0.0
    %523 = vmatprep.subr.mxu0 0.0
    %524 = vmatpush2.xpose.msra.mxu0 0.0
    %525 = vmatprep.subr.mxu0 0.0
    %526 = vmatpush2.xpose.msra.mxu0 0.0
    %527 = vmatprep.subr.mxu0 0.0
    %528 = vmatpush2.xpose.msra.mxu0 0.0
    %529 = vmatprep.subr.mxu0 0.0
    %530 = vmatpush2.xpose.msra.mxu0 0.0
    %531 = vmatprep.subr.mxu0 0.0
    %532 = vmatpush2.xpose.msra.mxu0 0.0
    %533 = vmatprep.subr.mxu0 0.0
    %534 = vmatpush2.xpose.msra.mxu0 0.0
    %535 = vmatprep.subr.mxu0 0.0
    %536 = vmatpush2.xpose.msra.mxu0 0.0
    %537 = vmatprep.subr.mxu0 0.0
    %538 = vmatpush2.xpose.msra.mxu0 0.0
    %539 = vmatprep.mubr.f32.mxu0 0.0
    %540 = vmatmul.mubr.f32.gmra.mxu0 %v464
    %v541 = vpop.f32.mrf.mxu0
    %v542 = vadd.f32 0.0, %v541
    %v543 = vpop.f32.mrf.mxu0
    %544 = vmatprep.mubr.f32.mxu0 0.0
    %545 = vmatmul.mubr.f32.gmra.mxu0 %v467
    %v546 = vpop.f32.mrf.mxu0
    %v547 = vadd.f32 0.0, %v546
    %v548 = vpop.f32.mrf.mxu0
    %549 = vdwg.mxu0
    %v550 = vmul.f32 %v542, 0.35355338
    %v551 = vmul.f32 %v547, 0.35355338
    %v552 = vadd.f32 %v550, %v192
    %v553 = vadd.f32 %v551, %v193
    %vm554 = vcmask 130048
    %v555 = vsel %vm554, %v552, -inf
    %556 = vmax.xlane.f32.xlu0 %v555
    %v557 = vpop.xlane.xlu0 %556
    %v558 = vsel %vm554, %v553, -inf
    %559 = vmax.xlane.f32.xlu0 %v558
    %v560 = vpop.xlane.xlu0 %559
    %v561 = vsub.f32 %v552, %v557
    %v562 = vsub.f32 %v553, %v560
    %v563 = vmul.f32 %v561, 1.442695
    %v564 = vpow.pop %v563
    %v565 = vmul.f32 %v562, 1.442695
    %v566 = vpow.pop %v565
    %v567 = vsel %vm554, %v564, 0.0
    %568 = vadd.xlane.f32.xlu0 %v567
    %v569 = vpop.xlane.xlu0 %568
    %v570 = vsel %vm554, %v566, 0.0
    %571 = vadd.xlane.f32.xlu0 %v570
    %v572 = vpop.xlane.xlu0 %571
    %v573 = vrcp.pop %v569
    %v574 = vrcp.pop %v572
    %v575 = vmul.f32 %v564, %v573
    %v576 = vmul.f32 %v566, %v574
    %v578 = vsel %vm554, %v575, 0
    %v581 = vsel %vm554, %v576, 0
    %583 = vmatprep.subr.mxu0 0.0
    %584 = vmatpush1.msra.mxu0 0.0
    %585 = vmatprep.subr.mxu0 0.0
    %586 = vmatpush1.msra.mxu0 0.0
    %587 = vmatprep.subr.mxu0 0.0
    %588 = vmatpush1.msra.mxu0 0.0
    %589 = vmatprep.subr.mxu0 0.0
    %590 = vmatpush1.msra.mxu0 0.0
    %591 = vmatprep.subr.mxu0 0.0
    %592 = vmatpush1.msra.mxu0 0.0
    %593 = vmatprep.subr.mxu0 0.0
    %594 = vmatpush1.msra.mxu0 0.0
    %595 = vmatprep.subr.mxu0 0.0
    %596 = vmatpush1.msra.mxu0 0.0
    %597 = vmatprep.subr.mxu0 0.0
    %598 = vmatpush1.msra.mxu0 0.0
    %599 = vmatprep.subr.mxu0 0.0
    %600 = vmatpush1.msra.mxu0 0.0
    %601 = vmatprep.subr.mxu0 0.0
    %602 = vmatpush1.msra.mxu0 0.0
    %603 = vmatprep.subr.mxu0 0.0
    %604 = vmatpush1.msra.mxu0 0.0
    %605 = vmatprep.subr.mxu0 0.0
    %606 = vmatpush1.msra.mxu0 0.0
    %607 = vmatprep.subr.mxu0 0.0
    %608 = vmatpush1.msra.mxu0 0.0
    %609 = vmatprep.subr.mxu0 0.0
    %610 = vmatpush1.msra.mxu0 0.0
    %611 = vmatprep.subr.mxu0 0.0
    %612 = vmatpush1.msra.mxu0 %v455
    %613 = vmatprep.subr.mxu0 0.0
    %614 = vmatpush1.msra.mxu0 %v450
    %615 = vmatprep.subr.mxu0 0.0
    %616 = vmatpush2.msra.mxu0 0.0
    %617 = vmatprep.subr.mxu0 0.0
    %618 = vmatpush2.msra.mxu0 0.0
    %619 = vmatprep.subr.mxu0 0.0
    %620 = vmatpush2.msra.mxu0 0.0
    %621 = vmatprep.subr.mxu0 0.0
    %622 = vmatpush2.msra.mxu0 0.0
    %623 = vmatprep.subr.mxu0 0.0
    %624 = vmatpush2.msra.mxu0 0.0
    %625 = vmatprep.subr.mxu0 0.0
    %626 = vmatpush2.msra.mxu0 0.0
    %627 = vmatprep.subr.mxu0 0.0
    %628 = vmatpush2.msra.mxu0 0.0
    %629 = vmatprep.subr.mxu0 0.0
    %630 = vmatpush2.msra.mxu0 0.0
    %631 = vmatprep.subr.mxu0 0.0
    %632 = vmatpush2.msra.mxu0 0.0
    %633 = vmatprep.subr.mxu0 0.0
    %634 = vmatpush2.msra.mxu0 0.0
    %635 = vmatprep.subr.mxu0 0.0
    %636 = vmatpush2.msra.mxu0 0.0
    %637 = vmatprep.subr.mxu0 0.0
    %638 = vmatpush2.msra.mxu0 0.0
    %639 = vmatprep.subr.mxu0 0.0
    %640 = vmatpush2.msra.mxu0 0.0
    %641 = vmatprep.subr.mxu0 0.0
    %642 = vmatpush2.msra.mxu0 0.0
    %643 = vmatprep.subr.mxu0 0.0
    %644 = vmatpush2.msra.mxu0 0.0
    %645 = vmatprep.subr.mxu0 0.0
    %646 = vmatpush2.msra.mxu0 0.0
    %647 = vmatprep.mubr.f32.mxu0 0.0
    %648 = vmatmul.mubr.f32.gmra.mxu0 %v578
    %v649 = vpop.f32.mrf.mxu0
    %v650 = vadd.f32 0.0, %v649
    %v651 = vpop.f32.mrf.mxu0
    %652 = vmatprep.mubr.f32.mxu0 0.0
    %653 = vmatmul.mubr.f32.gmra.mxu0 %v581
    %v654 = vpop.f32.mrf.mxu0
    %v655 = vadd.f32 0.0, %v654
    %v656 = vpop.f32.mrf.mxu0
    %657 = vdwg.mxu0
    %658 = vrot.lane.b32.xlu0 %v278, 120
    %v659 = vpop.permute.xlu0 %658
    %660 = vrot.lane.b32.xlu0 %v283, 120
    %v661 = vpop.permute.xlu0 %660
    %662 = vrot.lane.b32.xlu0 %v364, 120
    %v663 = vpop.permute.xlu0 %662
    %664 = vrot.lane.b32.xlu0 %v369, 120
    %v665 = vpop.permute.xlu0 %664
    %v666 = vsel %vm462, %v659, 0
    %v668 = vsel %vm462, %v661, 0
    %v670 = vsel %vm462, %v663, 0
    %v672 = vsel %vm462, %v665, 0
    %674 = vmatprep.subr.mxu0 0.0
    %675 = vmatpush1.xpose.msra.mxu0 0.0
    %676 = vmatprep.subr.mxu0 0.0
    %677 = vmatpush1.xpose.msra.mxu0 0.0
    %678 = vmatprep.subr.mxu0 0.0
    %679 = vmatpush1.xpose.msra.mxu0 0.0
    %680 = vmatprep.subr.mxu0 0.0
    %681 = vmatpush1.xpose.msra.mxu0 0.0
    %682 = vmatprep.subr.mxu0 0.0
    %683 = vmatpush1.xpose.msra.mxu0 0.0
    %684 = vmatprep.subr.mxu0 0.0
    %685 = vmatpush1.xpose.msra.mxu0 0.0
    %686 = vmatprep.subr.mxu0 0.0
    %687 = vmatpush1.xpose.msra.mxu0 0.0
    %688 = vmatprep.subr.mxu0 0.0
    %689 = vmatpush1.xpose.msra.mxu0 0.0
    %690 = vmatprep.subr.mxu0 0.0
    %691 = vmatpush1.xpose.msra.mxu0 0.0
    %692 = vmatprep.subr.mxu0 0.0
    %693 = vmatpush1.xpose.msra.mxu0 0.0
    %694 = vmatprep.subr.mxu0 0.0
    %695 = vmatpush1.xpose.msra.mxu0 0.0
    %696 = vmatprep.subr.mxu0 0.0
    %697 = vmatpush1.xpose.msra.mxu0 0.0
    %698 = vmatprep.subr.mxu0 0.0
    %699 = vmatpush1.xpose.msra.mxu0 0.0
    %700 = vmatprep.subr.mxu0 0.0
    %701 = vmatpush1.xpose.msra.mxu0 0.0
    %702 = vmatprep.subr.mxu0 0.0
    %703 = vmatpush1.xpose.msra.mxu0 %v672
    %704 = vmatprep.subr.mxu0 0.0
    %705 = vmatpush1.xpose.msra.mxu0 %v670
    %706 = vmatprep.subr.mxu0 0.0
    %707 = vmatpush2.xpose.msra.mxu0 0.0
    %708 = vmatprep.subr.mxu0 0.0
    %709 = vmatpush2.xpose.msra.mxu0 0.0
    %710 = vmatprep.subr.mxu0 0.0
    %711 = vmatpush2.xpose.msra.mxu0 0.0
    %712 = vmatprep.subr.mxu0 0.0
    %713 = vmatpush2.xpose.msra.mxu0 0.0
    %714 = vmatprep.subr.mxu0 0.0
    %715 = vmatpush2.xpose.msra.mxu0 0.0
    %716 = vmatprep.subr.mxu0 0.0
    %717 = vmatpush2.xpose.msra.mxu0 0.0
    %718 = vmatprep.subr.mxu0 0.0
    %719 = vmatpush2.xpose.msra.mxu0 0.0
    %720 = vmatprep.subr.mxu0 0.0
    %721 = vmatpush2.xpose.msra.mxu0 0.0
    %722 = vmatprep.subr.mxu0 0.0
    %723 = vmatpush2.xpose.msra.mxu0 0.0
    %724 = vmatprep.subr.mxu0 0.0
    %725 = vmatpush2.xpose.msra.mxu0 0.0
    %726 = vmatprep.subr.mxu0 0.0
    %727 = vmatpush2.xpose.msra.mxu0 0.0
    %728 = vmatprep.subr.mxu0 0.0
    %729 = vmatpush2.xpose.msra.mxu0 0.0
    %730 = vmatprep.subr.mxu0 0.0
    %731 = vmatpush2.xpose.msra.mxu0 0.0
    %732 = vmatprep.subr.mxu0 0.0
    %733 = vmatpush2.xpose.msra.mxu0 0.0
    %734 = vmatprep.subr.mxu0 0.0
    %735 = vmatpush2.xpose.msra.mxu0 0.0
    %736 = vmatprep.subr.mxu0 0.0
    %737 = vmatpush2.xpose.msra.mxu0 0.0
    %738 = vmatprep.mubr.f32.mxu0 0.0
    %739 = vmatmul.mubr.f32.gmra.mxu0 %v666
    %v740 = vpop.f32.mrf.mxu0
    %v741 = vadd.f32 0.0, %v740
    %v742 = vpop.f32.mrf.mxu0
    %743 = vmatprep.mubr.f32.mxu0 0.0
    %744 = vmatmul.mubr.f32.gmra.mxu0 %v668
    %v745 = vpop.f32.mrf.mxu0
    %v746 = vadd.f32 0.0, %v745
    %v747 = vpop.f32.mrf.mxu0
    %748 = vdwg.mxu0
    %v749 = vmul.f32 %v741, 0.35355338
    %v750 = vmul.f32 %v746, 0.35355338
    %v751 = vadd.f32 %v749, %v192
    %v752 = vadd.f32 %v750, %v193
    %v753 = vsel %vm554, %v751, -inf
    %754 = vmax.xlane.f32.xlu0 %v753
    %v755 = vpop.xlane.xlu0 %754
    %v756 = vsel %vm554, %v752, -inf
    %757 = vmax.xlane.f32.xlu0 %v756
    %v758 = vpop.xlane.xlu0 %757
    %v759 = vsub.f32 %v751, %v755
    %v760 = vsub.f32 %v752, %v758
    %v761 = vmul.f32 %v759, 1.442695
    %v762 = vpow.pop %v761
    %v763 = vmul.f32 %v760, 1.442695
    %v764 = vpow.pop %v763
    %v765 = vsel %vm554, %v762, 0.0
    %766 = vadd.xlane.f32.xlu0 %v765
    %v767 = vpop.xlane.xlu0 %766
    %v768 = vsel %vm554, %v764, 0.0
    %769 = vadd.xlane.f32.xlu0 %v768
    %v770 = vpop.xlane.xlu0 %769
    %v771 = vrcp.pop %v767
    %v772 = vrcp.pop %v770
    %v773 = vmul.f32 %v762, %v771
    %v774 = vmul.f32 %v764, %v772
    %777 = vrot.lane.b32.xlu0 %v450, 120
    %v778 = vpop.permute.xlu0 %777
    %779 = vrot.lane.b32.xlu0 %v455, 120
    %v780 = vpop.permute.xlu0 %779
    %v784 = vsel %vm554, %v773, 0
    %v787 = vsel %vm554, %v774, 0
    %789 = vmatprep.subr.mxu0 0.0
    %790 = vmatpush1.msra.mxu0 0.0
    %791 = vmatprep.subr.mxu0 0.0
    %792 = vmatpush1.msra.mxu0 0.0
    %793 = vmatprep.subr.mxu0 0.0
    %794 = vmatpush1.msra.mxu0 0.0
    %795 = vmatprep.subr.mxu0 0.0
    %796 = vmatpush1.msra.mxu0 0.0
    %797 = vmatprep.subr.mxu0 0.0
    %798 = vmatpush1.msra.mxu0 0.0
    %799 = vmatprep.subr.mxu0 0.0
    %800 = vmatpush1.msra.mxu0 0.0
    %801 = vmatprep.subr.mxu0 0.0
    %802 = vmatpush1.msra.mxu0 0.0
    %803 = vmatprep.subr.mxu0 0.0
    %804 = vmatpush1.msra.mxu0 0.0
    %805 = vmatprep.subr.mxu0 0.0
    %806 = vmatpush1.msra.mxu0 0.0
    %807 = vmatprep.subr.mxu0 0.0
    %808 = vmatpush1.msra.mxu0 0.0
    %809 = vmatprep.subr.mxu0 0.0
    %810 = vmatpush1.msra.mxu0 0.0
    %811 = vmatprep.subr.mxu0 0.0
    %812 = vmatpush1.msra.mxu0 0.0
    %813 = vmatprep.subr.mxu0 0.0
    %814 = vmatpush1.msra.mxu0 0.0
    %815 = vmatprep.subr.mxu0 0.0
    %816 = vmatpush1.msra.mxu0 0.0
    %817 = vmatprep.subr.mxu0 0.0
    %818 = vmatpush1.msra.mxu0 %v780
    %819 = vmatprep.subr.mxu0 0.0
    %820 = vmatpush1.msra.mxu0 %v778
    %821 = vmatprep.subr.mxu0 0.0
    %822 = vmatpush2.msra.mxu0 0.0
    %823 = vmatprep.subr.mxu0 0.0
    %824 = vmatpush2.msra.mxu0 0.0
    %825 = vmatprep.subr.mxu0 0.0
    %826 = vmatpush2.msra.mxu0 0.0
    %827 = vmatprep.subr.mxu0 0.0
    %828 = vmatpush2.msra.mxu0 0.0
    %829 = vmatprep.subr.mxu0 0.0
    %830 = vmatpush2.msra.mxu0 0.0
    %831 = vmatprep.subr.mxu0 0.0
    %832 = vmatpush2.msra.mxu0 0.0
    %833 = vmatprep.subr.mxu0 0.0
    %834 = vmatpush2.msra.mxu0 0.0
    %835 = vmatprep.subr.mxu0 0.0
    %836 = vmatpush2.msra.mxu0 0.0
    %837 = vmatprep.subr.mxu0 0.0
    %838 = vmatpush2.msra.mxu0 0.0
    %839 = vmatprep.subr.mxu0 0.0
    %840 = vmatpush2.msra.mxu0 0.0
    %841 = vmatprep.subr.mxu0 0.0
    %842 = vmatpush2.msra.mxu0 0.0
    %843 = vmatprep.subr.mxu0 0.0
    %844 = vmatpush2.msra.mxu0 0.0
    %845 = vmatprep.subr.mxu0 0.0
    %846 = vmatpush2.msra.mxu0 0.0
    %847 = vmatprep.subr.mxu0 0.0
    %848 = vmatpush2.msra.mxu0 0.0
    %849 = vmatprep.subr.mxu0 0.0
    %850 = vmatpush2.msra.mxu0 0.0
    %851 = vmatprep.subr.mxu0 0.0
    %852 = vmatpush2.msra.mxu0 0.0
    %853 = vmatprep.mubr.f32.mxu0 0.0
    %854 = vmatmul.mubr.f32.gmra.mxu0 %v784
    %v855 = vpop.f32.mrf.mxu0
    %v856 = vadd.f32 0.0, %v855
    %v857 = vpop.f32.mrf.mxu0
    %858 = vmatprep.mubr.f32.mxu0 0.0
    %859 = vmatmul.mubr.f32.gmra.mxu0 %v787
    %v860 = vpop.f32.mrf.mxu0
    %v861 = vadd.f32 0.0, %v860
    %v862 = vpop.f32.mrf.mxu0
    %863 = vdwg.mxu0
    %v865 = vsel %vm462, %v856, 0
    %v868 = vsel %vm462, %v861, 0
    %870 = vmatprep.subr.mxu0 0.0
    %871 = vmatpush1.msra.mxu0 0.0
    %872 = vmatprep.subr.mxu0 0.0
    %873 = vmatpush1.msra.mxu0 0.0
    %874 = vmatprep.subr.mxu0 0.0
    %875 = vmatpush1.msra.mxu0 0.0
    %876 = vmatprep.subr.mxu0 0.0
    %877 = vmatpush1.msra.mxu0 0.0
    %878 = vmatprep.subr.mxu0 0.0
    %879 = vmatpush1.msra.mxu0 0.0
    %880 = vmatprep.subr.mxu0 0.0
    %881 = vmatpush1.msra.mxu0 0.0
    %882 = vmatprep.subr.mxu0 0.0
    %883 = vmatpush1.msra.mxu0 0.0
    %884 = vmatprep.subr.mxu0 0.0
    %885 = vmatpush1.msra.mxu0 0.0
    %886 = vmatprep.subr.mxu0 0.0
    %887 = vmatpush1.msra.mxu0 0.0
    %888 = vmatprep.subr.mxu0 0.0
    %889 = vmatpush1.msra.mxu0 0.0
    %890 = vmatprep.subr.mxu0 0.0
    %891 = vmatpush1.msra.mxu0 0.0
    %892 = vmatprep.subr.mxu0 0.0
    %893 = vmatpush1.msra.mxu0 0.0
    %894 = vmatprep.subr.mxu0 0.0
    %895 = vmatpush1.msra.mxu0 0.0
    %896 = vmatprep.subr.mxu0 0.0
    %897 = vmatpush1.msra.mxu0 0.0
    %898 = vmatprep.subr.mxu0 0.0
    %899 = vmatpush1.msra.mxu0 0.0
    %900 = vmatprep.subr.mxu0 0.0
    %901 = vmatpush1.msra.mxu0 %v459
    %902 = vmatprep.subr.mxu0 0.0
    %903 = vmatpush2.msra.mxu0 0.0
    %904 = vmatprep.subr.mxu0 0.0
    %905 = vmatpush2.msra.mxu0 0.0
    %906 = vmatprep.subr.mxu0 0.0
    %907 = vmatpush2.msra.mxu0 0.0
    %908 = vmatprep.subr.mxu0 0.0
    %909 = vmatpush2.msra.mxu0 0.0
    %910 = vmatprep.subr.mxu0 0.0
    %911 = vmatpush2.msra.mxu0 0.0
    %912 = vmatprep.subr.mxu0 0.0
    %913 = vmatpush2.msra.mxu0 0.0
    %914 = vmatprep.subr.mxu0 0.0
    %915 = vmatpush2.msra.mxu0 0.0
    %916 = vmatprep.subr.mxu0 0.0
    %917 = vmatpush2.msra.mxu0 0.0
    %918 = vmatprep.subr.mxu0 0.0
    %919 = vmatpush2.msra.mxu0 0.0
    %920 = vmatprep.subr.mxu0 0.0
    %921 = vmatpush2.msra.mxu0 0.0
    %922 = vmatprep.subr.mxu0 0.0
    %923 = vmatpush2.msra.mxu0 0.0
    %924 = vmatprep.subr.mxu0 0.0
    %925 = vmatpush2.msra.mxu0 0.0
    %926 = vmatprep.subr.mxu0 0.0
    %927 = vmatpush2.msra.mxu0 0.0
    %928 = vmatprep.subr.mxu0 0.0
    %929 = vmatpush2.msra.mxu0 0.0
    %930 = vmatprep.subr.mxu0 0.0
    %931 = vmatpush2.msra.mxu0 0.0
    %932 = vmatprep.subr.mxu0 0.0
    %933 = vmatpush2.msra.mxu0 0.0
    %934 = vmatprep.mubr.f32.mxu0 0.0
    %935 = vmatmul.mubr.f32.gmra.mxu0 %v865
    %v936 = vpop.f32.mrf.mxu0
    %v937 = vadd.f32 0.0, %v936
    %v938 = vpop.f32.mrf.mxu0
    %939 = vmatprep.mubr.f32.mxu0 0.0
    %940 = vmatmul.mubr.f32.gmra.mxu0 %v868
    %v941 = vpop.f32.mrf.mxu0
    %v942 = vadd.f32 0.0, %v941
    %v943 = vpop.f32.mrf.mxu0
    %944 = vdwg.mxu0
    %v946 = vsel %vm462, %v650, 0
    %v949 = vsel %vm462, %v655, 0
    %951 = vmatprep.subr.mxu0 0.0
    %952 = vmatpush1.msra.mxu0 0.0
    %953 = vmatprep.subr.mxu0 0.0
    %954 = vmatpush1.msra.mxu0 0.0
    %955 = vmatprep.subr.mxu0 0.0
    %956 = vmatpush1.msra.mxu0 0.0
    %957 = vmatprep.subr.mxu0 0.0
    %958 = vmatpush1.msra.mxu0 0.0
    %959 = vmatprep.subr.mxu0 0.0
    %960 = vmatpush1.msra.mxu0 0.0
    %961 = vmatprep.subr.mxu0 0.0
    %962 = vmatpush1.msra.mxu0 0.0
    %963 = vmatprep.subr.mxu0 0.0
    %964 = vmatpush1.msra.mxu0 0.0
    %965 = vmatprep.subr.mxu0 0.0
    %966 = vmatpush1.msra.mxu0 0.0
    %967 = vmatprep.subr.mxu0 0.0
    %968 = vmatpush1.msra.mxu0 0.0
    %969 = vmatprep.subr.mxu0 0.0
    %970 = vmatpush1.msra.mxu0 0.0
    %971 = vmatprep.subr.mxu0 0.0
    %972 = vmatpush1.msra.mxu0 0.0
    %973 = vmatprep.subr.mxu0 0.0
    %974 = vmatpush1.msra.mxu0 0.0
    %975 = vmatprep.subr.mxu0 0.0
    %976 = vmatpush1.msra.mxu0 0.0
    %977 = vmatprep.subr.mxu0 0.0
    %978 = vmatpush1.msra.mxu0 0.0
    %979 = vmatprep.subr.mxu0 0.0
    %980 = vmatpush1.msra.mxu0 0.0
    %981 = vmatprep.subr.mxu0 0.0
    %982 = vmatpush1.msra.mxu0 %v458
    %983 = vmatprep.subr.mxu0 0.0
    %984 = vmatpush2.msra.mxu0 0.0
    %985 = vmatprep.subr.mxu0 0.0
    %986 = vmatpush2.msra.mxu0 0.0
    %987 = vmatprep.subr.mxu0 0.0
    %988 = vmatpush2.msra.mxu0 0.0
    %989 = vmatprep.subr.mxu0 0.0
    %990 = vmatpush2.msra.mxu0 0.0
    %991 = vmatprep.subr.mxu0 0.0
    %992 = vmatpush2.msra.mxu0 0.0
    %993 = vmatprep.subr.mxu0 0.0
    %994 = vmatpush2.msra.mxu0 0.0
    %995 = vmatprep.subr.mxu0 0.0
    %996 = vmatpush2.msra.mxu0 0.0
    %997 = vmatprep.subr.mxu0 0.0
    %998 = vmatpush2.msra.mxu0 0.0
    %999 = vmatprep.subr.mxu0 0.0
    %1000 = vmatpush2.msra.mxu0 0.0
    %1001 = vmatprep.subr.mxu0 0.0
    %1002 = vmatpush2.msra.mxu0 0.0
    %1003 = vmatprep.subr.mxu0 0.0
    %1004 = vmatpush2.msra.mxu0 0.0
    %1005 = vmatprep.subr.mxu0 0.0
    %1006 = vmatpush2.msra.mxu0 0.0
    %1007 = vmatprep.subr.mxu0 0.0
    %1008 = vmatpush2.msra.mxu0 0.0
    %1009 = vmatprep.subr.mxu0 0.0
    %1010 = vmatpush2.msra.mxu0 0.0
    %1011 = vmatprep.subr.mxu0 0.0
    %1012 = vmatpush2.msra.mxu0 0.0
    %1013 = vmatprep.subr.mxu0 0.0
    %1014 = vmatpush2.msra.mxu0 0.0
    %1015 = vmatprep.mubr.f32.mxu0 0.0
    %1016 = vmatmul.mubr.f32.gmra.mxu0 %v946
    %v1017 = vpop.f32.mrf.mxu0
    %v1018 = vadd.f32 %v937, %v1017
    %v1019 = vpop.f32.mrf.mxu0
    %1020 = vmatprep.mubr.f32.mxu0 0.0
    %1021 = vmatmul.mubr.f32.gmra.mxu0 %v949
    %v1022 = vpop.f32.mrf.mxu0
    %v1023 = vadd.f32 %v942, %v1022
    %v1024 = vpop.f32.mrf.mxu0
    %1025 = vdwg.mxu0
    %1026 = vrot.lane.b32.xlu0 %v278, 112
    %v1027 = vpop.permute.xlu0 %1026
    %1028 = vrot.lane.b32.xlu0 %v283, 112
    %v1029 = vpop.permute.xlu0 %1028
    %1030 = vrot.lane.b32.xlu0 %v364, 112
    %v1031 = vpop.permute.xlu0 %1030
    %1032 = vrot.lane.b32.xlu0 %v369, 112
    %v1033 = vpop.permute.xlu0 %1032
    %v1034 = vsel %vm462, %v1027, 0
    %v1036 = vsel %vm462, %v1029, 0
    %v1038 = vsel %vm462, %v1031, 0
    %v1040 = vsel %vm462, %v1033, 0
    %1042 = vmatprep.subr.mxu0 0.0
    %1043 = vmatpush1.xpose.msra.mxu0 0.0
    %1044 = vmatprep.subr.mxu0 0.0
    %1045 = vmatpush1.xpose.msra.mxu0 0.0
    %1046 = vmatprep.subr.mxu0 0.0
    %1047 = vmatpush1.xpose.msra.mxu0 0.0
    %1048 = vmatprep.subr.mxu0 0.0
    %1049 = vmatpush1.xpose.msra.mxu0 0.0
    %1050 = vmatprep.subr.mxu0 0.0
    %1051 = vmatpush1.xpose.msra.mxu0 0.0
    %1052 = vmatprep.subr.mxu0 0.0
    %1053 = vmatpush1.xpose.msra.mxu0 0.0
    %1054 = vmatprep.subr.mxu0 0.0
    %1055 = vmatpush1.xpose.msra.mxu0 0.0
    %1056 = vmatprep.subr.mxu0 0.0
    %1057 = vmatpush1.xpose.msra.mxu0 0.0
    %1058 = vmatprep.subr.mxu0 0.0
    %1059 = vmatpush1.xpose.msra.mxu0 0.0
    %1060 = vmatprep.subr.mxu0 0.0
    %1061 = vmatpush1.xpose.msra.mxu0 0.0
    %1062 = vmatprep.subr.mxu0 0.0
    %1063 = vmatpush1.xpose.msra.mxu0 0.0
    %1064 = vmatprep.subr.mxu0 0.0
    %1065 = vmatpush1.xpose.msra.mxu0 0.0
    %1066 = vmatprep.subr.mxu0 0.0
    %1067 = vmatpush1.xpose.msra.mxu0 0.0
    %1068 = vmatprep.subr.mxu0 0.0
    %1069 = vmatpush1.xpose.msra.mxu0 0.0
    %1070 = vmatprep.subr.mxu0 0.0
    %1071 = vmatpush1.xpose.msra.mxu0 %v1040
    %1072 = vmatprep.subr.mxu0 0.0
    %1073 = vmatpush1.xpose.msra.mxu0 %v1038
    %1074 = vmatprep.subr.mxu0 0.0
    %1075 = vmatpush2.xpose.msra.mxu0 0.0
    %1076 = vmatprep.subr.mxu0 0.0
    %1077 = vmatpush2.xpose.msra.mxu0 0.0
    %1078 = vmatprep.subr.mxu0 0.0
    %1079 = vmatpush2.xpose.msra.mxu0 0.0
    %1080 = vmatprep.subr.mxu0 0.0
    %1081 = vmatpush2.xpose.msra.mxu0 0.0
    %1082 = vmatprep.subr.mxu0 0.0
    %1083 = vmatpush2.xpose.msra.mxu0 0.0
    %1084 = vmatprep.subr.mxu0 0.0
    %1085 = vmatpush2.xpose.msra.mxu0 0.0
    %1086 = vmatprep.subr.mxu0 0.0
    %1087 = vmatpush2.xpose.msra.mxu0 0.0
    %1088 = vmatprep.subr.mxu0 0.0
    %1089 = vmatpush2.xpose.msra.mxu0 0.0
    %1090 = vmatprep.subr.mxu0 0.0
    %1091 = vmatpush2.xpose.msra.mxu0 0.0
    %1092 = vmatprep.subr.mxu0 0.0
    %1093 = vmatpush2.xpose.msra.mxu0 0.0
    %1094 = vmatprep.subr.mxu0 0.0
    %1095 = vmatpush2.xpose.msra.mxu0 0.0
    %1096 = vmatprep.subr.mxu0 0.0
    %1097 = vmatpush2.xpose.msra.mxu0 0.0
    %1098 = vmatprep.subr.mxu0 0.0
    %1099 = vmatpush2.xpose.msra.mxu0 0.0
    %1100 = vmatprep.subr.mxu0 0.0
    %1101 = vmatpush2.xpose.msra.mxu0 0.0
    %1102 = vmatprep.subr.mxu0 0.0
    %1103 = vmatpush2.xpose.msra.mxu0 0.0
    %1104 = vmatprep.subr.mxu0 0.0
    %1105 = vmatpush2.xpose.msra.mxu0 0.0
    %1106 = vmatprep.mubr.f32.mxu0 0.0
    %1107 = vmatmul.mubr.f32.gmra.mxu0 %v1034
    %v1108 = vpop.f32.mrf.mxu0
    %v1109 = vadd.f32 0.0, %v1108
    %v1110 = vpop.f32.mrf.mxu0
    %1111 = vmatprep.mubr.f32.mxu0 0.0
    %1112 = vmatmul.mubr.f32.gmra.mxu0 %v1036
    %v1113 = vpop.f32.mrf.mxu0
    %v1114 = vadd.f32 0.0, %v1113
    %v1115 = vpop.f32.mrf.mxu0
    %1116 = vdwg.mxu0
    %v1117 = vmul.f32 %v1109, 0.35355338
    %v1118 = vmul.f32 %v1114, 0.35355338
    %v1119 = vadd.f32 %v1117, %v192
    %v1120 = vadd.f32 %v1118, %v193
    %v1121 = vsel %vm554, %v1119, -inf
    %1122 = vmax.xlane.f32.xlu0 %v1121
    %v1123 = vpop.xlane.xlu0 %1122
    %v1124 = vsel %vm554, %v1120, -inf
    %1125 = vmax.xlane.f32.xlu0 %v1124
    %v1126 = vpop.xlane.xlu0 %1125
    %v1127 = vsub.f32 %v1119, %v1123
    %v1128 = vsub.f32 %v1120, %v1126
    %v1129 = vmul.f32 %v1127, 1.442695
    %v1130 = vpow.pop %v1129
    %v1131 = vmul.f32 %v1128, 1.442695
    %v1132 = vpow.pop %v1131
    %v1133 = vsel %vm554, %v1130, 0.0
    %1134 = vadd.xlane.f32.xlu0 %v1133
    %v1135 = vpop.xlane.xlu0 %1134
    %v1136 = vsel %vm554, %v1132, 0.0
    %1137 = vadd.xlane.f32.xlu0 %v1136
    %v1138 = vpop.xlane.xlu0 %1137
    %v1139 = vrcp.pop %v1135
    %v1140 = vrcp.pop %v1138
    %v1141 = vmul.f32 %v1130, %v1139
    %v1142 = vmul.f32 %v1132, %v1140
    %1143 = vrot.lane.b32.xlu0 %v450, 112
    %v1144 = vpop.permute.xlu0 %1143
    %1145 = vrot.lane.b32.xlu0 %v455, 112
    %v1146 = vpop.permute.xlu0 %1145
    %v1150 = vsel %vm554, %v1141, 0
    %v1153 = vsel %vm554, %v1142, 0
    %1155 = vmatprep.subr.mxu0 0.0
    %1156 = vmatpush1.msra.mxu0 0.0
    %1157 = vmatprep.subr.mxu0 0.0
    %1158 = vmatpush1.msra.mxu0 0.0
    %1159 = vmatprep.subr.mxu0 0.0
    %1160 = vmatpush1.msra.mxu0 0.0
    %1161 = vmatprep.subr.mxu0 0.0
    %1162 = vmatpush1.msra.mxu0 0.0
    %1163 = vmatprep.subr.mxu0 0.0
    %1164 = vmatpush1.msra.mxu0 0.0
    %1165 = vmatprep.subr.mxu0 0.0
    %1166 = vmatpush1.msra.mxu0 0.0
    %1167 = vmatprep.subr.mxu0 0.0
    %1168 = vmatpush1.msra.mxu0 0.0
    %1169 = vmatprep.subr.mxu0 0.0
    %1170 = vmatpush1.msra.mxu0 0.0
    %1171 = vmatprep.subr.mxu0 0.0
    %1172 = vmatpush1.msra.mxu0 0.0
    %1173 = vmatprep.subr.mxu0 0.0
    %1174 = vmatpush1.msra.mxu0 0.0
    %1175 = vmatprep.subr.mxu0 0.0
    %1176 = vmatpush1.msra.mxu0 0.0
    %1177 = vmatprep.subr.mxu0 0.0
    %1178 = vmatpush1.msra.mxu0 0.0
    %1179 = vmatprep.subr.mxu0 0.0
    %1180 = vmatpush1.msra.mxu0 0.0
    %1181 = vmatprep.subr.mxu0 0.0
    %1182 = vmatpush1.msra.mxu0 0.0
    %1183 = vmatprep.subr.mxu0 0.0
    %1184 = vmatpush1.msra.mxu0 %v1146
    %1185 = vmatprep.subr.mxu0 0.0
    %1186 = vmatpush1.msra.mxu0 %v1144
    %1187 = vmatprep.subr.mxu0 0.0
    %1188 = vmatpush2.msra.mxu0 0.0
    %1189 = vmatprep.subr.mxu0 0.0
    %1190 = vmatpush2.msra.mxu0 0.0
    %1191 = vmatprep.subr.mxu0 0.0
    %1192 = vmatpush2.msra.mxu0 0.0
    %1193 = vmatprep.subr.mxu0 0.0
    %1194 = vmatpush2.msra.mxu0 0.0
    %1195 = vmatprep.subr.mxu0 0.0
    %1196 = vmatpush2.msra.mxu0 0.0
    %1197 = vmatprep.subr.mxu0 0.0
    %1198 = vmatpush2.msra.mxu0 0.0
    %1199 = vmatprep.subr.mxu0 0.0
    %1200 = vmatpush2.msra.mxu0 0.0
    %1201 = vmatprep.subr.mxu0 0.0
    %1202 = vmatpush2.msra.mxu0 0.0
    %1203 = vmatprep.subr.mxu0 0.0
    %1204 = vmatpush2.msra.mxu0 0.0
    %1205 = vmatprep.subr.mxu0 0.0
    %1206 = vmatpush2.msra.mxu0 0.0
    %1207 = vmatprep.subr.mxu0 0.0
    %1208 = vmatpush2.msra.mxu0 0.0
    %1209 = vmatprep.subr.mxu0 0.0
    %1210 = vmatpush2.msra.mxu0 0.0
    %1211 = vmatprep.subr.mxu0 0.0
    %1212 = vmatpush2.msra.mxu0 0.0
    %1213 = vmatprep.subr.mxu0 0.0
    %1214 = vmatpush2.msra.mxu0 0.0
    %1215 = vmatprep.subr.mxu0 0.0
    %1216 = vmatpush2.msra.mxu0 0.0
    %1217 = vmatprep.subr.mxu0 0.0
    %1218 = vmatpush2.msra.mxu0 0.0
    %1219 = vmatprep.mubr.f32.mxu0 0.0
    %1220 = vmatmul.mubr.f32.gmra.mxu0 %v1150
    %v1221 = vpop.f32.mrf.mxu0
    %v1222 = vadd.f32 0.0, %v1221
    %v1223 = vpop.f32.mrf.mxu0
    %1224 = vmatprep.mubr.f32.mxu0 0.0
    %1225 = vmatmul.mubr.f32.gmra.mxu0 %v1153
    %v1226 = vpop.f32.mrf.mxu0
    %v1227 = vadd.f32 0.0, %v1226
    %v1228 = vpop.f32.mrf.mxu0
    %1229 = vdwg.mxu0
    %v1231 = vsel %vm462, %v1222, 0
    %v1234 = vsel %vm462, %v1227, 0
    %1236 = vmatprep.subr.mxu0 0.0
    %1237 = vmatpush1.msra.mxu0 0.0
    %1238 = vmatprep.subr.mxu0 0.0
    %1239 = vmatpush1.msra.mxu0 0.0
    %1240 = vmatprep.subr.mxu0 0.0
    %1241 = vmatpush1.msra.mxu0 0.0
    %1242 = vmatprep.subr.mxu0 0.0
    %1243 = vmatpush1.msra.mxu0 0.0
    %1244 = vmatprep.subr.mxu0 0.0
    %1245 = vmatpush1.msra.mxu0 0.0
    %1246 = vmatprep.subr.mxu0 0.0
    %1247 = vmatpush1.msra.mxu0 0.0
    %1248 = vmatprep.subr.mxu0 0.0
    %1249 = vmatpush1.msra.mxu0 0.0
    %1250 = vmatprep.subr.mxu0 0.0
    %1251 = vmatpush1.msra.mxu0 0.0
    %1252 = vmatprep.subr.mxu0 0.0
    %1253 = vmatpush1.msra.mxu0 0.0
    %1254 = vmatprep.subr.mxu0 0.0
    %1255 = vmatpush1.msra.mxu0 0.0
    %1256 = vmatprep.subr.mxu0 0.0
    %1257 = vmatpush1.msra.mxu0 0.0
    %1258 = vmatprep.subr.mxu0 0.0
    %1259 = vmatpush1.msra.mxu0 0.0
    %1260 = vmatprep.subr.mxu0 0.0
    %1261 = vmatpush1.msra.mxu0 0.0
    %1262 = vmatprep.subr.mxu0 0.0
    %1263 = vmatpush1.msra.mxu0 0.0
    %1264 = vmatprep.subr.mxu0 0.0
    %1265 = vmatpush1.msra.mxu0 0.0
    %1266 = vmatprep.subr.mxu0 0.0
    %1267 = vmatpush1.msra.mxu0 %v460
    %1268 = vmatprep.subr.mxu0 0.0
    %1269 = vmatpush2.msra.mxu0 0.0
    %1270 = vmatprep.subr.mxu0 0.0
    %1271 = vmatpush2.msra.mxu0 0.0
    %1272 = vmatprep.subr.mxu0 0.0
    %1273 = vmatpush2.msra.mxu0 0.0
    %1274 = vmatprep.subr.mxu0 0.0
    %1275 = vmatpush2.msra.mxu0 0.0
    %1276 = vmatprep.subr.mxu0 0.0
    %1277 = vmatpush2.msra.mxu0 0.0
    %1278 = vmatprep.subr.mxu0 0.0
    %1279 = vmatpush2.msra.mxu0 0.0
    %1280 = vmatprep.subr.mxu0 0.0
    %1281 = vmatpush2.msra.mxu0 0.0
    %1282 = vmatprep.subr.mxu0 0.0
    %1283 = vmatpush2.msra.mxu0 0.0
    %1284 = vmatprep.subr.mxu0 0.0
    %1285 = vmatpush2.msra.mxu0 0.0
    %1286 = vmatprep.subr.mxu0 0.0
    %1287 = vmatpush2.msra.mxu0 0.0
    %1288 = vmatprep.subr.mxu0 0.0
    %1289 = vmatpush2.msra.mxu0 0.0
    %1290 = vmatprep.subr.mxu0 0.0
    %1291 = vmatpush2.msra.mxu0 0.0
    %1292 = vmatprep.subr.mxu0 0.0
    %1293 = vmatpush2.msra.mxu0 0.0
    %1294 = vmatprep.subr.mxu0 0.0
    %1295 = vmatpush2.msra.mxu0 0.0
    %1296 = vmatprep.subr.mxu0 0.0
    %1297 = vmatpush2.msra.mxu0 0.0
    %1298 = vmatprep.subr.mxu0 0.0
    %1299 = vmatpush2.msra.mxu0 0.0
    %1300 = vmatprep.mubr.f32.mxu0 0.0
    %1301 = vmatmul.mubr.f32.gmra.mxu0 %v1231
    %v1302 = vpop.f32.mrf.mxu0
    %v1303 = vadd.f32 0.0, %v1302
    %v1304 = vpop.f32.mrf.mxu0
    %1305 = vmatprep.mubr.f32.mxu0 0.0
    %1306 = vmatmul.mubr.f32.gmra.mxu0 %v1234
    %v1307 = vpop.f32.mrf.mxu0
    %v1308 = vadd.f32 0.0, %v1307
    %v1309 = vpop.f32.mrf.mxu0
    %1310 = vdwg.mxu0
    %v1311 = vadd.f32 %v1018, %v1303
    %v1312 = vadd.f32 %v1023, %v1308
    %1313 = vrot.lane.b32.xlu0 %v278, 104
    %v1314 = vpop.permute.xlu0 %1313
    %1315 = vrot.lane.b32.xlu0 %v283, 104
    %v1316 = vpop.permute.xlu0 %1315
    %1317 = vrot.lane.b32.xlu0 %v364, 104
    %v1318 = vpop.permute.xlu0 %1317
    %1319 = vrot.lane.b32.xlu0 %v369, 104
    %v1320 = vpop.permute.xlu0 %1319
    %v1321 = vsel %vm462, %v1314, 0
    %v1323 = vsel %vm462, %v1316, 0
    %v1325 = vsel %vm462, %v1318, 0
    %v1327 = vsel %vm462, %v1320, 0
    %1329 = vmatprep.subr.mxu0 0.0
    %1330 = vmatpush1.xpose.msra.mxu0 0.0
    %1331 = vmatprep.subr.mxu0 0.0
    %1332 = vmatpush1.xpose.msra.mxu0 0.0
    %1333 = vmatprep.subr.mxu0 0.0
    %1334 = vmatpush1.xpose.msra.mxu0 0.0
    %1335 = vmatprep.subr.mxu0 0.0
    %1336 = vmatpush1.xpose.msra.mxu0 0.0
    %1337 = vmatprep.subr.mxu0 0.0
    %1338 = vmatpush1.xpose.msra.mxu0 0.0
    %1339 = vmatprep.subr.mxu0 0.0
    %1340 = vmatpush1.xpose.msra.mxu0 0.0
    %1341 = vmatprep.subr.mxu0 0.0
    %1342 = vmatpush1.xpose.msra.mxu0 0.0
    %1343 = vmatprep.subr.mxu0 0.0
    %1344 = vmatpush1.xpose.msra.mxu0 0.0
    %1345 = vmatprep.subr.mxu0 0.0
    %1346 = vmatpush1.xpose.msra.mxu0 0.0
    %1347 = vmatprep.subr.mxu0 0.0
    %1348 = vmatpush1.xpose.msra.mxu0 0.0
    %1349 = vmatprep.subr.mxu0 0.0
    %1350 = vmatpush1.xpose.msra.mxu0 0.0
    %1351 = vmatprep.subr.mxu0 0.0
    %1352 = vmatpush1.xpose.msra.mxu0 0.0
    %1353 = vmatprep.subr.mxu0 0.0
    %1354 = vmatpush1.xpose.msra.mxu0 0.0
    %1355 = vmatprep.subr.mxu0 0.0
    %1356 = vmatpush1.xpose.msra.mxu0 0.0
    %1357 = vmatprep.subr.mxu0 0.0
    %1358 = vmatpush1.xpose.msra.mxu0 %v1327
    %1359 = vmatprep.subr.mxu0 0.0
    %1360 = vmatpush1.xpose.msra.mxu0 %v1325
    %1361 = vmatprep.subr.mxu0 0.0
    %1362 = vmatpush2.xpose.msra.mxu0 0.0
    %1363 = vmatprep.subr.mxu0 0.0
    %1364 = vmatpush2.xpose.msra.mxu0 0.0
    %1365 = vmatprep.subr.mxu0 0.0
    %1366 = vmatpush2.xpose.msra.mxu0 0.0
    %1367 = vmatprep.subr.mxu0 0.0
    %1368 = vmatpush2.xpose.msra.mxu0 0.0
    %1369 = vmatprep.subr.mxu0 0.0
    %1370 = vmatpush2.xpose.msra.mxu0 0.0
    %1371 = vmatprep.subr.mxu0 0.0
    %1372 = vmatpush2.xpose.msra.mxu0 0.0
    %1373 = vmatprep.subr.mxu0 0.0
    %1374 = vmatpush2.xpose.msra.mxu0 0.0
    %1375 = vmatprep.subr.mxu0 0.0
    %1376 = vmatpush2.xpose.msra.mxu0 0.0
    %1377 = vmatprep.subr.mxu0 0.0
    %1378 = vmatpush2.xpose.msra.mxu0 0.0
    %1379 = vmatprep.subr.mxu0 0.0
    %1380 = vmatpush2.xpose.msra.mxu0 0.0
    %1381 = vmatprep.subr.mxu0 0.0
    %1382 = vmatpush2.xpose.msra.mxu0 0.0
    %1383 = vmatprep.subr.mxu0 0.0
    %1384 = vmatpush2.xpose.msra.mxu0 0.0
    %1385 = vmatprep.subr.mxu0 0.0
    %1386 = vmatpush2.xpose.msra.mxu0 0.0
    %1387 = vmatprep.subr.mxu0 0.0
    %1388 = vmatpush2.xpose.msra.mxu0 0.0
    %1389 = vmatprep.subr.mxu0 0.0
    %1390 = vmatpush2.xpose.msra.mxu0 0.0
    %1391 = vmatprep.subr.mxu0 0.0
    %1392 = vmatpush2.xpose.msra.mxu0 0.0
    %1393 = vmatprep.mubr.f32.mxu0 0.0
    %1394 = vmatmul.mubr.f32.gmra.mxu0 %v1321
    %v1395 = vpop.f32.mrf.mxu0
    %v1396 = vadd.f32 0.0, %v1395
    %v1397 = vpop.f32.mrf.mxu0
    %1398 = vmatprep.mubr.f32.mxu0 0.0
    %1399 = vmatmul.mubr.f32.gmra.mxu0 %v1323
    %v1400 = vpop.f32.mrf.mxu0
    %v1401 = vadd.f32 0.0, %v1400
    %v1402 = vpop.f32.mrf.mxu0
    %1403 = vdwg.mxu0
    %v1404 = vmul.f32 %v1396, 0.35355338
    %v1405 = vmul.f32 %v1401, 0.35355338
    %v1406 = vadd.f32 %v1404, %v192
    %v1407 = vadd.f32 %v1405, %v193
    %v1408 = vsel %vm554, %v1406, -inf
    %1409 = vmax.xlane.f32.xlu0 %v1408
    %v1410 = vpop.xlane.xlu0 %1409
    %v1411 = vsel %vm554, %v1407, -inf
    %1412 = vmax.xlane.f32.xlu0 %v1411
    %v1413 = vpop.xlane.xlu0 %1412
    %v1414 = vsub.f32 %v1406, %v1410
    %v1415 = vsub.f32 %v1407, %v1413
    %v1416 = vmul.f32 %v1414, 1.442695
    %v1417 = vpow.pop %v1416
    %v1418 = vmul.f32 %v1415, 1.442695
    %v1419 = vpow.pop %v1418
    %v1420 = vsel %vm554, %v1417, 0.0
    %1421 = vadd.xlane.f32.xlu0 %v1420
    %v1422 = vpop.xlane.xlu0 %1421
    %v1423 = vsel %vm554, %v1419, 0.0
    %1424 = vadd.xlane.f32.xlu0 %v1423
    %v1425 = vpop.xlane.xlu0 %1424
    %v1426 = vrcp.pop %v1422
    %v1427 = vrcp.pop %v1425
    %v1428 = vmul.f32 %v1417, %v1426
    %v1429 = vmul.f32 %v1419, %v1427
    %1430 = vrot.lane.b32.xlu0 %v450, 104
    %v1431 = vpop.permute.xlu0 %1430
    %1432 = vrot.lane.b32.xlu0 %v455, 104
    %v1433 = vpop.permute.xlu0 %1432
    %v1437 = vsel %vm554, %v1428, 0
    %v1440 = vsel %vm554, %v1429, 0
    %1442 = vmatprep.subr.mxu0 0.0
    %1443 = vmatpush1.msra.mxu0 0.0
    %1444 = vmatprep.subr.mxu0 0.0
    %1445 = vmatpush1.msra.mxu0 0.0
    %1446 = vmatprep.subr.mxu0 0.0
    %1447 = vmatpush1.msra.mxu0 0.0
    %1448 = vmatprep.subr.mxu0 0.0
    %1449 = vmatpush1.msra.mxu0 0.0
    %1450 = vmatprep.subr.mxu0 0.0
    %1451 = vmatpush1.msra.mxu0 0.0
    %1452 = vmatprep.subr.mxu0 0.0
    %1453 = vmatpush1.msra.mxu0 0.0
    %1454 = vmatprep.subr.mxu0 0.0
    %1455 = vmatpush1.msra.mxu0 0.0
    %1456 = vmatprep.subr.mxu0 0.0
    %1457 = vmatpush1.msra.mxu0 0.0
    %1458 = vmatprep.subr.mxu0 0.0
    %1459 = vmatpush1.msra.mxu0 0.0
    %1460 = vmatprep.subr.mxu0 0.0
    %1461 = vmatpush1.msra.mxu0 0.0
    %1462 = vmatprep.subr.mxu0 0.0
    %1463 = vmatpush1.msra.mxu0 0.0
    %1464 = vmatprep.subr.mxu0 0.0
    %1465 = vmatpush1.msra.mxu0 0.0
    %1466 = vmatprep.subr.mxu0 0.0
    %1467 = vmatpush1.msra.mxu0 0.0
    %1468 = vmatprep.subr.mxu0 0.0
    %1469 = vmatpush1.msra.mxu0 0.0
    %1470 = vmatprep.subr.mxu0 0.0
    %1471 = vmatpush1.msra.mxu0 %v1433
    %1472 = vmatprep.subr.mxu0 0.0
    %1473 = vmatpush1.msra.mxu0 %v1431
    %1474 = vmatprep.subr.mxu0 0.0
    %1475 = vmatpush2.msra.mxu0 0.0
    %1476 = vmatprep.subr.mxu0 0.0
    %1477 = vmatpush2.msra.mxu0 0.0
    %1478 = vmatprep.subr.mxu0 0.0
    %1479 = vmatpush2.msra.mxu0 0.0
    %1480 = vmatprep.subr.mxu0 0.0
    %1481 = vmatpush2.msra.mxu0 0.0
    %1482 = vmatprep.subr.mxu0 0.0
    %1483 = vmatpush2.msra.mxu0 0.0
    %1484 = vmatprep.subr.mxu0 0.0
    %1485 = vmatpush2.msra.mxu0 0.0
    %1486 = vmatprep.subr.mxu0 0.0
    %1487 = vmatpush2.msra.mxu0 0.0
    %1488 = vmatprep.subr.mxu0 0.0
    %1489 = vmatpush2.msra.mxu0 0.0
    %1490 = vmatprep.subr.mxu0 0.0
    %1491 = vmatpush2.msra.mxu0 0.0
    %1492 = vmatprep.subr.mxu0 0.0
    %1493 = vmatpush2.msra.mxu0 0.0
    %1494 = vmatprep.subr.mxu0 0.0
    %1495 = vmatpush2.msra.mxu0 0.0
    %1496 = vmatprep.subr.mxu0 0.0
    %1497 = vmatpush2.msra.mxu0 0.0
    %1498 = vmatprep.subr.mxu0 0.0
    %1499 = vmatpush2.msra.mxu0 0.0
    %1500 = vmatprep.subr.mxu0 0.0
    %1501 = vmatpush2.msra.mxu0 0.0
    %1502 = vmatprep.subr.mxu0 0.0
    %1503 = vmatpush2.msra.mxu0 0.0
    %1504 = vmatprep.subr.mxu0 0.0
    %1505 = vmatpush2.msra.mxu0 0.0
    %1506 = vmatprep.mubr.f32.mxu0 0.0
    %1507 = vmatmul.mubr.f32.gmra.mxu0 %v1437
    %v1508 = vpop.f32.mrf.mxu0
    %v1509 = vadd.f32 0.0, %v1508
    %v1510 = vpop.f32.mrf.mxu0
    %1511 = vmatprep.mubr.f32.mxu0 0.0
    %1512 = vmatmul.mubr.f32.gmra.mxu0 %v1440
    %v1513 = vpop.f32.mrf.mxu0
    %v1514 = vadd.f32 0.0, %v1513
    %v1515 = vpop.f32.mrf.mxu0
    %1516 = vdwg.mxu0
    %v1518 = vsel %vm462, %v1509, 0
    %v1521 = vsel %vm462, %v1514, 0
    %1523 = vmatprep.subr.mxu0 0.0
    %1524 = vmatpush1.msra.mxu0 0.0
    %1525 = vmatprep.subr.mxu0 0.0
    %1526 = vmatpush1.msra.mxu0 0.0
    %1527 = vmatprep.subr.mxu0 0.0
    %1528 = vmatpush1.msra.mxu0 0.0
    %1529 = vmatprep.subr.mxu0 0.0
    %1530 = vmatpush1.msra.mxu0 0.0
    %1531 = vmatprep.subr.mxu0 0.0
    %1532 = vmatpush1.msra.mxu0 0.0
    %1533 = vmatprep.subr.mxu0 0.0
    %1534 = vmatpush1.msra.mxu0 0.0
    %1535 = vmatprep.subr.mxu0 0.0
    %1536 = vmatpush1.msra.mxu0 0.0
    %1537 = vmatprep.subr.mxu0 0.0
    %1538 = vmatpush1.msra.mxu0 0.0
    %1539 = vmatprep.subr.mxu0 0.0
    %1540 = vmatpush1.msra.mxu0 0.0
    %1541 = vmatprep.subr.mxu0 0.0
    %1542 = vmatpush1.msra.mxu0 0.0
    %1543 = vmatprep.subr.mxu0 0.0
    %1544 = vmatpush1.msra.mxu0 0.0
    %1545 = vmatprep.subr.mxu0 0.0
    %1546 = vmatpush1.msra.mxu0 0.0
    %1547 = vmatprep.subr.mxu0 0.0
    %1548 = vmatpush1.msra.mxu0 0.0
    %1549 = vmatprep.subr.mxu0 0.0
    %1550 = vmatpush1.msra.mxu0 0.0
    %1551 = vmatprep.subr.mxu0 0.0
    %1552 = vmatpush1.msra.mxu0 0.0
    %1553 = vmatprep.subr.mxu0 0.0
    %1554 = vmatpush1.msra.mxu0 %v461
    %1555 = vmatprep.subr.mxu0 0.0
    %1556 = vmatpush2.msra.mxu0 0.0
    %1557 = vmatprep.subr.mxu0 0.0
    %1558 = vmatpush2.msra.mxu0 0.0
    %1559 = vmatprep.subr.mxu0 0.0
    %1560 = vmatpush2.msra.mxu0 0.0
    %1561 = vmatprep.subr.mxu0 0.0
    %1562 = vmatpush2.msra.mxu0 0.0
    %1563 = vmatprep.subr.mxu0 0.0
    %1564 = vmatpush2.msra.mxu0 0.0
    %1565 = vmatprep.subr.mxu0 0.0
    %1566 = vmatpush2.msra.mxu0 0.0
    %1567 = vmatprep.subr.mxu0 0.0
    %1568 = vmatpush2.msra.mxu0 0.0
    %1569 = vmatprep.subr.mxu0 0.0
    %1570 = vmatpush2.msra.mxu0 0.0
    %1571 = vmatprep.subr.mxu0 0.0
    %1572 = vmatpush2.msra.mxu0 0.0
    %1573 = vmatprep.subr.mxu0 0.0
    %1574 = vmatpush2.msra.mxu0 0.0
    %1575 = vmatprep.subr.mxu0 0.0
    %1576 = vmatpush2.msra.mxu0 0.0
    %1577 = vmatprep.subr.mxu0 0.0
    %1578 = vmatpush2.msra.mxu0 0.0
    %1579 = vmatprep.subr.mxu0 0.0
    %1580 = vmatpush2.msra.mxu0 0.0
    %1581 = vmatprep.subr.mxu0 0.0
    %1582 = vmatpush2.msra.mxu0 0.0
    %1583 = vmatprep.subr.mxu0 0.0
    %1584 = vmatpush2.msra.mxu0 0.0
    %1585 = vmatprep.subr.mxu0 0.0
    %1586 = vmatpush2.msra.mxu0 0.0
    %1587 = vmatprep.mubr.f32.mxu0 0.0
    %1588 = vmatmul.mubr.f32.gmra.mxu0 %v1518
    %v1589 = vpop.f32.mrf.mxu0
    %v1590 = vadd.f32 0.0, %v1589
    %v1591 = vpop.f32.mrf.mxu0
    %1592 = vmatprep.mubr.f32.mxu0 0.0
    %1593 = vmatmul.mubr.f32.gmra.mxu0 %v1521
    %v1594 = vpop.f32.mrf.mxu0
    %v1595 = vadd.f32 0.0, %v1594
    %v1596 = vpop.f32.mrf.mxu0
    %1597 = vdwg.mxu0
    %v1598 = vadd.f32 %v1311, %v1590
    %v1599 = vadd.f32 %v1312, %v1595
    %v1600 = vld [vmem:[%s11] sm:$0x1]
    %v1602 = vlaneseq
    %v1603 = vshrl.u32 %v1602, 7
    %v1604 = vsub.s32 0, %v1603
    %v1605 = vrot.slane %v1600, %v1604
    %v1607 = vadd.f32 %v1598, %v1605
    %v1608 = vadd.f32 %v1599, %v1605
    %v1609 = vadd.f32 %v190, %v1607
    %v1610 = vadd.f32 %v191, %v1608
    %v1611 = vld [vmem:[%s12] sm:$0x1]
    %v1612 = vld [vmem:[%s13] sm:$0x1]
    %v1613 = vsel %vm148, %v1609, 0.0
    %1614 = vadd.xlane.f32.xlu0 %v1613
    %v1615 = vpop.xlane.xlu0 %1614
    %v1616 = vsel %vm148, %v1610, 0.0
    %1617 = vadd.xlane.f32.xlu0 %v1616
    %v1618 = vpop.xlane.xlu0 %1617
    %v1619 = vmul.f32 %v1615, %v155
    %v1620 = vmul.f32 %v1618, %v155
    %v1621 = vsub.f32 %v1609, %v1619
    %v1622 = vsub.f32 %v1610, %v1620
    %v1623 = vmul.f32 %v1621, %v1621
    %v1624 = vmul.f32 %v1622, %v1622
    %v1625 = vsel %vm148, %v1623, 0.0
    %1626 = vadd.xlane.f32.xlu0 %v1625
    %v1627 = vpop.xlane.xlu0 %1626
    %v1628 = vsel %vm148, %v1624, 0.0
    %1629 = vadd.xlane.f32.xlu0 %v1628
    %v1630 = vpop.xlane.xlu0 %1629
    %v1631 = vmul.f32 %v1627, %v155
    %v1632 = vmul.f32 %v1630, %v155
    %v1633 = vadd.f32 %v1631, 1e-12
    %v1634 = vadd.f32 %v1632, 1e-12
    %v1635 = vrsqrt.pop %v1633
    %v1636 = vrsqrt.pop %v1634
    %v1637 = vmul.f32 %v1621, %v1635
    %v1638 = vmul.f32 %v1622, %v1636
    %v1640 = vlaneseq
    %v1641 = vshrl.u32 %v1640, 7
    %v1642 = vsub.s32 0, %v1641
    %v1643 = vrot.slane %v1611, %v1642
    %v1645 = vmul.f32 %v1637, %v1643
    %v1646 = vmul.f32 %v1638, %v1643
    %v1648 = vlaneseq
    %v1649 = vshrl.u32 %v1648, 7
    %v1650 = vsub.s32 0, %v1649
    %v1651 = vrot.slane %v1612, %v1650
    %v1653 = vadd.f32 %v1645, %v1651
    %v1654 = vadd.f32 %v1646, %v1651
    %v1655 = vld [vmem:[#allocation11] sm:$0xff]
    %v1656 = vld [vmem:[#allocation11 + $0x8] sm:$0xff]
    %v1657 = vld [vmem:[#allocation11 + $0x10] sm:$0xff]
    %v1658 = vld [vmem:[#allocation11 + $0x18] sm:$0xff]
    %v1659 = vld [vmem:[%s15] sm:$0x1]
    %v1661 = vlaneseq
    %v1662 = vshrl.u32 %v1661, 7
    %v1663 = vsub.s32 0, %v1662
    %v1664 = vrot.slane %v1659, %v1663
    %v1667 = vsel %vm148, %v1653, 0
    %v1670 = vsel %vm148, %v1654, 0
    %1672 = vmatprep.subr.mxu0 0.0
    %1673 = vmatpush1.msra.mxu0 0.0
    %1674 = vmatprep.subr.mxu0 0.0
    %1675 = vmatpush1.msra.mxu0 0.0
    %1676 = vmatprep.subr.mxu0 0.0
    %1677 = vmatpush1.msra.mxu0 0.0
    %1678 = vmatprep.subr.mxu0 0.0
    %1679 = vmatpush1.msra.mxu0 0.0
    %1680 = vmatprep.subr.mxu0 0.0
    %1681 = vmatpush1.msra.mxu0 0.0
    %1682 = vmatprep.subr.mxu0 0.0
    %1683 = vmatpush1.msra.mxu0 0.0
    %1684 = vmatprep.subr.mxu0 0.0
    %1685 = vmatpush1.msra.mxu0 0.0
    %1686 = vmatprep.subr.mxu0 0.0
    %1687 = vmatpush1.msra.mxu0 0.0
    %1688 = vmatprep.subr.mxu0 0.0
    %1689 = vmatpush1.msra.mxu0 0.0
    %1690 = vmatprep.subr.mxu0 0.0
    %1691 = vmatpush1.msra.mxu0 0.0
    %1692 = vmatprep.subr.mxu0 0.0
    %1693 = vmatpush1.msra.mxu0 0.0
    %1694 = vmatprep.subr.mxu0 0.0
    %1695 = vmatpush1.msra.mxu0 0.0
    %1696 = vmatprep.subr.mxu0 0.0
    %1697 = vmatpush1.msra.mxu0 %v1658
    %1698 = vmatprep.subr.mxu0 0.0
    %1699 = vmatpush1.msra.mxu0 %v1657
    %1700 = vmatprep.subr.mxu0 0.0
    %1701 = vmatpush1.msra.mxu0 %v1656
    %1702 = vmatprep.subr.mxu0 0.0
    %1703 = vmatpush1.msra.mxu0 %v1655
    %1704 = vmatprep.subr.mxu0 0.0
    %1705 = vmatpush2.msra.mxu0 0.0
    %1706 = vmatprep.subr.mxu0 0.0
    %1707 = vmatpush2.msra.mxu0 0.0
    %1708 = vmatprep.subr.mxu0 0.0
    %1709 = vmatpush2.msra.mxu0 0.0
    %1710 = vmatprep.subr.mxu0 0.0
    %1711 = vmatpush2.msra.mxu0 0.0
    %1712 = vmatprep.subr.mxu0 0.0
    %1713 = vmatpush2.msra.mxu0 0.0
    %1714 = vmatprep.subr.mxu0 0.0
    %1715 = vmatpush2.msra.mxu0 0.0
    %1716 = vmatprep.subr.mxu0 0.0
    %1717 = vmatpush2.msra.mxu0 0.0
    %1718 = vmatprep.subr.mxu0 0.0
    %1719 = vmatpush2.msra.mxu0 0.0
    %1720 = vmatprep.subr.mxu0 0.0
    %1721 = vmatpush2.msra.mxu0 0.0
    %1722 = vmatprep.subr.mxu0 0.0
    %1723 = vmatpush2.msra.mxu0 0.0
    %1724 = vmatprep.subr.mxu0 0.0
    %1725 = vmatpush2.msra.mxu0 0.0
    %1726 = vmatprep.subr.mxu0 0.0
    %1727 = vmatpush2.msra.mxu0 0.0
    %1728 = vmatprep.subr.mxu0 0.0
    %1729 = vmatpush2.msra.mxu0 0.0
    %1730 = vmatprep.subr.mxu0 0.0
    %1731 = vmatpush2.msra.mxu0 0.0
    %1732 = vmatprep.subr.mxu0 0.0
    %1733 = vmatpush2.msra.mxu0 0.0
    %1734 = vmatprep.subr.mxu0 0.0
    %1735 = vmatpush2.msra.mxu0 0.0
    %1736 = vmatprep.mubr.f32.mxu0 0.0
    %1737 = vmatmul.mubr.f32.gmra.mxu0 %v1667
    %v1738 = vpop.f32.mrf.mxu0
    %v1739 = vadd.f32 %v1664, %v1738
    %v1740 = vpop.f32.mrf.mxu0
    %1741 = vmatprep.mubr.f32.mxu0 0.0
    %1742 = vmatmul.mubr.f32.gmra.mxu0 %v1670
    %v1743 = vpop.f32.mrf.mxu0
    %v1744 = vadd.f32 %v1664, %v1743
    %v1745 = vpop.f32.mrf.mxu0
    %1746 = vdwg.mxu0
    %v1747 = vmul.f32 %v1739, %v1739
    %v1748 = vmul.f32 %v1744, %v1744
    %v1749 = vmul.f32 %v1739, %v1747
    %v1750 = vmul.f32 %v1744, %v1748
    %v1751 = vmul.f32 %v1749, 0.044715
    %v1752 = vmul.f32 %v1750, 0.044715
    %v1753 = vadd.f32 %v1739, %v1751
    %v1754 = vadd.f32 %v1744, %v1752
    %v1755 = vmul.f32 %v1753, 0.7978846
    %v1756 = vmul.f32 %v1754, 0.7978846
    %v1757 = vtanh.pop %v1755
    %v1758 = vtanh.pop %v1756
    %v1759 = vadd.f32 %v1757, 1.0
    %v1760 = vadd.f32 %v1758, 1.0
    %v1761 = vmul.f32 %v1759, 0.5
    %v1762 = vmul.f32 %v1760, 0.5
    %v1763 = vmul.f32 %v1739, %v1761
    %v1764 = vmul.f32 %v1744, %v1762
    %v1765 = vld [vmem:[%s16] sm:$0xff]
    %v1766 = vld [vmem:[%s16 + $0x8] sm:$0xff]
    %v1767 = vld [vmem:[%s16 + $0x10] sm:$0xff]
    %v1768 = vld [vmem:[%s16 + $0x18] sm:$0xff]
    %v1769 = vld [vmem:[%s16 + $0x20] sm:$0xff]
    %v1770 = vld [vmem:[%s16 + $0x28] sm:$0xff]
    %v1771 = vld [vmem:[%s16 + $0x30] sm:$0xff]
    %v1772 = vld [vmem:[%s16 + $0x38] sm:$0xff]
    %v1773 = vld [vmem:[%s17] sm:$0x1]
    %v1775 = vlaneseq
    %v1776 = vshrl.u32 %v1775, 7
    %v1777 = vsub.s32 0, %v1776
    %v1778 = vrot.slane %v1773, %v1777
    %vm1780 = vcmask 523264
    %v1782 = vsel %vm1780, %v1763, 0
    %v1785 = vsel %vm1780, %v1764, 0
    %1787 = vmatprep.subr.mxu0 0.0
    %1788 = vmatpush1.msra.mxu0 0.0
    %1789 = vmatprep.subr.mxu0 0.0
    %1790 = vmatpush1.msra.mxu0 0.0
    %1791 = vmatprep.subr.mxu0 0.0
    %1792 = vmatpush1.msra.mxu0 0.0
    %1793 = vmatprep.subr.mxu0 0.0
    %1794 = vmatpush1.msra.mxu0 0.0
    %1795 = vmatprep.subr.mxu0 0.0
    %1796 = vmatpush1.msra.mxu0 0.0
    %1797 = vmatprep.subr.mxu0 0.0
    %1798 = vmatpush1.msra.mxu0 0.0
    %1799 = vmatprep.subr.mxu0 0.0
    %1800 = vmatpush1.msra.mxu0 0.0
    %1801 = vmatprep.subr.mxu0 0.0
    %1802 = vmatpush1.msra.mxu0 0.0
    %1803 = vmatprep.subr.mxu0 0.0
    %1804 = vmatpush1.msra.mxu0 %v1772
    %1805 = vmatprep.subr.mxu0 0.0
    %1806 = vmatpush1.msra.mxu0 %v1771
    %1807 = vmatprep.subr.mxu0 0.0
    %1808 = vmatpush1.msra.mxu0 %v1770
    %1809 = vmatprep.subr.mxu0 0.0
    %1810 = vmatpush1.msra.mxu0 %v1769
    %1811 = vmatprep.subr.mxu0 0.0
    %1812 = vmatpush1.msra.mxu0 %v1768
    %1813 = vmatprep.subr.mxu0 0.0
    %1814 = vmatpush1.msra.mxu0 %v1767
    %1815 = vmatprep.subr.mxu0 0.0
    %1816 = vmatpush1.msra.mxu0 %v1766
    %1817 = vmatprep.subr.mxu0 0.0
    %1818 = vmatpush1.msra.mxu0 %v1765
    %1819 = vmatprep.subr.mxu0 0.0
    %1820 = vmatpush2.msra.mxu0 0.0
    %1821 = vmatprep.subr.mxu0 0.0
    %1822 = vmatpush2.msra.mxu0 0.0
    %1823 = vmatprep.subr.mxu0 0.0
    %1824 = vmatpush2.msra.mxu0 0.0
    %1825 = vmatprep.subr.mxu0 0.0
    %1826 = vmatpush2.msra.mxu0 0.0
    %1827 = vmatprep.subr.mxu0 0.0
    %1828 = vmatpush2.msra.mxu0 0.0
    %1829 = vmatprep.subr.mxu0 0.0
    %1830 = vmatpush2.msra.mxu0 0.0
    %1831 = vmatprep.subr.mxu0 0.0
    %1832 = vmatpush2.msra.mxu0 0.0
    %1833 = vmatprep.subr.mxu0 0.0
    %1834 = vmatpush2.msra.mxu0 0.0
    %1835 = vmatprep.subr.mxu0 0.0
    %1836 = vmatpush2.msra.mxu0 0.0
    %1837 = vmatprep.subr.mxu0 0.0
    %1838 = vmatpush2.msra.mxu0 0.0
    %1839 = vmatprep.subr.mxu0 0.0
    %1840 = vmatpush2.msra.mxu0 0.0
    %1841 = vmatprep.subr.mxu0 0.0
    %1842 = vmatpush2.msra.mxu0 0.0
    %1843 = vmatprep.subr.mxu0 0.0
    %1844 = vmatpush2.msra.mxu0 0.0
    %1845 = vmatprep.subr.mxu0 0.0
    %1846 = vmatpush2.msra.mxu0 0.0
    %1847 = vmatprep.subr.mxu0 0.0
    %1848 = vmatpush2.msra.mxu0 0.0
    %1849 = vmatprep.subr.mxu0 0.0
    %1850 = vmatpush2.msra.mxu0 0.0
    %1851 = vmatprep.mubr.f32.mxu0 0.0
    %1852 = vmatmul.mubr.f32.gmra.mxu0 %v1782
    %v1853 = vpop.f32.mrf.mxu0
    %v1854 = vadd.f32 %v1778, %v1853
    %v1855 = vpop.f32.mrf.mxu0
    %1856 = vmatprep.mubr.f32.mxu0 0.0
    %1857 = vmatmul.mubr.f32.gmra.mxu0 %v1785
    %v1858 = vpop.f32.mrf.mxu0
    %v1859 = vadd.f32 %v1778, %v1858
    %v1860 = vpop.f32.mrf.mxu0
    %1861 = vdwg.mxu0
    %v1862 = vadd.f32 %v1653, %v1854
    %v1863 = vadd.f32 %v1654, %v1859
    %v1864 = vld [vmem:[%s18] sm:$0x1]
    %v1865 = vld [vmem:[%s19] sm:$0x1]
    %v1866 = vsel %vm148, %v1862, 0.0
    %1867 = vadd.xlane.f32.xlu0 %v1866
    %v1868 = vpop.xlane.xlu0 %1867
    %v1869 = vsel %vm148, %v1863, 0.0
    %1870 = vadd.xlane.f32.xlu0 %v1869
    %v1871 = vpop.xlane.xlu0 %1870
    %v1872 = vmul.f32 %v1868, %v155
    %v1873 = vmul.f32 %v1871, %v155
    %v1874 = vsub.f32 %v1862, %v1872
    %v1875 = vsub.f32 %v1863, %v1873
    %v1876 = vmul.f32 %v1874, %v1874
    %v1877 = vmul.f32 %v1875, %v1875
    %v1878 = vsel %vm148, %v1876, 0.0
    %1879 = vadd.xlane.f32.xlu0 %v1878
    %v1880 = vpop.xlane.xlu0 %1879
    %v1881 = vsel %vm148, %v1877, 0.0
    %1882 = vadd.xlane.f32.xlu0 %v1881
    %v1883 = vpop.xlane.xlu0 %1882
    %v1884 = vmul.f32 %v1880, %v155
    %v1885 = vmul.f32 %v1883, %v155
    %v1886 = vadd.f32 %v1884, 1e-12
    %v1887 = vadd.f32 %v1885, 1e-12
    %v1888 = vrsqrt.pop %v1886
    %v1889 = vrsqrt.pop %v1887
    %v1890 = vmul.f32 %v1874, %v1888
    %v1891 = vmul.f32 %v1875, %v1889
    %v1893 = vlaneseq
    %v1894 = vshrl.u32 %v1893, 7
    %v1895 = vsub.s32 0, %v1894
    %v1896 = vrot.slane %v1864, %v1895
    %v1898 = vmul.f32 %v1890, %v1896
    %v1899 = vmul.f32 %v1891, %v1896
    %v1901 = vlaneseq
    %v1902 = vshrl.u32 %v1901, 7
    %v1903 = vsub.s32 0, %v1902
    %v1904 = vrot.slane %v1865, %v1903
    %v1906 = vadd.f32 %v1898, %v1904
    %v1907 = vadd.f32 %v1899, %v1904
    %s1908 = scalar_lea.vmem %s4, 32
    %v1909 = vld [vmem:[%s1908] sm:$0xff]
    %v1910 = vld [vmem:[%s1908 + $0x8] sm:$0xff]
    %v1911 = vld [vmem:[%s1908 + $0x10] sm:$0xff]
    %v1912 = vld [vmem:[%s1908 + $0x18] sm:$0xff]
    %s1913 = scalar_lea.vmem %s5, 1
    %v1914 = vld [vmem:[%s1913] sm:$0x1]
    %v1916 = vlaneseq
    %v1917 = vshrl.u32 %v1916, 7
    %v1918 = vsub.s32 0, %v1917
    %v1919 = vrot.slane %v1914, %v1918
    %v1922 = vsel %vm148, %v1906, 0
    %v1925 = vsel %vm148, %v1907, 0
    %1927 = vmatprep.subr.mxu0 0.0
    %1928 = vmatpush1.msra.mxu0 0.0
    %1929 = vmatprep.subr.mxu0 0.0
    %1930 = vmatpush1.msra.mxu0 0.0
    %1931 = vmatprep.subr.mxu0 0.0
    %1932 = vmatpush1.msra.mxu0 0.0
    %1933 = vmatprep.subr.mxu0 0.0
    %1934 = vmatpush1.msra.mxu0 0.0
    %1935 = vmatprep.subr.mxu0 0.0
    %1936 = vmatpush1.msra.mxu0 0.0
    %1937 = vmatprep.subr.mxu0 0.0
    %1938 = vmatpush1.msra.mxu0 0.0
    %1939 = vmatprep.subr.mxu0 0.0
    %1940 = vmatpush1.msra.mxu0 0.0
    %1941 = vmatprep.subr.mxu0 0.0
    %1942 = vmatpush1.msra.mxu0 0.0
    %1943 = vmatprep.subr.mxu0 0.0
    %1944 = vmatpush1.msra.mxu0 0.0
    %1945 = vmatprep.subr.mxu0 0.0
    %1946 = vmatpush1.msra.mxu0 0.0
    %1947 = vmatprep.subr.mxu0 0.0
    %1948 = vmatpush1.msra.mxu0 0.0
    %1949 = vmatprep.subr.mxu0 0.0
    %1950 = vmatpush1.msra.mxu0 0.0
    %1951 = vmatprep.subr.mxu0 0.0
    %1952 = vmatpush1.msra.mxu0 %v1912
    %1953 = vmatprep.subr.mxu0 0.0
    %1954 = vmatpush1.msra.mxu0 %v1911
    %1955 = vmatprep.subr.mxu0 0.0
    %1956 = vmatpush1.msra.mxu0 %v1910
    %1957 = vmatprep.subr.mxu0 0.0
    %1958 = vmatpush1.msra.mxu0 %v1909
    %1959 = vmatprep.subr.mxu0 0.0
    %1960 = vmatpush2.msra.mxu0 0.0
    %1961 = vmatprep.subr.mxu0 0.0
    %1962 = vmatpush2.msra.mxu0 0.0
    %1963 = vmatprep.subr.mxu0 0.0
    %1964 = vmatpush2.msra.mxu0 0.0
    %1965 = vmatprep.subr.mxu0 0.0
    %1966 = vmatpush2.msra.mxu0 0.0
    %1967 = vmatprep.subr.mxu0 0.0
    %1968 = vmatpush2.msra.mxu0 0.0
    %1969 = vmatprep.subr.mxu0 0.0
    %1970 = vmatpush2.msra.mxu0 0.0
    %1971 = vmatprep.subr.mxu0 0.0
    %1972 = vmatpush2.msra.mxu0 0.0
    %1973 = vmatprep.subr.mxu0 0.0
    %1974 = vmatpush2.msra.mxu0 0.0
    %1975 = vmatprep.subr.mxu0 0.0
    %1976 = vmatpush2.msra.mxu0 0.0
    %1977 = vmatprep.subr.mxu0 0.0
    %1978 = vmatpush2.msra.mxu0 0.0
    %1979 = vmatprep.subr.mxu0 0.0
    %1980 = vmatpush2.msra.mxu0 0.0
    %1981 = vmatprep.subr.mxu0 0.0
    %1982 = vmatpush2.msra.mxu0 0.0
    %1983 = vmatprep.subr.mxu0 0.0
    %1984 = vmatpush2.msra.mxu0 0.0
    %1985 = vmatprep.subr.mxu0 0.0
    %1986 = vmatpush2.msra.mxu0 0.0
    %1987 = vmatprep.subr.mxu0 0.0
    %1988 = vmatpush2.msra.mxu0 0.0
    %1989 = vmatprep.subr.mxu0 0.0
    %1990 = vmatpush2.msra.mxu0 0.0
    %1991 = vmatprep.mubr.f32.mxu0 0.0
    %1992 = vmatmul.mubr.f32.gmra.mxu0 %v1922
    %v1993 = vpop.f32.mrf.mxu0
    %v1994 = vadd.f32 %v1919, %v1993
    %v1995 = vpop.f32.mrf.mxu0
    %1996 = vmatprep.mubr.f32.mxu0 0.0
    %1997 = vmatmul.mubr.f32.gmra.mxu0 %v1925
    %v1998 = vpop.f32.mrf.mxu0
    %v1999 = vadd.f32 %v1919, %v1998
    %v2000 = vpop.f32.mrf.mxu0
    %2001 = vdwg.mxu0
    %s2002 = scalar_lea.vmem %s6, 32
    %v2003 = vld [vmem:[%s2002] sm:$0xff]
    %v2004 = vld [vmem:[%s2002 + $0x8] sm:$0xff]
    %v2005 = vld [vmem:[%s2002 + $0x10] sm:$0xff]
    %v2006 = vld [vmem:[%s2002 + $0x18] sm:$0xff]
    %s2007 = scalar_lea.vmem %s7, 1
    %v2008 = vld [vmem:[%s2007] sm:$0x1]
    %v2010 = vlaneseq
    %v2011 = vshrl.u32 %v2010, 7
    %v2012 = vsub.s32 0, %v2011
    %v2013 = vrot.slane %v2008, %v2012
    %2015 = vmatprep.subr.mxu0 0.0
    %2016 = vmatpush1.msra.mxu0 0.0
    %2017 = vmatprep.subr.mxu0 0.0
    %2018 = vmatpush1.msra.mxu0 0.0
    %2019 = vmatprep.subr.mxu0 0.0
    %2020 = vmatpush1.msra.mxu0 0.0
    %2021 = vmatprep.subr.mxu0 0.0
    %2022 = vmatpush1.msra.mxu0 0.0
    %2023 = vmatprep.subr.mxu0 0.0
    %2024 = vmatpush1.msra.mxu0 0.0
    %2025 = vmatprep.subr.mxu0 0.0
    %2026 = vmatpush1.msra.mxu0 0.0
    %2027 = vmatprep.subr.mxu0 0.0
    %2028 = vmatpush1.msra.mxu0 0.0
    %2029 = vmatprep.subr.mxu0 0.0
    %2030 = vmatpush1.msra.mxu0 0.0
    %2031 = vmatprep.subr.mxu0 0.0
    %2032 = vmatpush1.msra.mxu0 0.0
    %2033 = vmatprep.subr.mxu0 0.0
    %2034 = vmatpush1.msra.mxu0 0.0
    %2035 = vmatprep.subr.mxu0 0.0
    %2036 = vmatpush1.msra.mxu0 0.0
    %2037 = vmatprep.subr.mxu0 0.0
    %2038 = vmatpush1.msra.mxu0 0.0
    %2039 = vmatprep.subr.mxu0 0.0
    %2040 = vmatpush1.msra.mxu0 %v2006
    %2041 = vmatprep.subr.mxu0 0.0
    %2042 = vmatpush1.msra.mxu0 %v2005
    %2043 = vmatprep.subr.mxu0 0.0
    %2044 = vmatpush1.msra.mxu0 %v2004
    %2045 = vmatprep.subr.mxu0 0.0
    %2046 = vmatpush1.msra.mxu0 %v2003
    %2047 = vmatprep.subr.mxu0 0.0
    %2048 = vmatpush2.msra.mxu0 0.0
    %2049 = vmatprep.subr.mxu0 0.0
    %2050 = vmatpush2.msra.mxu0 0.0
    %2051 = vmatprep.subr.mxu0 0.0
    %2052 = vmatpush2.msra.mxu0 0.0
    %2053 = vmatprep.subr.mxu0 0.0
    %2054 = vmatpush2.msra.mxu0 0.0
    %2055 = vmatprep.subr.mxu0 0.0
    %2056 = vmatpush2.msra.mxu0 0.0
    %2057 = vmatprep.subr.mxu0 0.0
    %2058 = vmatpush2.msra.mxu0 0.0
    %2059 = vmatprep.subr.mxu0 0.0
    %2060 = vmatpush2.msra.mxu0 0.0
    %2061 = vmatprep.subr.mxu0 0.0
    %2062 = vmatpush2.msra.mxu0 0.0
    %2063 = vmatprep.subr.mxu0 0.0
    %2064 = vmatpush2.msra.mxu0 0.0
    %2065 = vmatprep.subr.mxu0 0.0
    %2066 = vmatpush2.msra.mxu0 0.0
    %2067 = vmatprep.subr.mxu0 0.0
    %2068 = vmatpush2.msra.mxu0 0.0
    %2069 = vmatprep.subr.mxu0 0.0
    %2070 = vmatpush2.msra.mxu0 0.0
    %2071 = vmatprep.subr.mxu0 0.0
    %2072 = vmatpush2.msra.mxu0 0.0
    %2073 = vmatprep.subr.mxu0 0.0
    %2074 = vmatpush2.msra.mxu0 0.0
    %2075 = vmatprep.subr.mxu0 0.0
    %2076 = vmatpush2.msra.mxu0 0.0
    %2077 = vmatprep.subr.mxu0 0.0
    %2078 = vmatpush2.msra.mxu0 0.0
    %2079 = vmatprep.mubr.f32.mxu0 0.0
    %2080 = vmatmul.mubr.f32.gmra.mxu0 %v1922
    %v2081 = vpop.f32.mrf.mxu0
    %v2082 = vadd.f32 %v2013, %v2081
    %v2083 = vpop.f32.mrf.mxu0
    %2084 = vmatprep.mubr.f32.mxu0 0.0
    %2085 = vmatmul.mubr.f32.gmra.mxu0 %v1925
    %v2086 = vpop.f32.mrf.mxu0
    %v2087 = vadd.f32 %v2013, %v2086
    %v2088 = vpop.f32.mrf.mxu0
    %2089 = vdwg.mxu0
    %s2090 = scalar_lea.vmem %s8, 32
    %v2091 = vld [vmem:[%s2090] sm:$0xff]
    %v2092 = vld [vmem:[%s2090 + $0x8] sm:$0xff]
    %v2093 = vld [vmem:[%s2090 + $0x10] sm:$0xff]
    %v2094 = vld [vmem:[%s2090 + $0x18] sm:$0xff]
    %s2095 = scalar_lea.vmem %s9, 1
    %v2096 = vld [vmem:[%s2095] sm:$0x1]
    %v2098 = vlaneseq
    %v2099 = vshrl.u32 %v2098, 7
    %v2100 = vsub.s32 0, %v2099
    %v2101 = vrot.slane %v2096, %v2100
    %2103 = vmatprep.subr.mxu0 0.0
    %2104 = vmatpush1.msra.mxu0 0.0
    %2105 = vmatprep.subr.mxu0 0.0
    %2106 = vmatpush1.msra.mxu0 0.0
    %2107 = vmatprep.subr.mxu0 0.0
    %2108 = vmatpush1.msra.mxu0 0.0
    %2109 = vmatprep.subr.mxu0 0.0
    %2110 = vmatpush1.msra.mxu0 0.0
    %2111 = vmatprep.subr.mxu0 0.0
    %2112 = vmatpush1.msra.mxu0 0.0
    %2113 = vmatprep.subr.mxu0 0.0
    %2114 = vmatpush1.msra.mxu0 0.0
    %2115 = vmatprep.subr.mxu0 0.0
    %2116 = vmatpush1.msra.mxu0 0.0
    %2117 = vmatprep.subr.mxu0 0.0
    %2118 = vmatpush1.msra.mxu0 0.0
    %2119 = vmatprep.subr.mxu0 0.0
    %2120 = vmatpush1.msra.mxu0 0.0
    %2121 = vmatprep.subr.mxu0 0.0
    %2122 = vmatpush1.msra.mxu0 0.0
    %2123 = vmatprep.subr.mxu0 0.0
    %2124 = vmatpush1.msra.mxu0 0.0
    %2125 = vmatprep.subr.mxu0 0.0
    %2126 = vmatpush1.msra.mxu0 0.0
    %2127 = vmatprep.subr.mxu0 0.0
    %2128 = vmatpush1.msra.mxu0 %v2094
    %2129 = vmatprep.subr.mxu0 0.0
    %2130 = vmatpush1.msra.mxu0 %v2093
    %2131 = vmatprep.subr.mxu0 0.0
    %2132 = vmatpush1.msra.mxu0 %v2092
    %2133 = vmatprep.subr.mxu0 0.0
    %2134 = vmatpush1.msra.mxu0 %v2091
    %2135 = vmatprep.subr.mxu0 0.0
    %2136 = vmatpush2.msra.mxu0 0.0
    %2137 = vmatprep.subr.mxu0 0.0
    %2138 = vmatpush2.msra.mxu0 0.0
    %2139 = vmatprep.subr.mxu0 0.0
    %2140 = vmatpush2.msra.mxu0 0.0
    %2141 = vmatprep.subr.mxu0 0.0
    %2142 = vmatpush2.msra.mxu0 0.0
    %2143 = vmatprep.subr.mxu0 0.0
    %2144 = vmatpush2.msra.mxu0 0.0
    %2145 = vmatprep.subr.mxu0 0.0
    %2146 = vmatpush2.msra.mxu0 0.0
    %2147 = vmatprep.subr.mxu0 0.0
    %2148 = vmatpush2.msra.mxu0 0.0
    %2149 = vmatprep.subr.mxu0 0.0
    %2150 = vmatpush2.msra.mxu0 0.0
    %2151 = vmatprep.subr.mxu0 0.0
    %2152 = vmatpush2.msra.mxu0 0.0
    %2153 = vmatprep.subr.mxu0 0.0
    %2154 = vmatpush2.msra.mxu0 0.0
    %2155 = vmatprep.subr.mxu0 0.0
    %2156 = vmatpush2.msra.mxu0 0.0
    %2157 = vmatprep.subr.mxu0 0.0
    %2158 = vmatpush2.msra.mxu0 0.0
    %2159 = vmatprep.subr.mxu0 0.0
    %2160 = vmatpush2.msra.mxu0 0.0
    %2161 = vmatprep.subr.mxu0 0.0
    %2162 = vmatpush2.msra.mxu0 0.0
    %2163 = vmatprep.subr.mxu0 0.0
    %2164 = vmatpush2.msra.mxu0 0.0
    %2165 = vmatprep.subr.mxu0 0.0
    %2166 = vmatpush2.msra.mxu0 0.0
    %2167 = vmatprep.mubr.f32.mxu0 0.0
    %2168 = vmatmul.mubr.f32.gmra.mxu0 %v1922
    %v2169 = vpop.f32.mrf.mxu0
    %v2170 = vadd.f32 %v2101, %v2169
    %v2171 = vpop.f32.mrf.mxu0
    %2172 = vmatprep.mubr.f32.mxu0 0.0
    %2173 = vmatmul.mubr.f32.gmra.mxu0 %v1925
    %v2174 = vpop.f32.mrf.mxu0
    %v2175 = vadd.f32 %v2101, %v2174
    %v2176 = vpop.f32.mrf.mxu0
    %2177 = vdwg.mxu0
    %s2178 = scalar_lea.vmem [#allocation10], 32
    %v2179 = vld [vmem:[%s2178] sm:$0xff]
    %v2180 = vld [vmem:[%s2178 + $0x8] sm:$0xff]
    %v2181 = vld [vmem:[%s2178 + $0x10] sm:$0xff]
    %v2182 = vld [vmem:[%s2178 + $0x18] sm:$0xff]
    %v2184 = vsel %vm462, %v1994, 0
    %v2187 = vsel %vm462, %v1999, 0
    %v2190 = vsel %vm462, %v2082, 0
    %v2193 = vsel %vm462, %v2087, 0
    %2195 = vmatprep.subr.mxu0 0.0
    %2196 = vmatpush1.xpose.msra.mxu0 0.0
    %2197 = vmatprep.subr.mxu0 0.0
    %2198 = vmatpush1.xpose.msra.mxu0 0.0
    %2199 = vmatprep.subr.mxu0 0.0
    %2200 = vmatpush1.xpose.msra.mxu0 0.0
    %2201 = vmatprep.subr.mxu0 0.0
    %2202 = vmatpush1.xpose.msra.mxu0 0.0
    %2203 = vmatprep.subr.mxu0 0.0
    %2204 = vmatpush1.xpose.msra.mxu0 0.0
    %2205 = vmatprep.subr.mxu0 0.0
    %2206 = vmatpush1.xpose.msra.mxu0 0.0
    %2207 = vmatprep.subr.mxu0 0.0
    %2208 = vmatpush1.xpose.msra.mxu0 0.0
    %2209 = vmatprep.subr.mxu0 0.0
    %2210 = vmatpush1.xpose.msra.mxu0 0.0
    %2211 = vmatprep.subr.mxu0 0.0
    %2212 = vmatpush1.xpose.msra.mxu0 0.0
    %2213 = vmatprep.subr.mxu0 0.0
    %2214 = vmatpush1.xpose.msra.mxu0 0.0
    %2215 = vmatprep.subr.mxu0 0.0
    %2216 = vmatpush1.xpose.msra.mxu0 0.0
    %2217 = vmatprep.subr.mxu0 0.0
    %2218 = vmatpush1.xpose.msra.mxu0 0.0
    %2219 = vmatprep.subr.mxu0 0.0
    %2220 = vmatpush1.xpose.msra.mxu0 0.0
    %2221 = vmatprep.subr.mxu0 0.0
    %2222 = vmatpush1.xpose.msra.mxu0 0.0
    %2223 = vmatprep.subr.mxu0 0.0
    %2224 = vmatpush1.xpose.msra.mxu0 %v2193
    %2225 = vmatprep.subr.mxu0 0.0
    %2226 = vmatpush1.xpose.msra.mxu0 %v2190
    %2227 = vmatprep.subr.mxu0 0.0
    %2228 = vmatpush2.xpose.msra.mxu0 0.0
    %2229 = vmatprep.subr.mxu0 0.0
    %2230 = vmatpush2.xpose.msra.mxu0 0.0
    %2231 = vmatprep.subr.mxu0 0.0
    %2232 = vmatpush2.xpose.msra.mxu0 0.0
    %2233 = vmatprep.subr.mxu0 0.0
    %2234 = vmatpush2.xpose.msra.mxu0 0.0
    %2235 = vmatprep.subr.mxu0 0.0
    %2236 = vmatpush2.xpose.msra.mxu0 0.0
    %2237 = vmatprep.subr.mxu0 0.0
    %2238 = vmatpush2.xpose.msra.mxu0 0.0
    %2239 = vmatprep.subr.mxu0 0.0
    %2240 = vmatpush2.xpose.msra.mxu0 0.0
    %2241 = vmatprep.subr.mxu0 0.0
    %2242 = vmatpush2.xpose.msra.mxu0 0.0
    %2243 = vmatprep.subr.mxu0 0.0
    %2244 = vmatpush2.xpose.msra.mxu0 0.0
    %2245 = vmatprep.subr.mxu0 0.0
    %2246 = vmatpush2.xpose.msra.mxu0 0.0
    %2247 = vmatprep.subr.mxu0 0.0
    %2248 = vmatpush2.xpose.msra.mxu0 0.0
    %2249 = vmatprep.subr.mxu0 0.0
    %2250 = vmatpush2.xpose.msra.mxu0 0.0
    %2251 = vmatprep.subr.mxu0 0.0
    %2252 = vmatpush2.xpose.msra.mxu0 0.0
    %2253 = vmatprep.subr.mxu0 0.0
    %2254 = vmatpush2.xpose.msra.mxu0 0.0
    %2255 = vmatprep.subr.mxu0 0.0
    %2256 = vmatpush2.xpose.msra.mxu0 0.0
    %2257 = vmatprep.subr.mxu0 0.0
    %2258 = vmatpush2.xpose.msra.mxu0 0.0
    %2259 = vmatprep.mubr.f32.mxu0 0.0
    %2260 = vmatmul.mubr.f32.gmra.mxu0 %v2184
    %v2261 = vpop.f32.mrf.mxu0
    %v2262 = vadd.f32 0.0, %v2261
    %v2263 = vpop.f32.mrf.mxu0
    %2264 = vmatprep.mubr.f32.mxu0 0.0
    %2265 = vmatmul.mubr.f32.gmra.mxu0 %v2187
    %v2266 = vpop.f32.mrf.mxu0
    %v2267 = vadd.f32 0.0, %v2266
    %v2268 = vpop.f32.mrf.mxu0
    %2269 = vdwg.mxu0
    %v2270 = vmul.f32 %v2262, 0.35355338
    %v2271 = vmul.f32 %v2267, 0.35355338
    %v2272 = vadd.f32 %v2270, %v192
    %v2273 = vadd.f32 %v2271, %v193
    %v2274 = vsel %vm554, %v2272, -inf
    %2275 = vmax.xlane.f32.xlu0 %v2274
    %v2276 = vpop.xlane.xlu0 %2275
    %v2277 = vsel %vm554, %v2273, -inf
    %2278 = vmax.xlane.f32.xlu0 %v2277
    %v2279 = vpop.xlane.xlu0 %2278
    %v2280 = vsub.f32 %v2272, %v2276
    %v2281 = vsub.f32 %v2273, %v2279
    %v2282 = vmul.f32 %v2280, 1.442695
    %v2283 = vpow.pop %v2282
    %v2284 = vmul.f32 %v2281, 1.442695
    %v2285 = vpow.pop %v2284
    %v2286 = vsel %vm554, %v2283, 0.0
    %2287 = vadd.xlane.f32.xlu0 %v2286
    %v2288 = vpop.xlane.xlu0 %2287
    %v2289 = vsel %vm554, %v2285, 0.0
    %2290 = vadd.xlane.f32.xlu0 %v2289
    %v2291 = vpop.xlane.xlu0 %2290
    %v2292 = vrcp.pop %v2288
    %v2293 = vrcp.pop %v2291
    %v2294 = vmul.f32 %v2283, %v2292
    %v2295 = vmul.f32 %v2285, %v2293
    %v2297 = vsel %vm554, %v2294, 0
    %v2300 = vsel %vm554, %v2295, 0
    %2302 = vmatprep.subr.mxu0 0.0
    %2303 = vmatpush1.msra.mxu0 0.0
    %2304 = vmatprep.subr.mxu0 0.0
    %2305 = vmatpush1.msra.mxu0 0.0
    %2306 = vmatprep.subr.mxu0 0.0
    %2307 = vmatpush1.msra.mxu0 0.0
    %2308 = vmatprep.subr.mxu0 0.0
    %2309 = vmatpush1.msra.mxu0 0.0
    %2310 = vmatprep.subr.mxu0 0.0
    %2311 = vmatpush1.msra.mxu0 0.0
    %2312 = vmatprep.subr.mxu0 0.0
    %2313 = vmatpush1.msra.mxu0 0.0
    %2314 = vmatprep.subr.mxu0 0.0
    %2315 = vmatpush1.msra.mxu0 0.0
    %2316 = vmatprep.subr.mxu0 0.0
    %2317 = vmatpush1.msra.mxu0 0.0
    %2318 = vmatprep.subr.mxu0 0.0
    %2319 = vmatpush1.msra.mxu0 0.0
    %2320 = vmatprep.subr.mxu0 0.0
    %2321 = vmatpush1.msra.mxu0 0.0
    %2322 = vmatprep.subr.mxu0 0.0
    %2323 = vmatpush1.msra.mxu0 0.0
    %2324 = vmatprep.subr.mxu0 0.0
    %2325 = vmatpush1.msra.mxu0 0.0
    %2326 = vmatprep.subr.mxu0 0.0
    %2327 = vmatpush1.msra.mxu0 0.0
    %2328 = vmatprep.subr.mxu0 0.0
    %2329 = vmatpush1.msra.mxu0 0.0
    %2330 = vmatprep.subr.mxu0 0.0
    %2331 = vmatpush1.msra.mxu0 %v2175
    %2332 = vmatprep.subr.mxu0 0.0
    %2333 = vmatpush1.msra.mxu0 %v2170
    %2334 = vmatprep.subr.mxu0 0.0
    %2335 = vmatpush2.msra.mxu0 0.0
    %2336 = vmatprep.subr.mxu0 0.0
    %2337 = vmatpush2.msra.mxu0 0.0
    %2338 = vmatprep.subr.mxu0 0.0
    %2339 = vmatpush2.msra.mxu0 0.0
    %2340 = vmatprep.subr.mxu0 0.0
    %2341 = vmatpush2.msra.mxu0 0.0
    %2342 = vmatprep.subr.mxu0 0.0
    %2343 = vmatpush2.msra.mxu0 0.0
    %2344 = vmatprep.subr.mxu0 0.0
    %2345 = vmatpush2.msra.mxu0 0.0
    %2346 = vmatprep.subr.mxu0 0.0
    %2347 = vmatpush2.msra.mxu0 0.0
    %2348 = vmatprep.subr.mxu0 0.0
    %2349 = vmatpush2.msra.mxu0 0.0
    %2350 = vmatprep.subr.mxu0 0.0
    %2351 = vmatpush2.msra.mxu0 0.0
    %2352 = vmatprep.subr.mxu0 0.0
    %2353 = vmatpush2.msra.mxu0 0.0
    %2354 = vmatprep.subr.mxu0 0.0
    %2355 = vmatpush2.msra.mxu0 0.0
    %2356 = vmatprep.subr.mxu0 0.0
    %2357 = vmatpush2.msra.mxu0 0.0
    %2358 = vmatprep.subr.mxu0 0.0
    %2359 = vmatpush2.msra.mxu0 0.0
    %2360 = vmatprep.subr.mxu0 0.0
    %2361 = vmatpush2.msra.mxu0 0.0
    %2362 = vmatprep.subr.mxu0 0.0
    %2363 = vmatpush2.msra.mxu0 0.0
    %2364 = vmatprep.subr.mxu0 0.0
    %2365 = vmatpush2.msra.mxu0 0.0
    %2366 = vmatprep.mubr.f32.mxu0 0.0
    %2367 = vmatmul.mubr.f32.gmra.mxu0 %v2297
    %v2368 = vpop.f32.mrf.mxu0
    %v2369 = vadd.f32 0.0, %v2368
    %v2370 = vpop.f32.mrf.mxu0
    %2371 = vmatprep.mubr.f32.mxu0 0.0
    %2372 = vmatmul.mubr.f32.gmra.mxu0 %v2300
    %v2373 = vpop.f32.mrf.mxu0
    %v2374 = vadd.f32 0.0, %v2373
    %v2375 = vpop.f32.mrf.mxu0
    %2376 = vdwg.mxu0
    %2377 = vrot.lane.b32.xlu0 %v1994, 120
    %v2378 = vpop.permute.xlu0 %2377
    %2379 = vrot.lane.b32.xlu0 %v1999, 120
    %v2380 = vpop.permute.xlu0 %2379
    %2381 = vrot.lane.b32.xlu0 %v2082, 120
    %v2382 = vpop.permute.xlu0 %2381
    %2383 = vrot.lane.b32.xlu0 %v2087, 120
    %v2384 = vpop.permute.xlu0 %2383
    %v2385 = vsel %vm462, %v2378, 0
    %v2387 = vsel %vm462, %v2380, 0
    %v2389 = vsel %vm462, %v2382, 0
    %v2391 = vsel %vm462, %v2384, 0
    %2393 = vmatprep.subr.mxu0 0.0
    %2394 = vmatpush1.xpose.msra.mxu0 0.0
    %2395 = vmatprep.subr.mxu0 0.0
    %2396 = vmatpush1.xpose.msra.mxu0 0.0
    %2397 = vmatprep.subr.mxu0 0.0
    %2398 = vmatpush1.xpose.msra.mxu0 0.0
    %2399 = vmatprep.subr.mxu0 0.0
    %2400 = vmatpush1.xpose.msra.mxu0 0.0
    %2401 = vmatprep.subr.mxu0 0.0
    %2402 = vmatpush1.xpose.msra.mxu0 0.0
    %2403 = vmatprep.subr.mxu0 0.0
    %2404 = vmatpush1.xpose.msra.mxu0 0.0
    %2405 = vmatprep.subr.mxu0 0.0
    %2406 = vmatpush1.xpose.msra.mxu0 0.0
    %2407 = vmatprep.subr.mxu0 0.0
    %2408 = vmatpush1.xpose.msra.mxu0 0.0
    %2409 = vmatprep.subr.mxu0 0.0
    %2410 = vmatpush1.xpose.msra.mxu0 0.0
    %2411 = vmatprep.subr.mxu0 0.0
    %2412 = vmatpush1.xpose.msra.mxu0 0.0
    %2413 = vmatprep.subr.mxu0 0.0
    %2414 = vmatpush1.xpose.msra.mxu0 0.0
    %2415 = vmatprep.subr.mxu0 0.0
    %2416 = vmatpush1.xpose.msra.mxu0 0.0
    %2417 = vmatprep.subr.mxu0 0.0
    %2418 = vmatpush1.xpose.msra.mxu0 0.0
    %2419 = vmatprep.subr.mxu0 0.0
    %2420 = vmatpush1.xpose.msra.mxu0 0.0
    %2421 = vmatprep.subr.mxu0 0.0
    %2422 = vmatpush1.xpose.msra.mxu0 %v2391
    %2423 = vmatprep.subr.mxu0 0.0
    %2424 = vmatpush1.xpose.msra.mxu0 %v2389
    %2425 = vmatprep.subr.mxu0 0.0
    %2426 = vmatpush2.xpose.msra.mxu0 0.0
    %2427 = vmatprep.subr.mxu0 0.0
    %2428 = vmatpush2.xpose.msra.mxu0 0.0
    %2429 = vmatprep.subr.mxu0 0.0
    %2430 = vmatpush2.xpose.msra.mxu0 0.0
    %2431 = vmatprep.subr.mxu0 0.0
    %2432 = vmatpush2.xpose.msra.mxu0 0.0
    %2433 = vmatprep.subr.mxu0 0.0
    %2434 = vmatpush2.xpose.msra.mxu0 0.0
    %2435 = vmatprep.subr.mxu0 0.0
    %2436 = vmatpush2.xpose.msra.mxu0 0.0
    %2437 = vmatprep.subr.mxu0 0.0
    %2438 = vmatpush2.xpose.msra.mxu0 0.0
    %2439 = vmatprep.subr.mxu0 0.0
    %2440 = vmatpush2.xpose.msra.mxu0 0.0
    %2441 = vmatprep.subr.mxu0 0.0
    %2442 = vmatpush2.xpose.msra.mxu0 0.0
    %2443 = vmatprep.subr.mxu0 0.0
    %2444 = vmatpush2.xpose.msra.mxu0 0.0
    %2445 = vmatprep.subr.mxu0 0.0
    %2446 = vmatpush2.xpose.msra.mxu0 0.0
    %2447 = vmatprep.subr.mxu0 0.0
    %2448 = vmatpush2.xpose.msra.mxu0 0.0
    %2449 = vmatprep.subr.mxu0 0.0
    %2450 = vmatpush2.xpose.msra.mxu0 0.0
    %2451 = vmatprep.subr.mxu0 0.0
    %2452 = vmatpush2.xpose.msra.mxu0 0.0
    %2453 = vmatprep.subr.mxu0 0.0
    %2454 = vmatpush2.xpose.msra.mxu0 0.0
    %2455 = vmatprep.subr.mxu0 0.0
    %2456 = vmatpush2.xpose.msra.mxu0 0.0
    %2457 = vmatprep.mubr.f32.mxu0 0.0
    %2458 = vmatmul.mubr.f32.gmra.mxu0 %v2385
    %v2459 = vpop.f32.mrf.mxu0
    %v2460 = vadd.f32 0.0, %v2459
    %v2461 = vpop.f32.mrf.mxu0
    %2462 = vmatprep.mubr.f32.mxu0 0.0
    %2463 = vmatmul.mubr.f32.gmra.mxu0 %v2387
    %v2464 = vpop.f32.mrf.mxu0
    %v2465 = vadd.f32 0.0, %v2464
    %v2466 = vpop.f32.mrf.mxu0
    %2467 = vdwg.mxu0
    %v2468 = vmul.f32 %v2460, 0.35355338
    %v2469 = vmul.f32 %v2465, 0.35355338
    %v2470 = vadd.f32 %v2468, %v192
    %v2471 = vadd.f32 %v2469, %v193
    %v2472 = vsel %vm554, %v2470, -inf
    %2473 = vmax.xlane.f32.xlu0 %v2472
    %v2474 = vpop.xlane.xlu0 %2473
    %v2475 = vsel %vm554, %v2471, -inf
    %2476 = vmax.xlane.f32.xlu0 %v2475
    %v2477 = vpop.xlane.xlu0 %2476
    %v2478 = vsub.f32 %v2470, %v2474
    %v2479 = vsub.f32 %v2471, %v2477
    %v2480 = vmul.f32 %v2478, 1.442695
    %v2481 = vpow.pop %v2480
    %v2482 = vmul.f32 %v2479, 1.442695
    %v2483 = vpow.pop %v2482
    %v2484 = vsel %vm554, %v2481, 0.0
    %2485 = vadd.xlane.f32.xlu0 %v2484
    %v2486 = vpop.xlane.xlu0 %2485
    %v2487 = vsel %vm554, %v2483, 0.0
    %2488 = vadd.xlane.f32.xlu0 %v2487
    %v2489 = vpop.xlane.xlu0 %2488
    %v2490 = vrcp.pop %v2486
    %v2491 = vrcp.pop %v2489
    %v2492 = vmul.f32 %v2481, %v2490
    %v2493 = vmul.f32 %v2483, %v2491
    %2496 = vrot.lane.b32.xlu0 %v2170, 120
    %v2497 = vpop.permute.xlu0 %2496
    %2498 = vrot.lane.b32.xlu0 %v2175, 120
    %v2499 = vpop.permute.xlu0 %2498
    %v2503 = vsel %vm554, %v2492, 0
    %v2506 = vsel %vm554, %v2493, 0
    %2508 = vmatprep.subr.mxu0 0.0
    %2509 = vmatpush1.msra.mxu0 0.0
    %2510 = vmatprep.subr.mxu0 0.0
    %2511 = vmatpush1.msra.mxu0 0.0
    %2512 = vmatprep.subr.mxu0 0.0
    %2513 = vmatpush1.msra.mxu0 0.0
    %2514 = vmatprep.subr.mxu0 0.0
    %2515 = vmatpush1.msra.mxu0 0.0
    %2516 = vmatprep.subr.mxu0 0.0
    %2517 = vmatpush1.msra.mxu0 0.0
    %2518 = vmatprep.subr.mxu0 0.0
    %2519 = vmatpush1.msra.mxu0 0.0
    %2520 = vmatprep.subr.mxu0 0.0
    %2521 = vmatpush1.msra.mxu0 0.0
    %2522 = vmatprep.subr.mxu0 0.0
    %2523 = vmatpush1.msra.mxu0 0.0
    %2524 = vmatprep.subr.mxu0 0.0
    %2525 = vmatpush1.msra.mxu0 0.0
    %2526 = vmatprep.subr.mxu0 0.0
    %2527 = vmatpush1.msra.mxu0 0.0
    %2528 = vmatprep.subr.mxu0 0.0
    %2529 = vmatpush1.msra.mxu0 0.0
    %2530 = vmatprep.subr.mxu0 0.0
    %2531 = vmatpush1.msra.mxu0 0.0
    %2532 = vmatprep.subr.mxu0 0.0
    %2533 = vmatpush1.msra.mxu0 0.0
    %2534 = vmatprep.subr.mxu0 0.0
    %2535 = vmatpush1.msra.mxu0 0.0
    %2536 = vmatprep.subr.mxu0 0.0
    %2537 = vmatpush1.msra.mxu0 %v2499
    %2538 = vmatprep.subr.mxu0 0.0
    %2539 = vmatpush1.msra.mxu0 %v2497
    %2540 = vmatprep.subr.mxu0 0.0
    %2541 = vmatpush2.msra.mxu0 0.0
    %2542 = vmatprep.subr.mxu0 0.0
    %2543 = vmatpush2.msra.mxu0 0.0
    %2544 = vmatprep.subr.mxu0 0.0
    %2545 = vmatpush2.msra.mxu0 0.0
    %2546 = vmatprep.subr.mxu0 0.0
    %2547 = vmatpush2.msra.mxu0 0.0
    %2548 = vmatprep.subr.mxu0 0.0
    %2549 = vmatpush2.msra.mxu0 0.0
    %2550 = vmatprep.subr.mxu0 0.0
    %2551 = vmatpush2.msra.mxu0 0.0
    %2552 = vmatprep.subr.mxu0 0.0
    %2553 = vmatpush2.msra.mxu0 0.0
    %2554 = vmatprep.subr.mxu0 0.0
    %2555 = vmatpush2.msra.mxu0 0.0
    %2556 = vmatprep.subr.mxu0 0.0
    %2557 = vmatpush2.msra.mxu0 0.0
    %2558 = vmatprep.subr.mxu0 0.0
    %2559 = vmatpush2.msra.mxu0 0.0
    %2560 = vmatprep.subr.mxu0 0.0
    %2561 = vmatpush2.msra.mxu0 0.0
    %2562 = vmatprep.subr.mxu0 0.0
    %2563 = vmatpush2.msra.mxu0 0.0
    %2564 = vmatprep.subr.mxu0 0.0
    %2565 = vmatpush2.msra.mxu0 0.0
    %2566 = vmatprep.subr.mxu0 0.0
    %2567 = vmatpush2.msra.mxu0 0.0
    %2568 = vmatprep.subr.mxu0 0.0
    %2569 = vmatpush2.msra.mxu0 0.0
    %2570 = vmatprep.subr.mxu0 0.0
    %2571 = vmatpush2.msra.mxu0 0.0
    %2572 = vmatprep.mubr.f32.mxu0 0.0
    %2573 = vmatmul.mubr.f32.gmra.mxu0 %v2503
    %v2574 = vpop.f32.mrf.mxu0
    %v2575 = vadd.f32 0.0, %v2574
    %v2576 = vpop.f32.mrf.mxu0
    %2577 = vmatprep.mubr.f32.mxu0 0.0
    %2578 = vmatmul.mubr.f32.gmra.mxu0 %v2506
    %v2579 = vpop.f32.mrf.mxu0
    %v2580 = vadd.f32 0.0, %v2579
    %v2581 = vpop.f32.mrf.mxu0
    %2582 = vdwg.mxu0
    %v2584 = vsel %vm462, %v2575, 0
    %v2587 = vsel %vm462, %v2580, 0
    %2589 = vmatprep.subr.mxu0 0.0
    %2590 = vmatpush1.msra.mxu0 0.0
    %2591 = vmatprep.subr.mxu0 0.0
    %2592 = vmatpush1.msra.mxu0 0.0
    %2593 = vmatprep.subr.mxu0 0.0
    %2594 = vmatpush1.msra.mxu0 0.0
    %2595 = vmatprep.subr.mxu0 0.0
    %2596 = vmatpush1.msra.mxu0 0.0
    %2597 = vmatprep.subr.mxu0 0.0
    %2598 = vmatpush1.msra.mxu0 0.0
    %2599 = vmatprep.subr.mxu0 0.0
    %2600 = vmatpush1.msra.mxu0 0.0
    %2601 = vmatprep.subr.mxu0 0.0
    %2602 = vmatpush1.msra.mxu0 0.0
    %2603 = vmatprep.subr.mxu0 0.0
    %2604 = vmatpush1.msra.mxu0 0.0
    %2605 = vmatprep.subr.mxu0 0.0
    %2606 = vmatpush1.msra.mxu0 0.0
    %2607 = vmatprep.subr.mxu0 0.0
    %2608 = vmatpush1.msra.mxu0 0.0
    %2609 = vmatprep.subr.mxu0 0.0
    %2610 = vmatpush1.msra.mxu0 0.0
    %2611 = vmatprep.subr.mxu0 0.0
    %2612 = vmatpush1.msra.mxu0 0.0
    %2613 = vmatprep.subr.mxu0 0.0
    %2614 = vmatpush1.msra.mxu0 0.0
    %2615 = vmatprep.subr.mxu0 0.0
    %2616 = vmatpush1.msra.mxu0 0.0
    %2617 = vmatprep.subr.mxu0 0.0
    %2618 = vmatpush1.msra.mxu0 0.0
    %2619 = vmatprep.subr.mxu0 0.0
    %2620 = vmatpush1.msra.mxu0 %v2180
    %2621 = vmatprep.subr.mxu0 0.0
    %2622 = vmatpush2.msra.mxu0 0.0
    %2623 = vmatprep.subr.mxu0 0.0
    %2624 = vmatpush2.msra.mxu0 0.0
    %2625 = vmatprep.subr.mxu0 0.0
    %2626 = vmatpush2.msra.mxu0 0.0
    %2627 = vmatprep.subr.mxu0 0.0
    %2628 = vmatpush2.msra.mxu0 0.0
    %2629 = vmatprep.subr.mxu0 0.0
    %2630 = vmatpush2.msra.mxu0 0.0
    %2631 = vmatprep.subr.mxu0 0.0
    %2632 = vmatpush2.msra.mxu0 0.0
    %2633 = vmatprep.subr.mxu0 0.0
    %2634 = vmatpush2.msra.mxu0 0.0
    %2635 = vmatprep.subr.mxu0 0.0
    %2636 = vmatpush2.msra.mxu0 0.0
    %2637 = vmatprep.subr.mxu0 0.0
    %2638 = vmatpush2.msra.mxu0 0.0
    %2639 = vmatprep.subr.mxu0 0.0
    %2640 = vmatpush2.msra.mxu0 0.0
    %2641 = vmatprep.subr.mxu0 0.0
    %2642 = vmatpush2.msra.mxu0 0.0
    %2643 = vmatprep.subr.mxu0 0.0
    %2644 = vmatpush2.msra.mxu0 0.0
    %2645 = vmatprep.subr.mxu0 0.0
    %2646 = vmatpush2.msra.mxu0 0.0
    %2647 = vmatprep.subr.mxu0 0.0
    %2648 = vmatpush2.msra.mxu0 0.0
    %2649 = vmatprep.subr.mxu0 0.0
    %2650 = vmatpush2.msra.mxu0 0.0
    %2651 = vmatprep.subr.mxu0 0.0
    %2652 = vmatpush2.msra.mxu0 0.0
    %2653 = vmatprep.mubr.f32.mxu0 0.0
    %2654 = vmatmul.mubr.f32.gmra.mxu0 %v2584
    %v2655 = vpop.f32.mrf.mxu0
    %v2656 = vadd.f32 0.0, %v2655
    %v2657 = vpop.f32.mrf.mxu0
    %2658 = vmatprep.mubr.f32.mxu0 0.0
    %2659 = vmatmul.mubr.f32.gmra.mxu0 %v2587
    %v2660 = vpop.f32.mrf.mxu0
    %v2661 = vadd.f32 0.0, %v2660
    %v2662 = vpop.f32.mrf.mxu0
    %2663 = vdwg.mxu0
    %v2665 = vsel %vm462, %v2369, 0
    %v2668 = vsel %vm462, %v2374, 0
    %2670 = vmatprep.subr.mxu0 0.0
    %2671 = vmatpush1.msra.mxu0 0.0
    %2672 = vmatprep.subr.mxu0 0.0
    %2673 = vmatpush1.msra.mxu0 0.0
    %2674 = vmatprep.subr.mxu0 0.0
    %2675 = vmatpush1.msra.mxu0 0.0
    %2676 = vmatprep.subr.mxu0 0.0
    %2677 = vmatpush1.msra.mxu0 0.0
    %2678 = vmatprep.subr.mxu0 0.0
    %2679 = vmatpush1.msra.mxu0 0.0
    %2680 = vmatprep.subr.mxu0 0.0
    %2681 = vmatpush1.msra.mxu0 0.0
    %2682 = vmatprep.subr.mxu0 0.0
    %2683 = vmatpush1.msra.mxu0 0.0
    %2684 = vmatprep.subr.mxu0 0.0
    %2685 = vmatpush1.msra.mxu0 0.0
    %2686 = vmatprep.subr.mxu0 0.0
    %2687 = vmatpush1.msra.mxu0 0.0
    %2688 = vmatprep.subr.mxu0 0.0
    %2689 = vmatpush1.msra.mxu0 0.0
    %2690 = vmatprep.subr.mxu0 0.0
    %2691 = vmatpush1.msra.mxu0 0.0
    %2692 = vmatprep.subr.mxu0 0.0
    %2693 = vmatpush1.msra.mxu0 0.0
    %2694 = vmatprep.subr.mxu0 0.0
    %2695 = vmatpush1.msra.mxu0 0.0
    %2696 = vmatprep.subr.mxu0 0.0
    %2697 = vmatpush1.msra.mxu0 0.0
    %2698 = vmatprep.subr.mxu0 0.0
    %2699 = vmatpush1.msra.mxu0 0.0
    %2700 = vmatprep.subr.mxu0 0.0
    %2701 = vmatpush1.msra.mxu0 %v2179
    %2702 = vmatprep.subr.mxu0 0.0
    %2703 = vmatpush2.msra.mxu0 0.0
    %2704 = vmatprep.subr.mxu0 0.0
    %2705 = vmatpush2.msra.mxu0 0.0
    %2706 = vmatprep.subr.mxu0 0.0
    %2707 = vmatpush2.msra.mxu0 0.0
    %2708 = vmatprep.subr.mxu0 0.0
    %2709 = vmatpush2.msra.mxu0 0.0
    %2710 = vmatprep.subr.mxu0 0.0
    %2711 = vmatpush2.msra.mxu0 0.0
    %2712 = vmatprep.subr.mxu0 0.0
    %2713 = vmatpush2.msra.mxu0 0.0
    %2714 = vmatprep.subr.mxu0 0.0
    %2715 = vmatpush2.msra.mxu0 0.0
    %2716 = vmatprep.subr.mxu0 0.0
    %2717 = vmatpush2.msra.mxu0 0.0
    %2718 = vmatprep.subr.mxu0 0.0
    %2719 = vmatpush2.msra.mxu0 0.0
    %2720 = vmatprep.subr.mxu0 0.0
    %2721 = vmatpush2.msra.mxu0 0.0
    %2722 = vmatprep.subr.mxu0 0.0
    %2723 = vmatpush2.msra.mxu0 0.0
    %2724 = vmatprep.subr.mxu0 0.0
    %2725 = vmatpush2.msra.mxu0 0.0
    %2726 = vmatprep.subr.mxu0 0.0
    %2727 = vmatpush2.msra.mxu0 0.0
    %2728 = vmatprep.subr.mxu0 0.0
    %2729 = vmatpush2.msra.mxu0 0.0
    %2730 = vmatprep.subr.mxu0 0.0
    %2731 = vmatpush2.msra.mxu0 0.0
    %2732 = vmatprep.subr.mxu0 0.0
    %2733 = vmatpush2.msra.mxu0 0.0
    %2734 = vmatprep.mubr.f32.mxu0 0.0
    %2735 = vmatmul.mubr.f32.gmra.mxu0 %v2665
    %v2736 = vpop.f32.mrf.mxu0
    %v2737 = vadd.f32 %v2656, %v2736
    %v2738 = vpop.f32.mrf.mxu0
    %2739 = vmatprep.mubr.f32.mxu0 0.0
    %2740 = vmatmul.mubr.f32.gmra.mxu0 %v2668
    %v2741 = vpop.f32.mrf.mxu0
    %v2742 = vadd.f32 %v2661, %v2741
    %v2743 = vpop.f32.mrf.mxu0
    %2744 = vdwg.mxu0
    %2745 = vrot.lane.b32.xlu0 %v1994, 112
    %v2746 = vpop.permute.xlu0 %2745
    %2747 = vrot.lane.b32.xlu0 %v1999, 112
    %v2748 = vpop.permute.xlu0 %2747
    %2749 = vrot.lane.b32.xlu0 %v2082, 112
    %v2750 = vpop.permute.xlu0 %2749
    %2751 = vrot.lane.b32.xlu0 %v2087, 112
    %v2752 = vpop.permute.xlu0 %2751
    %v2753 = vsel %vm462, %v2746, 0
    %v2755 = vsel %vm462, %v2748, 0
    %v2757 = vsel %vm462, %v2750, 0
    %v2759 = vsel %vm462, %v2752, 0
    %2761 = vmatprep.subr.mxu0 0.0
    %2762 = vmatpush1.xpose.msra.mxu0 0.0
    %2763 = vmatprep.subr.mxu0 0.0
    %2764 = vmatpush1.xpose.msra.mxu0 0.0
    %2765 = vmatprep.subr.mxu0 0.0
    %2766 = vmatpush1.xpose.msra.mxu0 0.0
    %2767 = vmatprep.subr.mxu0 0.0
    %2768 = vmatpush1.xpose.msra.mxu0 0.0
    %2769 = vmatprep.subr.mxu0 0.0
    %2770 = vmatpush1.xpose.msra.mxu0 0.0
    %2771 = vmatprep.subr.mxu0 0.0
    %2772 = vmatpush1.xpose.msra.mxu0 0.0
    %2773 = vmatprep.subr.mxu0 0.0
    %2774 = vmatpush1.xpose.msra.mxu0 0.0
    %2775 = vmatprep.subr.mxu0 0.0
    %2776 = vmatpush1.xpose.msra.mxu0 0.0
    %2777 = vmatprep.subr.mxu0 0.0
    %2778 = vmatpush1.xpose.msra.mxu0 0.0
    %2779 = vmatprep.subr.mxu0 0.0
    %2780 = vmatpush1.xpose.msra.mxu0 0.0
    %2781 = vmatprep.subr.mxu0 0.0
    %2782 = vmatpush1.xpose.msra.mxu0 0.0
    %2783 = vmatprep.subr.mxu0 0.0
    %2784 = vmatpush1.xpose.msra.mxu0 0.0
    %2785 = vmatprep.subr.mxu0 0.0
    %2786 = vmatpush1.xpose.msra.mxu0 0.0
    %2787 = vmatprep.subr.mxu0 0.0
    %2788 = vmatpush1.xpose.msra.mxu0 0.0
    %2789 = vmatprep.subr.mxu0 0.0
    %2790 = vmatpush1.xpose.msra.mxu0 %v2759
    %2791 = vmatprep.subr.mxu0 0.0
    %2792 = vmatpush1.xpose.msra.mxu0 %v2757
    %2793 = vmatprep.subr.mxu0 0.0
    %2794 = vmatpush2.xpose.msra.mxu0 0.0
    %2795 = vmatprep.subr.mxu0 0.0
    %2796 = vmatpush2.xpose.msra.mxu0 0.0
    %2797 = vmatprep.subr.mxu0 0.0
    %2798 = vmatpush2.xpose.msra.mxu0 0.0
    %2799 = vmatprep.subr.mxu0 0.0
    %2800 = vmatpush2.xpose.msra.mxu0 0.0
    %2801 = vmatprep.subr.mxu0 0.0
    %2802 = vmatpush2.xpose.msra.mxu0 0.0
    %2803 = vmatprep.subr.mxu0 0.0
    %2804 = vmatpush2.xpose.msra.mxu0 0.0
    %2805 = vmatprep.subr.mxu0 0.0
    %2806 = vmatpush2.xpose.msra.mxu0 0.0
    %2807 = vmatprep.subr.mxu0 0.0
    %2808 = vmatpush2.xpose.msra.mxu0 0.0
    %2809 = vmatprep.subr.mxu0 0.0
    %2810 = vmatpush2.xpose.msra.mxu0 0.0
    %2811 = vmatprep.subr.mxu0 0.0
    %2812 = vmatpush2.xpose.msra.mxu0 0.0
    %2813 = vmatprep.subr.mxu0 0.0
    %2814 = vmatpush2.xpose.msra.mxu0 0.0
    %2815 = vmatprep.subr.mxu0 0.0
    %2816 = vmatpush2.xpose.msra.mxu0 0.0
    %2817 = vmatprep.subr.mxu0 0.0
    %2818 = vmatpush2.xpose.msra.mxu0 0.0
    %2819 = vmatprep.subr.mxu0 0.0
    %2820 = vmatpush2.xpose.msra.mxu0 0.0
    %2821 = vmatprep.subr.mxu0 0.0
    %2822 = vmatpush2.xpose.msra.mxu0 0.0
    %2823 = vmatprep.subr.mxu0 0.0
    %2824 = vmatpush2.xpose.msra.mxu0 0.0
    %2825 = vmatprep.mubr.f32.mxu0 0.0
    %2826 = vmatmul.mubr.f32.gmra.mxu0 %v2753
    %v2827 = vpop.f32.mrf.mxu0
    %v2828 = vadd.f32 0.0, %v2827
    %v2829 = vpop.f32.mrf.mxu0
    %2830 = vmatprep.mubr.f32.mxu0 0.0
    %2831 = vmatmul.mubr.f32.gmra.mxu0 %v2755
    %v2832 = vpop.f32.mrf.mxu0
    %v2833 = vadd.f32 0.0, %v2832
    %v2834 = vpop.f32.mrf.mxu0
    %2835 = vdwg.mxu0
    %v2836 = vmul.f32 %v2828, 0.35355338
    %v2837 = vmul.f32 %v2833, 0.35355338
    %v2838 = vadd.f32 %v2836, %v192
    %v2839 = vadd.f32 %v2837, %v193
    %v2840 = vsel %vm554, %v2838, -inf
    %2841 = vmax.xlane.f32.xlu0 %v2840
    %v2842 = vpop.xlane.xlu0 %2841
    %v2843 = vsel %vm554, %v2839, -inf
    %2844 = vmax.xlane.f32.xlu0 %v2843
    %v2845 = vpop.xlane.xlu0 %2844
    %v2846 = vsub.f32 %v2838, %v2842
    %v2847 = vsub.f32 %v2839, %v2845
    %v2848 = vmul.f32 %v2846, 1.442695
    %v2849 = vpow.pop %v2848
    %v2850 = vmul.f32 %v2847, 1.442695
    %v2851 = vpow.pop %v2850
    %v2852 = vsel %vm554, %v2849, 0.0
    %2853 = vadd.xlane.f32.xlu0 %v2852
    %v2854 = vpop.xlane.xlu0 %2853
    %v2855 = vsel %vm554, %v2851, 0.0
    %2856 = vadd.xlane.f32.xlu0 %v2855
    %v2857 = vpop.xlane.xlu0 %2856
    %v2858 = vrcp.pop %v2854
    %v2859 = vrcp.pop %v2857
    %v2860 = vmul.f32 %v2849, %v2858
    %v2861 = vmul.f32 %v2851, %v2859
    %2862 = vrot.lane.b32.xlu0 %v2170, 112
    %v2863 = vpop.permute.xlu0 %2862
    %2864 = vrot.lane.b32.xlu0 %v2175, 112
    %v2865 = vpop.permute.xlu0 %2864
    %v2869 = vsel %vm554, %v2860, 0
    %v2872 = vsel %vm554, %v2861, 0
    %2874 = vmatprep.subr.mxu0 0.0
    %2875 = vmatpush1.msra.mxu0 0.0
    %2876 = vmatprep.subr.mxu0 0.0
    %2877 = vmatpush1.msra.mxu0 0.0
    %2878 = vmatprep.subr.mxu0 0.0
    %2879 = vmatpush1.msra.mxu0 0.0
    %2880 = vmatprep.subr.mxu0 0.0
    %2881 = vmatpush1.msra.mxu0 0.0
    %2882 = vmatprep.subr.mxu0 0.0
    %2883 = vmatpush1.msra.mxu0 0.0
    %2884 = vmatprep.subr.mxu0 0.0
    %2885 = vmatpush1.msra.mxu0 0.0
    %2886 = vmatprep.subr.mxu0 0.0
    %2887 = vmatpush1.msra.mxu0 0.0
    %2888 = vmatprep.subr.mxu0 0.0
    %2889 = vmatpush1.msra.mxu0 0.0
    %2890 = vmatprep.subr.mxu0 0.0
    %2891 = vmatpush1.msra.mxu0 0.0
    %2892 = vmatprep.subr.mxu0 0.0
    %2893 = vmatpush1.msra.mxu0 0.0
    %2894 = vmatprep.subr.mxu0 0.0
    %2895 = vmatpush1.msra.mxu0 0.0
    %2896 = vmatprep.subr.mxu0 0.0
    %2897 = vmatpush1.msra.mxu0 0.0
    %2898 = vmatprep.subr.mxu0 0.0
    %2899 = vmatpush1.msra.mxu0 0.0
    %2900 = vmatprep.subr.mxu0 0.0
    %2901 = vmatpush1.msra.mxu0 0.0
    %2902 = vmatprep.subr.mxu0 0.0
    %2903 = vmatpush1.msra.mxu0 %v2865
    %2904 = vmatprep.subr.mxu0 0.0
    %2905 = vmatpush1.msra.mxu0 %v2863
    %2906 = vmatprep.subr.mxu0 0.0
    %2907 = vmatpush2.msra.mxu0 0.0
    %2908 = vmatprep.subr.mxu0 0.0
    %2909 = vmatpush2.msra.mxu0 0.0
    %2910 = vmatprep.subr.mxu0 0.0
    %2911 = vmatpush2.msra.mxu0 0.0
    %2912 = vmatprep.subr.mxu0 0.0
    %2913 = vmatpush2.msra.mxu0 0.0
    %2914 = vmatprep.subr.mxu0 0.0
    %2915 = vmatpush2.msra.mxu0 0.0
    %2916 = vmatprep.subr.mxu0 0.0
    %2917 = vmatpush2.msra.mxu0 0.0
    %2918 = vmatprep.subr.mxu0 0.0
    %2919 = vmatpush2.msra.mxu0 0.0
    %2920 = vmatprep.subr.mxu0 0.0
    %2921 = vmatpush2.msra.mxu0 0.0
    %2922 = vmatprep.subr.mxu0 0.0
    %2923 = vmatpush2.msra.mxu0 0.0
    %2924 = vmatprep.subr.mxu0 0.0
    %2925 = vmatpush2.msra.mxu0 0.0
    %2926 = vmatprep.subr.mxu0 0.0
    %2927 = vmatpush2.msra.mxu0 0.0
    %2928 = vmatprep.subr.mxu0 0.0
    %2929 = vmatpush2.msra.mxu0 0.0
    %2930 = vmatprep.subr.mxu0 0.0
    %2931 = vmatpush2.msra.mxu0 0.0
    %2932 = vmatprep.subr.mxu0 0.0
    %2933 = vmatpush2.msra.mxu0 0.0
    %2934 = vmatprep.subr.mxu0 0.0
    %2935 = vmatpush2.msra.mxu0 0.0
    %2936 = vmatprep.subr.mxu0 0.0
    %2937 = vmatpush2.msra.mxu0 0.0
    %2938 = vmatprep.mubr.f32.mxu0 0.0
    %2939 = vmatmul.mubr.f32.gmra.mxu0 %v2869
    %v2940 = vpop.f32.mrf.mxu0
    %v2941 = vadd.f32 0.0, %v2940
    %v2942 = vpop.f32.mrf.mxu0
    %2943 = vmatprep.mubr.f32.mxu0 0.0
    %2944 = vmatmul.mubr.f32.gmra.mxu0 %v2872
    %v2945 = vpop.f32.mrf.mxu0
    %v2946 = vadd.f32 0.0, %v2945
    %v2947 = vpop.f32.mrf.mxu0
    %2948 = vdwg.mxu0
    %v2950 = vsel %vm462, %v2941, 0
    %v2953 = vsel %vm462, %v2946, 0
    %2955 = vmatprep.subr.mxu0 0.0
    %2956 = vmatpush1.msra.mxu0 0.0
    %2957 = vmatprep.subr.mxu0 0.0
    %2958 = vmatpush1.msra.mxu0 0.0
    %2959 = vmatprep.subr.mxu0 0.0
    %2960 = vmatpush1.msra.mxu0 0.0
    %2961 = vmatprep.subr.mxu0 0.0
    %2962 = vmatpush1.msra.mxu0 0.0
    %2963 = vmatprep.subr.mxu0 0.0
    %2964 = vmatpush1.msra.mxu0 0.0
    %2965 = vmatprep.subr.mxu0 0.0
    %2966 = vmatpush1.msra.mxu0 0.0
    %2967 = vmatprep.subr.mxu0 0.0
    %2968 = vmatpush1.msra.mxu0 0.0
    %2969 = vmatprep.subr.mxu0 0.0
    %2970 = vmatpush1.msra.mxu0 0.0
    %2971 = vmatprep.subr.mxu0 0.0
    %2972 = vmatpush1.msra.mxu0 0.0
    %2973 = vmatprep.subr.mxu0 0.0
    %2974 = vmatpush1.msra.mxu0 0.0
    %2975 = vmatprep.subr.mxu0 0.0
    %2976 = vmatpush1.msra.mxu0 0.0
    %2977 = vmatprep.subr.mxu0 0.0
    %2978 = vmatpush1.msra.mxu0 0.0
    %2979 = vmatprep.subr.mxu0 0.0
    %2980 = vmatpush1.msra.mxu0 0.0
    %2981 = vmatprep.subr.mxu0 0.0
    %2982 = vmatpush1.msra.mxu0 0.0
    %2983 = vmatprep.subr.mxu0 0.0
    %2984 = vmatpush1.msra.mxu0 0.0
    %2985 = vmatprep.subr.mxu0 0.0
    %2986 = vmatpush1.msra.mxu0 %v2181
    %2987 = vmatprep.subr.mxu0 0.0
    %2988 = vmatpush2.msra.mxu0 0.0
    %2989 = vmatprep.subr.mxu0 0.0
    %2990 = vmatpush2.msra.mxu0 0.0
    %2991 = vmatprep.subr.mxu0 0.0
    %2992 = vmatpush2.msra.mxu0 0.0
    %2993 = vmatprep.subr.mxu0 0.0
    %2994 = vmatpush2.msra.mxu0 0.0
    %2995 = vmatprep.subr.mxu0 0.0
    %2996 = vmatpush2.msra.mxu0 0.0
    %2997 = vmatprep.subr.mxu0 0.0
    %2998 = vmatpush2.msra.mxu0 0.0
    %2999 = vmatprep.subr.mxu0 0.0
    %3000 = vmatpush2.msra.mxu0 0.0
    %3001 = vmatprep.subr.mxu0 0.0
    %3002 = vmatpush2.msra.mxu0 0.0
    %3003 = vmatprep.subr.mxu0 0.0
    %3004 = vmatpush2.msra.mxu0 0.0
    %3005 = vmatprep.subr.mxu0 0.0
    %3006 = vmatpush2.msra.mxu0 0.0
    %3007 = vmatprep.subr.mxu0 0.0
    %3008 = vmatpush2.msra.mxu0 0.0
    %3009 = vmatprep.subr.mxu0 0.0
    %3010 = vmatpush2.msra.mxu0 0.0
    %3011 = vmatprep.subr.mxu0 0.0
    %3012 = vmatpush2.msra.mxu0 0.0
    %3013 = vmatprep.subr.mxu0 0.0
    %3014 = vmatpush2.msra.mxu0 0.0
    %3015 = vmatprep.subr.mxu0 0.0
    %3016 = vmatpush2.msra.mxu0 0.0
    %3017 = vmatprep.subr.mxu0 0.0
    %3018 = vmatpush2.msra.mxu0 0.0
    %3019 = vmatprep.mubr.f32.mxu0 0.0
    %3020 = vmatmul.mubr.f32.gmra.mxu0 %v2950
    %v3021 = vpop.f32.mrf.mxu0
    %v3022 = vadd.f32 0.0, %v3021
    %v3023 = vpop.f32.mrf.mxu0
    %3024 = vmatprep.mubr.f32.mxu0 0.0
    %3025 = vmatmul.mubr.f32.gmra.mxu0 %v2953
    %v3026 = vpop.f32.mrf.mxu0
    %v3027 = vadd.f32 0.0, %v3026
    %v3028 = vpop.f32.mrf.mxu0
    %3029 = vdwg.mxu0
    %v3030 = vadd.f32 %v2737, %v3022
    %v3031 = vadd.f32 %v2742, %v3027
    %3032 = vrot.lane.b32.xlu0 %v1994, 104
    %v3033 = vpop.permute.xlu0 %3032
    %3034 = vrot.lane.b32.xlu0 %v1999, 104
    %v3035 = vpop.permute.xlu0 %3034
    %3036 = vrot.lane.b32.xlu0 %v2082, 104
    %v3037 = vpop.permute.xlu0 %3036
    %3038 = vrot.lane.b32.xlu0 %v2087, 104
    %v3039 = vpop.permute.xlu0 %3038
    %v3040 = vsel %vm462, %v3033, 0
    %v3042 = vsel %vm462, %v3035, 0
    %v3044 = vsel %vm462, %v3037, 0
    %v3046 = vsel %vm462, %v3039, 0
    %3048 = vmatprep.subr.mxu0 0.0
    %3049 = vmatpush1.xpose.msra.mxu0 0.0
    %3050 = vmatprep.subr.mxu0 0.0
    %3051 = vmatpush1.xpose.msra.mxu0 0.0
    %3052 = vmatprep.subr.mxu0 0.0
    %3053 = vmatpush1.xpose.msra.mxu0 0.0
    %3054 = vmatprep.subr.mxu0 0.0
    %3055 = vmatpush1.xpose.msra.mxu0 0.0
    %3056 = vmatprep.subr.mxu0 0.0
    %3057 = vmatpush1.xpose.msra.mxu0 0.0
    %3058 = vmatprep.subr.mxu0 0.0
    %3059 = vmatpush1.xpose.msra.mxu0 0.0
    %3060 = vmatprep.subr.mxu0 0.0
    %3061 = vmatpush1.xpose.msra.mxu0 0.0
    %3062 = vmatprep.subr.mxu0 0.0
    %3063 = vmatpush1.xpose.msra.mxu0 0.0
    %3064 = vmatprep.subr.mxu0 0.0
    %3065 = vmatpush1.xpose.msra.mxu0 0.0
    %3066 = vmatprep.subr.mxu0 0.0
    %3067 = vmatpush1.xpose.msra.mxu0 0.0
    %3068 = vmatprep.subr.mxu0 0.0
    %3069 = vmatpush1.xpose.msra.mxu0 0.0
    %3070 = vmatprep.subr.mxu0 0.0
    %3071 = vmatpush1.xpose.msra.mxu0 0.0
    %3072 = vmatprep.subr.mxu0 0.0
    %3073 = vmatpush1.xpose.msra.mxu0 0.0
    %3074 = vmatprep.subr.mxu0 0.0
    %3075 = vmatpush1.xpose.msra.mxu0 0.0
    %3076 = vmatprep.subr.mxu0 0.0
    %3077 = vmatpush1.xpose.msra.mxu0 %v3046
    %3078 = vmatprep.subr.mxu0 0.0
    %3079 = vmatpush1.xpose.msra.mxu0 %v3044
    %3080 = vmatprep.subr.mxu0 0.0
    %3081 = vmatpush2.xpose.msra.mxu0 0.0
    %3082 = vmatprep.subr.mxu0 0.0
    %3083 = vmatpush2.xpose.msra.mxu0 0.0
    %3084 = vmatprep.subr.mxu0 0.0
    %3085 = vmatpush2.xpose.msra.mxu0 0.0
    %3086 = vmatprep.subr.mxu0 0.0
    %3087 = vmatpush2.xpose.msra.mxu0 0.0
    %3088 = vmatprep.subr.mxu0 0.0
    %3089 = vmatpush2.xpose.msra.mxu0 0.0
    %3090 = vmatprep.subr.mxu0 0.0
    %3091 = vmatpush2.xpose.msra.mxu0 0.0
    %3092 = vmatprep.subr.mxu0 0.0
    %3093 = vmatpush2.xpose.msra.mxu0 0.0
    %3094 = vmatprep.subr.mxu0 0.0
    %3095 = vmatpush2.xpose.msra.mxu0 0.0
    %3096 = vmatprep.subr.mxu0 0.0
    %3097 = vmatpush2.xpose.msra.mxu0 0.0
    %3098 = vmatprep.subr.mxu0 0.0
    %3099 = vmatpush2.xpose.msra.mxu0 0.0
    %3100 = vmatprep.subr.mxu0 0.0
    %3101 = vmatpush2.xpose.msra.mxu0 0.0
    %3102 = vmatprep.subr.mxu0 0.0
    %3103 = vmatpush2.xpose.msra.mxu0 0.0
    %3104 = vmatprep.subr.mxu0 0.0
    %3105 = vmatpush2.xpose.msra.mxu0 0.0
    %3106 = vmatprep.subr.mxu0 0.0
    %3107 = vmatpush2.xpose.msra.mxu0 0.0
    %3108 = vmatprep.subr.mxu0 0.0
    %3109 = vmatpush2.xpose.msra.mxu0 0.0
    %3110 = vmatprep.subr.mxu0 0.0
    %3111 = vmatpush2.xpose.msra.mxu0 0.0
    %3112 = vmatprep.mubr.f32.mxu0 0.0
    %3113 = vmatmul.mubr.f32.gmra.mxu0 %v3040
    %v3114 = vpop.f32.mrf.mxu0
    %v3115 = vadd.f32 0.0, %v3114
    %v3116 = vpop.f32.mrf.mxu0
    %3117 = vmatprep.mubr.f32.mxu0 0.0
    %3118 = vmatmul.mubr.f32.gmra.mxu0 %v3042
    %v3119 = vpop.f32.mrf.mxu0
    %v3120 = vadd.f32 0.0, %v3119
    %v3121 = vpop.f32.mrf.mxu0
    %3122 = vdwg.mxu0
    %v3123 = vmul.f32 %v3115, 0.35355338
    %v3124 = vmul.f32 %v3120, 0.35355338
    %v3125 = vadd.f32 %v3123, %v192
    %v3126 = vadd.f32 %v3124, %v193
    %v3127 = vsel %vm554, %v3125, -inf
    %3128 = vmax.xlane.f32.xlu0 %v3127
    %v3129 = vpop.xlane.xlu0 %3128
    %v3130 = vsel %vm554, %v3126, -inf
    %3131 = vmax.xlane.f32.xlu0 %v3130
    %v3132 = vpop.xlane.xlu0 %3131
    %v3133 = vsub.f32 %v3125, %v3129
    %v3134 = vsub.f32 %v3126, %v3132
    %v3135 = vmul.f32 %v3133, 1.442695
    %v3136 = vpow.pop %v3135
    %v3137 = vmul.f32 %v3134, 1.442695
    %v3138 = vpow.pop %v3137
    %v3139 = vsel %vm554, %v3136, 0.0
    %3140 = vadd.xlane.f32.xlu0 %v3139
    %v3141 = vpop.xlane.xlu0 %3140
    %v3142 = vsel %vm554, %v3138, 0.0
    %3143 = vadd.xlane.f32.xlu0 %v3142
    %v3144 = vpop.xlane.xlu0 %3143
    %v3145 = vrcp.pop %v3141
    %v3146 = vrcp.pop %v3144
    %v3147 = vmul.f32 %v3136, %v3145
    %v3148 = vmul.f32 %v3138, %v3146
    %3149 = vrot.lane.b32.xlu0 %v2170, 104
    %v3150 = vpop.permute.xlu0 %3149
    %3151 = vrot.lane.b32.xlu0 %v2175, 104
    %v3152 = vpop.permute.xlu0 %3151
    %v3156 = vsel %vm554, %v3147, 0
    %v3159 = vsel %vm554, %v3148, 0
    %3161 = vmatprep.subr.mxu0 0.0
    %3162 = vmatpush1.msra.mxu0 0.0
    %3163 = vmatprep.subr.mxu0 0.0
    %3164 = vmatpush1.msra.mxu0 0.0
    %3165 = vmatprep.subr.mxu0 0.0
    %3166 = vmatpush1.msra.mxu0 0.0
    %3167 = vmatprep.subr.mxu0 0.0
    %3168 = vmatpush1.msra.mxu0 0.0
    %3169 = vmatprep.subr.mxu0 0.0
    %3170 = vmatpush1.msra.mxu0 0.0
    %3171 = vmatprep.subr.mxu0 0.0
    %3172 = vmatpush1.msra.mxu0 0.0
    %3173 = vmatprep.subr.mxu0 0.0
    %3174 = vmatpush1.msra.mxu0 0.0
    %3175 = vmatprep.subr.mxu0 0.0
    %3176 = vmatpush1.msra.mxu0 0.0
    %3177 = vmatprep.subr.mxu0 0.0
    %3178 = vmatpush1.msra.mxu0 0.0
    %3179 = vmatprep.subr.mxu0 0.0
    %3180 = vmatpush1.msra.mxu0 0.0
    %3181 = vmatprep.subr.mxu0 0.0
    %3182 = vmatpush1.msra.mxu0 0.0
    %3183 = vmatprep.subr.mxu0 0.0
    %3184 = vmatpush1.msra.mxu0 0.0
    %3185 = vmatprep.subr.mxu0 0.0
    %3186 = vmatpush1.msra.mxu0 0.0
    %3187 = vmatprep.subr.mxu0 0.0
    %3188 = vmatpush1.msra.mxu0 0.0
    %3189 = vmatprep.subr.mxu0 0.0
    %3190 = vmatpush1.msra.mxu0 %v3152
    %3191 = vmatprep.subr.mxu0 0.0
    %3192 = vmatpush1.msra.mxu0 %v3150
    %3193 = vmatprep.subr.mxu0 0.0
    %3194 = vmatpush2.msra.mxu0 0.0
    %3195 = vmatprep.subr.mxu0 0.0
    %3196 = vmatpush2.msra.mxu0 0.0
    %3197 = vmatprep.subr.mxu0 0.0
    %3198 = vmatpush2.msra.mxu0 0.0
    %3199 = vmatprep.subr.mxu0 0.0
    %3200 = vmatpush2.msra.mxu0 0.0
    %3201 = vmatprep.subr.mxu0 0.0
    %3202 = vmatpush2.msra.mxu0 0.0
    %3203 = vmatprep.subr.mxu0 0.0
    %3204 = vmatpush2.msra.mxu0 0.0
    %3205 = vmatprep.subr.mxu0 0.0
    %3206 = vmatpush2.msra.mxu0 0.0
    %3207 = vmatprep.subr.mxu0 0.0
    %3208 = vmatpush2.msra.mxu0 0.0
    %3209 = vmatprep.subr.mxu0 0.0
    %3210 = vmatpush2.msra.mxu0 0.0
    %3211 = vmatprep.subr.mxu0 0.0
    %3212 = vmatpush2.msra.mxu0 0.0
    %3213 = vmatprep.subr.mxu0 0.0
    %3214 = vmatpush2.msra.mxu0 0.0
    %3215 = vmatprep.subr.mxu0 0.0
    %3216 = vmatpush2.msra.mxu0 0.0
    %3217 = vmatprep.subr.mxu0 0.0
    %3218 = vmatpush2.msra.mxu0 0.0
    %3219 = vmatprep.subr.mxu0 0.0
    %3220 = vmatpush2.msra.mxu0 0.0
    %3221 = vmatprep.subr.mxu0 0.0
    %3222 = vmatpush2.msra.mxu0 0.0
    %3223 = vmatprep.subr.mxu0 0.0
    %3224 = vmatpush2.msra.mxu0 0.0
    %3225 = vmatprep.mubr.f32.mxu0 0.0
    %3226 = vmatmul.mubr.f32.gmra.mxu0 %v3156
    %v3227 = vpop.f32.mrf.mxu0
    %v3228 = vadd.f32 0.0, %v3227
    %v3229 = vpop.f32.mrf.mxu0
    %3230 = vmatprep.mubr.f32.mxu0 0.0
    %3231 = vmatmul.mubr.f32.gmra.mxu0 %v3159
    %v3232 = vpop.f32.mrf.mxu0
    %v3233 = vadd.f32 0.0, %v3232
    %v3234 = vpop.f32.mrf.mxu0
    %3235 = vdwg.mxu0
    %v3237 = vsel %vm462, %v3228, 0
    %v3240 = vsel %vm462, %v3233, 0
    %3242 = vmatprep.subr.mxu0 0.0
    %3243 = vmatpush1.msra.mxu0 0.0
    %3244 = vmatprep.subr.mxu0 0.0
    %3245 = vmatpush1.msra.mxu0 0.0
    %3246 = vmatprep.subr.mxu0 0.0
    %3247 = vmatpush1.msra.mxu0 0.0
    %3248 = vmatprep.subr.mxu0 0.0
    %3249 = vmatpush1.msra.mxu0 0.0
    %3250 = vmatprep.subr.mxu0 0.0
    %3251 = vmatpush1.msra.mxu0 0.0
    %3252 = vmatprep.subr.mxu0 0.0
    %3253 = vmatpush1.msra.mxu0 0.0
    %3254 = vmatprep.subr.mxu0 0.0
    %3255 = vmatpush1.msra.mxu0 0.0
    %3256 = vmatprep.subr.mxu0 0.0
    %3257 = vmatpush1.msra.mxu0 0.0
    %3258 = vmatprep.subr.mxu0 0.0
    %3259 = vmatpush1.msra.mxu0 0.0
    %3260 = vmatprep.subr.mxu0 0.0
    %3261 = vmatpush1.msra.mxu0 0.0
    %3262 = vmatprep.subr.mxu0 0.0
    %3263 = vmatpush1.msra.mxu0 0.0
    %3264 = vmatprep.subr.mxu0 0.0
    %3265 = vmatpush1.msra.mxu0 0.0
    %3266 = vmatprep.subr.mxu0 0.0
    %3267 = vmatpush1.msra.mxu0 0.0
    %3268 = vmatprep.subr.mxu0 0.0
    %3269 = vmatpush1.msra.mxu0 0.0
    %3270 = vmatprep.subr.mxu0 0.0
    %3271 = vmatpush1.msra.mxu0 0.0
    %3272 = vmatprep.subr.mxu0 0.0
    %3273 = vmatpush1.msra.mxu0 %v2182
    %3274 = vmatprep.subr.mxu0 0.0
    %3275 = vmatpush2.msra.mxu0 0.0
    %3276 = vmatprep.subr.mxu0 0.0
    %3277 = vmatpush2.msra.mxu0 0.0
    %3278 = vmatprep.subr.mxu0 0.0
    %3279 = vmatpush2.msra.mxu0 0.0
    %3280 = vmatprep.subr.mxu0 0.0
    %3281 = vmatpush2.msra.mxu0 0.0
    %3282 = vmatprep.subr.mxu0 0.0
    %3283 = vmatpush2.msra.mxu0 0.0
    %3284 = vmatprep.subr.mxu0 0.0
    %3285 = vmatpush2.msra.mxu0 0.0
    %3286 = vmatprep.subr.mxu0 0.0
    %3287 = vmatpush2.msra.mxu0 0.0
    %3288 = vmatprep.subr.mxu0 0.0
    %3289 = vmatpush2.msra.mxu0 0.0
    %3290 = vmatprep.subr.mxu0 0.0
    %3291 = vmatpush2.msra.mxu0 0.0
    %3292 = vmatprep.subr.mxu0 0.0
    %3293 = vmatpush2.msra.mxu0 0.0
    %3294 = vmatprep.subr.mxu0 0.0
    %3295 = vmatpush2.msra.mxu0 0.0
    %3296 = vmatprep.subr.mxu0 0.0
    %3297 = vmatpush2.msra.mxu0 0.0
    %3298 = vmatprep.subr.mxu0 0.0
    %3299 = vmatpush2.msra.mxu0 0.0
    %3300 = vmatprep.subr.mxu0 0.0
    %3301 = vmatpush2.msra.mxu0 0.0
    %3302 = vmatprep.subr.mxu0 0.0
    %3303 = vmatpush2.msra.mxu0 0.0
    %3304 = vmatprep.subr.mxu0 0.0
    %3305 = vmatpush2.msra.mxu0 0.0
    %3306 = vmatprep.mubr.f32.mxu0 0.0
    %3307 = vmatmul.mubr.f32.gmra.mxu0 %v3237
    %v3308 = vpop.f32.mrf.mxu0
    %v3309 = vadd.f32 0.0, %v3308
    %v3310 = vpop.f32.mrf.mxu0
    %3311 = vmatprep.mubr.f32.mxu0 0.0
    %3312 = vmatmul.mubr.f32.gmra.mxu0 %v3240
    %v3313 = vpop.f32.mrf.mxu0
    %v3314 = vadd.f32 0.0, %v3313
    %v3315 = vpop.f32.mrf.mxu0
    %3316 = vdwg.mxu0
    %v3317 = vadd.f32 %v3030, %v3309
    %v3318 = vadd.f32 %v3031, %v3314
    %s3319 = scalar_lea.vmem %s11, 1
    %v3320 = vld [vmem:[%s3319] sm:$0x1]
    %v3322 = vlaneseq
    %v3323 = vshrl.u32 %v3322, 7
    %v3324 = vsub.s32 0, %v3323
    %v3325 = vrot.slane %v3320, %v3324
    %v3327 = vadd.f32 %v3317, %v3325
    %v3328 = vadd.f32 %v3318, %v3325
    %v3329 = vadd.f32 %v1906, %v3327
    %v3330 = vadd.f32 %v1907, %v3328
    %s3331 = scalar_lea.vmem %s12, 1
    %v3332 = vld [vmem:[%s3331] sm:$0x1]
    %s3333 = scalar_lea.vmem %s13, 1
    %v3334 = vld [vmem:[%s3333] sm:$0x1]
    %v3335 = vsel %vm148, %v3329, 0.0
    %3336 = vadd.xlane.f32.xlu0 %v3335
    %v3337 = vpop.xlane.xlu0 %3336
    %v3338 = vsel %vm148, %v3330, 0.0
    %3339 = vadd.xlane.f32.xlu0 %v3338
    %v3340 = vpop.xlane.xlu0 %3339
    %v3341 = vmul.f32 %v3337, %v155
    %v3342 = vmul.f32 %v3340, %v155
    %v3343 = vsub.f32 %v3329, %v3341
    %v3344 = vsub.f32 %v3330, %v3342
    %v3345 = vmul.f32 %v3343, %v3343
    %v3346 = vmul.f32 %v3344, %v3344
    %v3347 = vsel %vm148, %v3345, 0.0
    %3348 = vadd.xlane.f32.xlu0 %v3347
    %v3349 = vpop.xlane.xlu0 %3348
    %v3350 = vsel %vm148, %v3346, 0.0
    %3351 = vadd.xlane.f32.xlu0 %v3350
    %v3352 = vpop.xlane.xlu0 %3351
    %v3353 = vmul.f32 %v3349, %v155
    %v3354 = vmul.f32 %v3352, %v155
    %v3355 = vadd.f32 %v3353, 1e-12
    %v3356 = vadd.f32 %v3354, 1e-12
    %v3357 = vrsqrt.pop %v3355
    %v3358 = vrsqrt.pop %v3356
    %v3359 = vmul.f32 %v3343, %v3357
    %v3360 = vmul.f32 %v3344, %v3358
    %v3362 = vlaneseq
    %v3363 = vshrl.u32 %v3362, 7
    %v3364 = vsub.s32 0, %v3363
    %v3365 = vrot.slane %v3332, %v3364
    %v3367 = vmul.f32 %v3359, %v3365
    %v3368 = vmul.f32 %v3360, %v3365
    %v3370 = vlaneseq
    %v3371 = vshrl.u32 %v3370, 7
    %v3372 = vsub.s32 0, %v3371
    %v3373 = vrot.slane %v3334, %v3372
    %v3375 = vadd.f32 %v3367, %v3373
    %v3376 = vadd.f32 %v3368, %v3373
    %s3377 = scalar_lea.vmem [#allocation11], 32
    %v3378 = vld [vmem:[%s3377] sm:$0xff]
    %v3379 = vld [vmem:[%s3377 + $0x8] sm:$0xff]
    %v3380 = vld [vmem:[%s3377 + $0x10] sm:$0xff]
    %v3381 = vld [vmem:[%s3377 + $0x18] sm:$0xff]
    %s3382 = scalar_lea.vmem %s15, 1
    %v3383 = vld [vmem:[%s3382] sm:$0x1]
    %v3385 = vlaneseq
    %v3386 = vshrl.u32 %v3385, 7
    %v3387 = vsub.s32 0, %v3386
    %v3388 = vrot.slane %v3383, %v3387
    %v3391 = vsel %vm148, %v3375, 0
    %v3394 = vsel %vm148, %v3376, 0
    %3396 = vmatprep.subr.mxu0 0.0
    %3397 = vmatpush1.msra.mxu0 0.0
    %3398 = vmatprep.subr.mxu0 0.0
    %3399 = vmatpush1.msra.mxu0 0.0
    %3400 = vmatprep.subr.mxu0 0.0
    %3401 = vmatpush1.msra.mxu0 0.0
    %3402 = vmatprep.subr.mxu0 0.0
    %3403 = vmatpush1.msra.mxu0 0.0
    %3404 = vmatprep.subr.mxu0 0.0
    %3405 = vmatpush1.msra.mxu0 0.0
    %3406 = vmatprep.subr.mxu0 0.0
    %3407 = vmatpush1.msra.mxu0 0.0
    %3408 = vmatprep.subr.mxu0 0.0
    %3409 = vmatpush1.msra.mxu0 0.0
    %3410 = vmatprep.subr.mxu0 0.0
    %3411 = vmatpush1.msra.mxu0 0.0
    %3412 = vmatprep.subr.mxu0 0.0
    %3413 = vmatpush1.msra.mxu0 0.0
    %3414 = vmatprep.subr.mxu0 0.0
    %3415 = vmatpush1.msra.mxu0 0.0
    %3416 = vmatprep.subr.mxu0 0.0
    %3417 = vmatpush1.msra.mxu0 0.0
    %3418 = vmatprep.subr.mxu0 0.0
    %3419 = vmatpush1.msra.mxu0 0.0
    %3420 = vmatprep.subr.mxu0 0.0
    %3421 = vmatpush1.msra.mxu0 %v3381
    %3422 = vmatprep.subr.mxu0 0.0
    %3423 = vmatpush1.msra.mxu0 %v3380
    %3424 = vmatprep.subr.mxu0 0.0
    %3425 = vmatpush1.msra.mxu0 %v3379
    %3426 = vmatprep.subr.mxu0 0.0
    %3427 = vmatpush1.msra.mxu0 %v3378
    %3428 = vmatprep.subr.mxu0 0.0
    %3429 = vmatpush2.msra.mxu0 0.0
    %3430 = vmatprep.subr.mxu0 0.0
    %3431 = vmatpush2.msra.mxu0 0.0
    %3432 = vmatprep.subr.mxu0 0.0
    %3433 = vmatpush2.msra.mxu0 0.0
    %3434 = vmatprep.subr.mxu0 0.0
    %3435 = vmatpush2.msra.mxu0 0.0
    %3436 = vmatprep.subr.mxu0 0.0
    %3437 = vmatpush2.msra.mxu0 0.0
    %3438 = vmatprep.subr.mxu0 0.0
    %3439 = vmatpush2.msra.mxu0 0.0
    %3440 = vmatprep.subr.mxu0 0.0
    %3441 = vmatpush2.msra.mxu0 0.0
    %3442 = vmatprep.subr.mxu0 0.0
    %3443 = vmatpush2.msra.mxu0 0.0
    %3444 = vmatprep.subr.mxu0 0.0
    %3445 = vmatpush2.msra.mxu0 0.0
    %3446 = vmatprep.subr.mxu0 0.0
    %3447 = vmatpush2.msra.mxu0 0.0
    %3448 = vmatprep.subr.mxu0 0.0
    %3449 = vmatpush2.msra.mxu0 0.0
    %3450 = vmatprep.subr.mxu0 0.0
    %3451 = vmatpush2.msra.mxu0 0.0
    %3452 = vmatprep.subr.mxu0 0.0
    %3453 = vmatpush2.msra.mxu0 0.0
    %3454 = vmatprep.subr.mxu0 0.0
    %3455 = vmatpush2.msra.mxu0 0.0
    %3456 = vmatprep.subr.mxu0 0.0
    %3457 = vmatpush2.msra.mxu0 0.0
    %3458 = vmatprep.subr.mxu0 0.0
    %3459 = vmatpush2.msra.mxu0 0.0
    %3460 = vmatprep.mubr.f32.mxu0 0.0
    %3461 = vmatmul.mubr.f32.gmra.mxu0 %v3391
    %v3462 = vpop.f32.mrf.mxu0
    %v3463 = vadd.f32 %v3388, %v3462
    %v3464 = vpop.f32.mrf.mxu0
    %3465 = vmatprep.mubr.f32.mxu0 0.0
    %3466 = vmatmul.mubr.f32.gmra.mxu0 %v3394
    %v3467 = vpop.f32.mrf.mxu0
    %v3468 = vadd.f32 %v3388, %v3467
    %v3469 = vpop.f32.mrf.mxu0
    %3470 = vdwg.mxu0
    %v3471 = vmul.f32 %v3463, %v3463
    %v3472 = vmul.f32 %v3468, %v3468
    %v3473 = vmul.f32 %v3463, %v3471
    %v3474 = vmul.f32 %v3468, %v3472
    %v3475 = vmul.f32 %v3473, 0.044715
    %v3476 = vmul.f32 %v3474, 0.044715
    %v3477 = vadd.f32 %v3463, %v3475
    %v3478 = vadd.f32 %v3468, %v3476
    %v3479 = vmul.f32 %v3477, 0.7978846
    %v3480 = vmul.f32 %v3478, 0.7978846
    %v3481 = vtanh.pop %v3479
    %v3482 = vtanh.pop %v3480
    %v3483 = vadd.f32 %v3481, 1.0
    %v3484 = vadd.f32 %v3482, 1.0
    %v3485 = vmul.f32 %v3483, 0.5
    %v3486 = vmul.f32 %v3484, 0.5
    %v3487 = vmul.f32 %v3463, %v3485
    %v3488 = vmul.f32 %v3468, %v3486
    %s3489 = scalar_lea.vmem %s16, 64
    %v3490 = vld [vmem:[%s3489] sm:$0xff]
    %v3491 = vld [vmem:[%s3489 + $0x8] sm:$0xff]
    %v3492 = vld [vmem:[%s3489 + $0x10] sm:$0xff]
    %v3493 = vld [vmem:[%s3489 + $0x18] sm:$0xff]
    %v3494 = vld [vmem:[%s3489 + $0x20] sm:$0xff]
    %v3495 = vld [vmem:[%s3489 + $0x28] sm:$0xff]
    %v3496 = vld [vmem:[%s3489 + $0x30] sm:$0xff]
    %v3497 = vld [vmem:[%s3489 + $0x38] sm:$0xff]
    %s3498 = scalar_lea.vmem %s17, 1
    %v3499 = vld [vmem:[%s3498] sm:$0x1]
    %v3501 = vlaneseq
    %v3502 = vshrl.u32 %v3501, 7
    %v3503 = vsub.s32 0, %v3502
    %v3504 = vrot.slane %v3499, %v3503
    %v3507 = vsel %vm1780, %v3487, 0
    %v3510 = vsel %vm1780, %v3488, 0
    %3512 = vmatprep.subr.mxu0 0.0
    %3513 = vmatpush1.msra.mxu0 0.0
    %3514 = vmatprep.subr.mxu0 0.0
    %3515 = vmatpush1.msra.mxu0 0.0
    %3516 = vmatprep.subr.mxu0 0.0
    %3517 = vmatpush1.msra.mxu0 0.0
    %3518 = vmatprep.subr.mxu0 0.0
    %3519 = vmatpush1.msra.mxu0 0.0
    %3520 = vmatprep.subr.mxu0 0.0
    %3521 = vmatpush1.msra.mxu0 0.0
    %3522 = vmatprep.subr.mxu0 0.0
    %3523 = vmatpush1.msra.mxu0 0.0
    %3524 = vmatprep.subr.mxu0 0.0
    %3525 = vmatpush1.msra.mxu0 0.0
    %3526 = vmatprep.subr.mxu0 0.0
    %3527 = vmatpush1.msra.mxu0 0.0
    %3528 = vmatprep.subr.mxu0 0.0
    %3529 = vmatpush1.msra.mxu0 %v3497
    %3530 = vmatprep.subr.mxu0 0.0
    %3531 = vmatpush1.msra.mxu0 %v3496
    %3532 = vmatprep.subr.mxu0 0.0
    %3533 = vmatpush1.msra.mxu0 %v3495
    %3534 = vmatprep.subr.mxu0 0.0
    %3535 = vmatpush1.msra.mxu0 %v3494
    %3536 = vmatprep.subr.mxu0 0.0
    %3537 = vmatpush1.msra.mxu0 %v3493
    %3538 = vmatprep.subr.mxu0 0.0
    %3539 = vmatpush1.msra.mxu0 %v3492
    %3540 = vmatprep.subr.mxu0 0.0
    %3541 = vmatpush1.msra.mxu0 %v3491
    %3542 = vmatprep.subr.mxu0 0.0
    %3543 = vmatpush1.msra.mxu0 %v3490
    %3544 = vmatprep.subr.mxu0 0.0
    %3545 = vmatpush2.msra.mxu0 0.0
    %3546 = vmatprep.subr.mxu0 0.0
    %3547 = vmatpush2.msra.mxu0 0.0
    %3548 = vmatprep.subr.mxu0 0.0
    %3549 = vmatpush2.msra.mxu0 0.0
    %3550 = vmatprep.subr.mxu0 0.0
    %3551 = vmatpush2.msra.mxu0 0.0
    %3552 = vmatprep.subr.mxu0 0.0
    %3553 = vmatpush2.msra.mxu0 0.0
    %3554 = vmatprep.subr.mxu0 0.0
    %3555 = vmatpush2.msra.mxu0 0.0
    %3556 = vmatprep.subr.mxu0 0.0
    %3557 = vmatpush2.msra.mxu0 0.0
    %3558 = vmatprep.subr.mxu0 0.0
    %3559 = vmatpush2.msra.mxu0 0.0
    %3560 = vmatprep.subr.mxu0 0.0
    %3561 = vmatpush2.msra.mxu0 0.0
    %3562 = vmatprep.subr.mxu0 0.0
    %3563 = vmatpush2.msra.mxu0 0.0
    %3564 = vmatprep.subr.mxu0 0.0
    %3565 = vmatpush2.msra.mxu0 0.0
    %3566 = vmatprep.subr.mxu0 0.0
    %3567 = vmatpush2.msra.mxu0 0.0
    %3568 = vmatprep.subr.mxu0 0.0
    %3569 = vmatpush2.msra.mxu0 0.0
    %3570 = vmatprep.subr.mxu0 0.0
    %3571 = vmatpush2.msra.mxu0 0.0
    %3572 = vmatprep.subr.mxu0 0.0
    %3573 = vmatpush2.msra.mxu0 0.0
    %3574 = vmatprep.subr.mxu0 0.0
    %3575 = vmatpush2.msra.mxu0 0.0
    %3576 = vmatprep.mubr.f32.mxu0 0.0
    %3577 = vmatmul.mubr.f32.gmra.mxu0 %v3507
    %v3578 = vpop.f32.mrf.mxu0
    %v3579 = vadd.f32 %v3504, %v3578
    %v3580 = vpop.f32.mrf.mxu0
    %3581 = vmatprep.mubr.f32.mxu0 0.0
    %3582 = vmatmul.mubr.f32.gmra.mxu0 %v3510
    %v3583 = vpop.f32.mrf.mxu0
    %v3584 = vadd.f32 %v3504, %v3583
    %v3585 = vpop.f32.mrf.mxu0
    %3586 = vdwg.mxu0
    %v3587 = vadd.f32 %v3375, %v3579
    %v3588 = vadd.f32 %v3376, %v3584
    %s3589 = scalar_lea.vmem %s18, 1
    %v3590 = vld [vmem:[%s3589] sm:$0x1]
    %s3591 = scalar_lea.vmem %s19, 1
    %v3592 = vld [vmem:[%s3591] sm:$0x1]
    %v3593 = vsel %vm148, %v3587, 0.0
    %3594 = vadd.xlane.f32.xlu0 %v3593
    %v3595 = vpop.xlane.xlu0 %3594
    %v3596 = vsel %vm148, %v3588, 0.0
    %3597 = vadd.xlane.f32.xlu0 %v3596
    %v3598 = vpop.xlane.xlu0 %3597
    %v3599 = vmul.f32 %v3595, %v155
    %v3600 = vmul.f32 %v3598, %v155
    %v3601 = vsub.f32 %v3587, %v3599
    %v3602 = vsub.f32 %v3588, %v3600
    %v3603 = vmul.f32 %v3601, %v3601
    %v3604 = vmul.f32 %v3602, %v3602
    %v3605 = vsel %vm148, %v3603, 0.0
    %3606 = vadd.xlane.f32.xlu0 %v3605
    %v3607 = vpop.xlane.xlu0 %3606
    %v3608 = vsel %vm148, %v3604, 0.0
    %3609 = vadd.xlane.f32.xlu0 %v3608
    %v3610 = vpop.xlane.xlu0 %3609
    %v3611 = vmul.f32 %v3607, %v155
    %v3612 = vmul.f32 %v3610, %v155
    %v3613 = vadd.f32 %v3611, 1e-12
    %v3614 = vadd.f32 %v3612, 1e-12
    %v3615 = vrsqrt.pop %v3613
    %v3616 = vrsqrt.pop %v3614
    %v3617 = vmul.f32 %v3601, %v3615
    %v3618 = vmul.f32 %v3602, %v3616
    %v3620 = vlaneseq
    %v3621 = vshrl.u32 %v3620, 7
    %v3622 = vsub.s32 0, %v3621
    %v3623 = vrot.slane %v3590, %v3622
    %v3625 = vmul.f32 %v3617, %v3623
    %v3626 = vmul.f32 %v3618, %v3623
    %v3628 = vlaneseq
    %v3629 = vshrl.u32 %v3628, 7
    %v3630 = vsub.s32 0, %v3629
    %v3631 = vrot.slane %v3592, %v3630
    %v3633 = vadd.f32 %v3625, %v3631
    %v3634 = vadd.f32 %v3626, %v3631
    %3635 = vst.msk [vmem:[#allocation13] sm:$0xff] %vm148, %v3633
    %3636 = vst.msk [vmem:[#allocation13 + $0x8] sm:$0xff] %vm148, %v3634
    // Predicated region
    $region106: #{tpu_custom_call.1} parent=1 // pred_check
      _
    $region107: #{tpu_custom_call.1} parent=1 // pred_check_branch
      %3638 = sbr.rel (0) target = $region109
    $region108: #{tpu_custom_call.1} parent=1 // pred_region
      %s3640 = ssub.s32 256, 256
      %3641 = vsyncadd [#allocation4], %s3640
      %s3642 = sshll.u32 [#allocation13], 4
      %s3643 = int_to_ptr.vmem [resolvable:$true] %s3642
      %3648 = dma.vmem_to_hbm [thread:$0]  %s3643, 256, %s20, [#allocation4], 128, 128, 8
    $region109: #{tpu_custom_call.1} parent=1 // pred_fallthru
      _
    // Predicated region
    $region110: #{tpu_custom_call.1} parent=1 // pred_check
      _
    $region111: #{tpu_custom_call.1} parent=1 // pred_check_branch
      %3650 = sbr.rel (0) target = $region113
    $region112: #{tpu_custom_call.1} parent=1 // pred_region
      %3651 = dma.done [#allocation4], 256
    $region113: #{tpu_custom_call.1} parent=1 // pred_fallthru
      _
    %3652 = vsyncpa [#allocation3], 1
    %3653 = vsyncpa [#allocation6], 1
    %3654 = vsyncpa [#allocation9], 1
    %3655 = vsyncpa [#allocation12], 1
    %3656 = vsyncpa [#allocation4], 1

</llo_original>
